<compile_context>
chip_gen: v7x
topology: tpu7x:2x2x1
jax: 0.10.0
libtpu: 0.0.40
codegen_flags: <defaults>
</compile_context>

<pallas_src>
import functools
import numpy as np
import jax
import jax.numpy as jnp
from jax.experimental import pallas as pl
from jax.experimental.pallas import tpu as pltpu

# ----------------------------- config (use_map = use_vis = False) ----------------
CATEGORY_NUM = 2            # config.category_num (not used by this head's shapes)
CHANNEL = 32                # head channel
ANCHOR_NUM = 6              # len(config.anchor_size)
BOX_CODE_SIZE = 6
BN_EPS = 1e-5


# ----------------------------- fused head kernel ---------------------------------
def _head_kernel(xp_ref, w1_ref, s1_ref, b1_ref, w2_ref, b2_ref, box_ref, *, H, W):
    """Fused Conv3x3 + BN(eval) + ReLU + Conv1x1 for one image.

    xp_ref : (Min, Cin) f32   flattened zero-padded image, Min = (H+4)*(W+2)
    w1_ref : (9, Cin, Chid) bf16
    s1_ref : (1, Chid) f32    folded BN scale
    b1_ref : (1, Chid) f32    folded BN bias (includes conv1 bias)
    w2_ref : (Chid, Cout) bf16
    b2_ref : (1, Cout) f32
    box_ref: (M, Cout) f32    M = H*(W+2); columns W..W+1 of each spatial row are
                              garbage and sliced off by the wrapper.
    """
    Wp = W + 2
    M = H * Wp
    Chid = w1_ref.shape[-1]

    # 3x3 conv as 9 shifted taps: output flat index i needs padded flat index
    # i + dy*(W+2) + dx.  Static unroll -> 9 bf16 MXU matmuls, f32 accumulate.
    acc = jnp.zeros((M, Chid), jnp.float32)
    for t in range(9):
        off = (t // 3) * Wp + (t % 3)
        xwin = xp_ref[pl.ds(off, M), :].astype(jnp.bfloat16)
        acc += jnp.dot(xwin, w1_ref[t], preferred_element_type=jnp.float32)

    # Folded BatchNorm (eval) + ReLU epilogue.
    hid = jnp.maximum(acc * s1_ref[...] + b1_ref[...], 0.0)

    # 1x1 conv chained on the MXU (hidden never leaves VMEM).
    box = jnp.dot(hid.astype(jnp.bfloat16), w2_ref[...],
                  preferred_element_type=jnp.float32) + b2_ref[...]
    box_ref[...] = box


def box_prediction(params, x_nchw):
    """Pallas evaluation of self.box_prediction(x).  x_nchw: (N, C, H, W) f32."""
    N, Cin, H, W = x_nchw.shape
    Chid = params['w1'].shape[-1]
    Cout = params['w2'].shape[-1]
    Wp = W + 2
    M = H * Wp
    Min = (H + 4) * Wp          # 1 top pad row, 3 bottom rows (1 pad + 2 guard)

    x = jnp.transpose(x_nchw, (0, 2, 3, 1))                       # NHWC
    xp = jnp.pad(x, ((0, 0), (1, 3), (1, 1), (0, 0)))             # zero padding
    xflat = xp.reshape(N, Min, Cin).astype(jnp.float32)

    w1 = params['w1'].reshape(9, Cin, Chid).astype(jnp.bfloat16)  # taps (dy*3+dx)
    s = params['gamma'] / jnp.sqrt(params['var'] + BN_EPS)
    scale1 = s.reshape(1, Chid).astype(jnp.float32)
    bias1 = (s * (params['b1'] - params['mean'])
             + params['beta']).reshape(1, Chid).astype(jnp.float32)
    w2 = params['w2'].astype(jnp.bfloat16)                        # (Chid, Cout)
    b2 = params['b2'].reshape(1, Cout).astype(jnp.float32)

    out = pl.pallas_call(
        functools.partial(_head_kernel, H=H, W=W),
        out_shape=jax.ShapeDtypeStruct((N, M, Cout), jnp.float32),
        grid_spec=pltpu.PrefetchScalarGridSpec(
            num_scalar_prefetch=0,
            grid=(N,),
            in_specs=[
                pl.BlockSpec((None, Min, Cin), lambda n: (n, 0, 0)),
                pl.BlockSpec((9, Cin, Chid), lambda n: (0, 0, 0)),
                pl.BlockSpec((1, Chid), lambda n: (0, 0)),
                pl.BlockSpec((1, Chid), lambda n: (0, 0)),
                pl.BlockSpec((Chid, Cout), lambda n: (0, 0)),
                pl.BlockSpec((1, Cout), lambda n: (0, 0)),
            ],
            out_specs=pl.BlockSpec((None, M, Cout), lambda n: (n, 0, 0)),
        ),
        compiler_params=pltpu.CompilerParams(
            dimension_semantics=("parallel",),
            vmem_limit_bytes=32 * 1024 * 1024),
    )(xflat, w1, scale1, bias1, w2, b2)

    box = out.reshape(N, H, Wp, Cout)[:, :, :W, :]   # drop the 2 garbage columns
    return jnp.transpose(box, (0, 3, 1, 2))          # NCHW, like the PyTorch head


def forward(params, x_nchw):
    """RegressionHead.forward: computes box_prediction(x) but returns x,
    exactly as the reference PyTorch module does."""
    _ = box_prediction(params, x_nchw)   # computed then discarded (reference behavior)
    return x_nchw


# ----------------------------- pure-JAX reference --------------------------------
def box_prediction_ref(params, x_nchw):
    x = jnp.transpose(x_nchw, (0, 2, 3, 1)).astype(jnp.float32)
    y = jax.lax.conv_general_dilated(
        x, params['w1'], (1, 1), 'SAME',
        dimension_numbers=('NHWC', 'HWIO', 'NHWC')) + params['b1']
    s = params['gamma'] / jnp.sqrt(params['var'] + BN_EPS)
    y = jnp.maximum(s * (y - params['mean']) + params['beta'], 0.0)
    z = jnp.einsum('nhwc,cd->nhwd', y, params['w2']) + params['b2']
    return jnp.transpose(z, (0, 3, 1, 2))


# ----------------------------- deterministic params ------------------------------
def init_params(key, cin=CHANNEL, chid=CHANNEL, cout=ANCHOR_NUM * BOX_CODE_SIZE):
    ks = jax.random.split(key, 8)
    return {
        'w1': jax.random.normal(ks[0], (3, 3, cin, chid), jnp.float32)
              * np.sqrt(2.0 / (9 * cin)),
        'b1': 0.01 * jax.random.normal(ks[1], (chid,), jnp.float32),
        'gamma': 1.0 + 0.1 * jax.random.normal(ks[2], (chid,), jnp.float32),
        'beta': 0.1 * jax.random.normal(ks[3], (chid,), jnp.float32),
        'mean': 0.1 * jax.random.normal(ks[4], (chid,), jnp.float32),
        'var': 1.0 + 0.1 * jax.random.uniform(ks[5], (chid,), jnp.float32),
        'w2': jax.random.normal(ks[6], (chid, cout), jnp.float32)
              * np.sqrt(2.0 / chid),
        'b2': 0.01 * jax.random.normal(ks[7], (cout,), jnp.float32),
    }


# ----------------------------- main -----------------------------------------------
if __name__ == "__main__":
    root = jax.random.PRNGKey(0)
    k_param, k_x = jax.random.split(root, 2)

    params = init_params(k_param)

    # Input implied by the module: NCHW with channel = 32 (use_map=use_vis=False).
    N, C, H, W = 2, CHANNEL, 16, 16
    x = jax.random.normal(k_x, (N, C, H, W), jnp.float32)

    # Run the fused Pallas head kernel and verify against the pure-JAX reference.
    box = jax.jit(box_prediction)(params, x)
    jax.block_until_ready(box)
    ref = box_prediction_ref(params, x)
    np.testing.assert_allclose(np.asarray(box), np.asarray(ref), rtol=2e-2, atol=2e-2)
    assert box.shape == (N, ANCHOR_NUM * BOX_CODE_SIZE, H, W)

    # forward() keeps the reference semantics (returns the input unchanged).
    out = jax.jit(forward)(params, x)
    jax.block_until_ready(out)
    np.testing.assert_array_equal(np.asarray(out), np.asarray(x))

    print("KERNEL_OK")
</pallas_src>

<mosaic_0001>
module attributes {stable_mosaic.version = 11 : i64} {
  func.func @_head_kernel(%arg0: i32, %arg1: memref<1x360x32xf32, #tpu.memory_space<vmem>>, %arg2: memref<9x32x32xbf16, #tpu.memory_space<vmem>>, %arg3: memref<1x32xf32, #tpu.memory_space<vmem>>, %arg4: memref<1x32xf32, #tpu.memory_space<vmem>>, %arg5: memref<32x36xbf16, #tpu.memory_space<vmem>>, %arg6: memref<1x36xf32, #tpu.memory_space<vmem>>, %arg7: memref<1x288x36xf32, #tpu.memory_space<vmem>>) attributes {dimension_semantics = [#tpu.dimension_semantics<parallel>], iteration_bounds = array<i64: 2>, scalar_prefetch = 0 : i64, scratch_operands = 0 : i64, tpu.core_type = #tpu.core_type<tc>, window_params = [{transform_indices = @transform_0, window_bounds = array<i64: 1, 360, 32>}, {pipeline_mode = #tpu.pipeline_mode<synchronous>, transform_indices = @transform_1, window_bounds = array<i64: 9, 32, 32>}, {pipeline_mode = #tpu.pipeline_mode<synchronous>, transform_indices = @transform_2, window_bounds = array<i64: 1, 32>}, {pipeline_mode = #tpu.pipeline_mode<synchronous>, transform_indices = @transform_3, window_bounds = array<i64: 1, 32>}, {pipeline_mode = #tpu.pipeline_mode<synchronous>, transform_indices = @transform_4, window_bounds = array<i64: 32, 36>}, {pipeline_mode = #tpu.pipeline_mode<synchronous>, transform_indices = @transform_5, window_bounds = array<i64: 1, 36>}, {transform_indices = @transform_6, window_bounds = array<i64: 1, 288, 36>}]} {
    %cst = arith.constant 0.000000e+00 : f32
    %0 = vector.broadcast %cst : f32 to vector<288x32xf32>
    %c0 = arith.constant 0 : index
    %c0_0 = arith.constant 0 : index
    %c0_1 = arith.constant 0 : index
    %1 = vector.load %arg1[%c0, %c0_0, %c0_1] : memref<1x360x32xf32, #tpu.memory_space<vmem>>, vector<1x288x32xf32>
    %2 = vector.shape_cast %1 : vector<1x288x32xf32> to vector<288x32xf32>
    %3 = arith.truncf %2 : vector<288x32xf32> to vector<288x32xbf16>
    %c0_2 = arith.constant 0 : index
    %c0_3 = arith.constant 0 : index
    %c0_4 = arith.constant 0 : index
    %4 = vector.load %arg2[%c0_2, %c0_3, %c0_4] : memref<9x32x32xbf16, #tpu.memory_space<vmem>>, vector<1x32x32xbf16>
    %5 = vector.shape_cast %4 : vector<1x32x32xbf16> to vector<32x32xbf16>
    %cst_5 = arith.constant dense<0.000000e+00> : vector<288x32xf32>
    %6 = tpu.matmul %3, %5, %cst_5 {dimension_numbers = #tpu.dot_dimension_numbers<[1], [0], [0], [1], [0, 0, 1, 1], [], []>} : vector<288x32xbf16>, vector<32x32xbf16>, vector<288x32xf32> -> vector<288x32xf32>
    %7 = arith.addf %0, %6 : vector<288x32xf32>
    %c0_6 = arith.constant 0 : index
    %c1 = arith.constant 1 : index
    %c0_7 = arith.constant 0 : index
    %8 = vector.load %arg1[%c0_6, %c1, %c0_7] : memref<1x360x32xf32, #tpu.memory_space<vmem>>, vector<1x288x32xf32>
    %9 = vector.shape_cast %8 : vector<1x288x32xf32> to vector<288x32xf32>
    %10 = arith.truncf %9 : vector<288x32xf32> to vector<288x32xbf16>
    %c1_8 = arith.constant 1 : index
    %c0_9 = arith.constant 0 : index
    %c0_10 = arith.constant 0 : index
    %11 = vector.load %arg2[%c1_8, %c0_9, %c0_10] : memref<9x32x32xbf16, #tpu.memory_space<vmem>>, vector<1x32x32xbf16>
    %12 = vector.shape_cast %11 : vector<1x32x32xbf16> to vector<32x32xbf16>
    %cst_11 = arith.constant dense<0.000000e+00> : vector<288x32xf32>
    %13 = tpu.matmul %10, %12, %cst_11 {dimension_numbers = #tpu.dot_dimension_numbers<[1], [0], [0], [1], [0, 0, 1, 1], [], []>} : vector<288x32xbf16>, vector<32x32xbf16>, vector<288x32xf32> -> vector<288x32xf32>
    %14 = arith.addf %7, %13 : vector<288x32xf32>
    %c0_12 = arith.constant 0 : index
    %c2 = arith.constant 2 : index
    %c0_13 = arith.constant 0 : index
    %15 = vector.load %arg1[%c0_12, %c2, %c0_13] : memref<1x360x32xf32, #tpu.memory_space<vmem>>, vector<1x288x32xf32>
    %16 = vector.shape_cast %15 : vector<1x288x32xf32> to vector<288x32xf32>
    %17 = arith.truncf %16 : vector<288x32xf32> to vector<288x32xbf16>
    %c2_14 = arith.constant 2 : index
    %c0_15 = arith.constant 0 : index
    %c0_16 = arith.constant 0 : index
    %18 = vector.load %arg2[%c2_14, %c0_15, %c0_16] : memref<9x32x32xbf16, #tpu.memory_space<vmem>>, vector<1x32x32xbf16>
    %19 = vector.shape_cast %18 : vector<1x32x32xbf16> to vector<32x32xbf16>
    %cst_17 = arith.constant dense<0.000000e+00> : vector<288x32xf32>
    %20 = tpu.matmul %17, %19, %cst_17 {dimension_numbers = #tpu.dot_dimension_numbers<[1], [0], [0], [1], [0, 0, 1, 1], [], []>} : vector<288x32xbf16>, vector<32x32xbf16>, vector<288x32xf32> -> vector<288x32xf32>
    %21 = arith.addf %14, %20 : vector<288x32xf32>
    %c0_18 = arith.constant 0 : index
    %c18 = arith.constant 18 : index
    %c0_19 = arith.constant 0 : index
    %22 = vector.load %arg1[%c0_18, %c18, %c0_19] : memref<1x360x32xf32, #tpu.memory_space<vmem>>, vector<1x288x32xf32>
    %23 = vector.shape_cast %22 : vector<1x288x32xf32> to vector<288x32xf32>
    %24 = arith.truncf %23 : vector<288x32xf32> to vector<288x32xbf16>
    %c3 = arith.constant 3 : index
    %c0_20 = arith.constant 0 : index
    %c0_21 = arith.constant 0 : index
    %25 = vector.load %arg2[%c3, %c0_20, %c0_21] : memref<9x32x32xbf16, #tpu.memory_space<vmem>>, vector<1x32x32xbf16>
    %26 = vector.shape_cast %25 : vector<1x32x32xbf16> to vector<32x32xbf16>
    %cst_22 = arith.constant dense<0.000000e+00> : vector<288x32xf32>
    %27 = tpu.matmul %24, %26, %cst_22 {dimension_numbers = #tpu.dot_dimension_numbers<[1], [0], [0], [1], [0, 0, 1, 1], [], []>} : vector<288x32xbf16>, vector<32x32xbf16>, vector<288x32xf32> -> vector<288x32xf32>
    %28 = arith.addf %21, %27 : vector<288x32xf32>
    %c0_23 = arith.constant 0 : index
    %c19 = arith.constant 19 : index
    %c0_24 = arith.constant 0 : index
    %29 = vector.load %arg1[%c0_23, %c19, %c0_24] : memref<1x360x32xf32, #tpu.memory_space<vmem>>, vector<1x288x32xf32>
    %30 = vector.shape_cast %29 : vector<1x288x32xf32> to vector<288x32xf32>
    %31 = arith.truncf %30 : vector<288x32xf32> to vector<288x32xbf16>
    %c4 = arith.constant 4 : index
    %c0_25 = arith.constant 0 : index
    %c0_26 = arith.constant 0 : index
    %32 = vector.load %arg2[%c4, %c0_25, %c0_26] : memref<9x32x32xbf16, #tpu.memory_space<vmem>>, vector<1x32x32xbf16>
    %33 = vector.shape_cast %32 : vector<1x32x32xbf16> to vector<32x32xbf16>
    %cst_27 = arith.constant dense<0.000000e+00> : vector<288x32xf32>
    %34 = tpu.matmul %31, %33, %cst_27 {dimension_numbers = #tpu.dot_dimension_numbers<[1], [0], [0], [1], [0, 0, 1, 1], [], []>} : vector<288x32xbf16>, vector<32x32xbf16>, vector<288x32xf32> -> vector<288x32xf32>
    %35 = arith.addf %28, %34 : vector<288x32xf32>
    %c0_28 = arith.constant 0 : index
    %c20 = arith.constant 20 : index
    %c0_29 = arith.constant 0 : index
    %36 = vector.load %arg1[%c0_28, %c20, %c0_29] : memref<1x360x32xf32, #tpu.memory_space<vmem>>, vector<1x288x32xf32>
    %37 = vector.shape_cast %36 : vector<1x288x32xf32> to vector<288x32xf32>
    %38 = arith.truncf %37 : vector<288x32xf32> to vector<288x32xbf16>
    %c5 = arith.constant 5 : index
    %c0_30 = arith.constant 0 : index
    %c0_31 = arith.constant 0 : index
    %39 = vector.load %arg2[%c5, %c0_30, %c0_31] : memref<9x32x32xbf16, #tpu.memory_space<vmem>>, vector<1x32x32xbf16>
    %40 = vector.shape_cast %39 : vector<1x32x32xbf16> to vector<32x32xbf16>
    %cst_32 = arith.constant dense<0.000000e+00> : vector<288x32xf32>
    %41 = tpu.matmul %38, %40, %cst_32 {dimension_numbers = #tpu.dot_dimension_numbers<[1], [0], [0], [1], [0, 0, 1, 1], [], []>} : vector<288x32xbf16>, vector<32x32xbf16>, vector<288x32xf32> -> vector<288x32xf32>
    %42 = arith.addf %35, %41 : vector<288x32xf32>
    %c0_33 = arith.constant 0 : index
    %c36 = arith.constant 36 : index
    %c0_34 = arith.constant 0 : index
    %43 = vector.load %arg1[%c0_33, %c36, %c0_34] : memref<1x360x32xf32, #tpu.memory_space<vmem>>, vector<1x288x32xf32>
    %44 = vector.shape_cast %43 : vector<1x288x32xf32> to vector<288x32xf32>
    %45 = arith.truncf %44 : vector<288x32xf32> to vector<288x32xbf16>
    %c6 = arith.constant 6 : index
    %c0_35 = arith.constant 0 : index
    %c0_36 = arith.constant 0 : index
    %46 = vector.load %arg2[%c6, %c0_35, %c0_36] : memref<9x32x32xbf16, #tpu.memory_space<vmem>>, vector<1x32x32xbf16>
    %47 = vector.shape_cast %46 : vector<1x32x32xbf16> to vector<32x32xbf16>
    %cst_37 = arith.constant dense<0.000000e+00> : vector<288x32xf32>
    %48 = tpu.matmul %45, %47, %cst_37 {dimension_numbers = #tpu.dot_dimension_numbers<[1], [0], [0], [1], [0, 0, 1, 1], [], []>} : vector<288x32xbf16>, vector<32x32xbf16>, vector<288x32xf32> -> vector<288x32xf32>
    %49 = arith.addf %42, %48 : vector<288x32xf32>
    %c0_38 = arith.constant 0 : index
    %c37 = arith.constant 37 : index
    %c0_39 = arith.constant 0 : index
    %50 = vector.load %arg1[%c0_38, %c37, %c0_39] : memref<1x360x32xf32, #tpu.memory_space<vmem>>, vector<1x288x32xf32>
    %51 = vector.shape_cast %50 : vector<1x288x32xf32> to vector<288x32xf32>
    %52 = arith.truncf %51 : vector<288x32xf32> to vector<288x32xbf16>
    %c7 = arith.constant 7 : index
    %c0_40 = arith.constant 0 : index
    %c0_41 = arith.constant 0 : index
    %53 = vector.load %arg2[%c7, %c0_40, %c0_41] : memref<9x32x32xbf16, #tpu.memory_space<vmem>>, vector<1x32x32xbf16>
    %54 = vector.shape_cast %53 : vector<1x32x32xbf16> to vector<32x32xbf16>
    %cst_42 = arith.constant dense<0.000000e+00> : vector<288x32xf32>
    %55 = tpu.matmul %52, %54, %cst_42 {dimension_numbers = #tpu.dot_dimension_numbers<[1], [0], [0], [1], [0, 0, 1, 1], [], []>} : vector<288x32xbf16>, vector<32x32xbf16>, vector<288x32xf32> -> vector<288x32xf32>
    %56 = arith.addf %49, %55 : vector<288x32xf32>
    %c0_43 = arith.constant 0 : index
    %c38 = arith.constant 38 : index
    %c0_44 = arith.constant 0 : index
    %57 = vector.load %arg1[%c0_43, %c38, %c0_44] : memref<1x360x32xf32, #tpu.memory_space<vmem>>, vector<1x288x32xf32>
    %58 = vector.shape_cast %57 : vector<1x288x32xf32> to vector<288x32xf32>
    %59 = arith.truncf %58 : vector<288x32xf32> to vector<288x32xbf16>
    %c8 = arith.constant 8 : index
    %c0_45 = arith.constant 0 : index
    %c0_46 = arith.constant 0 : index
    %60 = vector.load %arg2[%c8, %c0_45, %c0_46] : memref<9x32x32xbf16, #tpu.memory_space<vmem>>, vector<1x32x32xbf16>
    %61 = vector.shape_cast %60 : vector<1x32x32xbf16> to vector<32x32xbf16>
    %cst_47 = arith.constant dense<0.000000e+00> : vector<288x32xf32>
    %62 = tpu.matmul %59, %61, %cst_47 {dimension_numbers = #tpu.dot_dimension_numbers<[1], [0], [0], [1], [0, 0, 1, 1], [], []>} : vector<288x32xbf16>, vector<32x32xbf16>, vector<288x32xf32> -> vector<288x32xf32>
    %63 = arith.addf %56, %62 : vector<288x32xf32>
    %c0_48 = arith.constant 0 : index
    %c0_49 = arith.constant 0 : index
    %64 = vector.load %arg3[%c0_48, %c0_49] : memref<1x32xf32, #tpu.memory_space<vmem>>, vector<1x32xf32>
    %65 = vector.broadcast %64 : vector<1x32xf32> to vector<288x32xf32>
    %66 = arith.mulf %63, %65 : vector<288x32xf32>
    %c0_50 = arith.constant 0 : index
    %c0_51 = arith.constant 0 : index
    %67 = vector.load %arg4[%c0_50, %c0_51] : memref<1x32xf32, #tpu.memory_space<vmem>>, vector<1x32xf32>
    %68 = vector.broadcast %67 : vector<1x32xf32> to vector<288x32xf32>
    %69 = arith.addf %66, %68 : vector<288x32xf32>
    %cst_52 = arith.constant 0.000000e+00 : f32
    %70 = vector.broadcast %cst_52 : f32 to vector<288x32xf32>
    %71 = arith.maximumf %69, %70 : vector<288x32xf32>
    %72 = arith.truncf %71 : vector<288x32xf32> to vector<288x32xbf16>
    %c0_53 = arith.constant 0 : index
    %c0_54 = arith.constant 0 : index
    %73 = vector.load %arg5[%c0_53, %c0_54] : memref<32x36xbf16, #tpu.memory_space<vmem>>, vector<32x36xbf16>
    %cst_55 = arith.constant dense<0.000000e+00> : vector<288x36xf32>
    %74 = tpu.matmul %72, %73, %cst_55 {dimension_numbers = #tpu.dot_dimension_numbers<[1], [0], [0], [1], [0, 0, 1, 1], [], []>} : vector<288x32xbf16>, vector<32x36xbf16>, vector<288x36xf32> -> vector<288x36xf32>
    %c0_56 = arith.constant 0 : index
    %c0_57 = arith.constant 0 : index
    %75 = vector.load %arg6[%c0_56, %c0_57] : memref<1x36xf32, #tpu.memory_space<vmem>>, vector<1x36xf32>
    %76 = vector.broadcast %75 : vector<1x36xf32> to vector<288x36xf32>
    %77 = arith.addf %74, %76 : vector<288x36xf32>
    %c0_58 = arith.constant 0 : index
    %c0_59 = arith.constant 0 : index
    %c0_60 = arith.constant 0 : index
    %78 = vector.load %arg7[%c0_58, %c0_59, %c0_60] : memref<1x288x36xf32, #tpu.memory_space<vmem>>, vector<1x288x36xf32>
    %79 = vector.shape_cast %78 : vector<1x288x36xf32> to vector<288x36xf32>
    %80 = vector.shape_cast %77 : vector<288x36xf32> to vector<1x288x36xf32>
    tpu.vector_store %arg7[%c0_58, %c0_59, %c0_60], %80 {strides = array<i32>} : memref<1x288x36xf32, #tpu.memory_space<vmem>>, vector<1x288x36xf32>,
    return
  }
  func.func @transform_0(%arg0: i32) -> (i32, i32, i32) {
    %c0_i32 = arith.constant 0 : i32
    %c0_i32_0 = arith.constant 0 : i32
    %c0_i32_1 = arith.constant 0 : i32
    return %arg0, %c0_i32, %c0_i32_0 : i32, i32, i32
  }
  func.func @transform_1(%arg0: i32) -> (i32, i32, i32) {
    %c0_i32 = arith.constant 0 : i32
    %c0_i32_0 = arith.constant 0 : i32
    %c0_i32_1 = arith.constant 0 : i32
    %c0_i32_2 = arith.constant 0 : i32
    return %c0_i32, %c0_i32_0, %c0_i32_1 : i32, i32, i32
  }
  func.func @transform_2(%arg0: i32) -> (i32, i32) {
    %c0_i32 = arith.constant 0 : i32
    %c0_i32_0 = arith.constant 0 : i32
    %c0_i32_1 = arith.constant 0 : i32
    return %c0_i32, %c0_i32_0 : i32, i32
  }
  func.func @transform_3(%arg0: i32) -> (i32, i32) {
    %c0_i32 = arith.constant 0 : i32
    %c0_i32_0 = arith.constant 0 : i32
    %c0_i32_1 = arith.constant 0 : i32
    return %c0_i32, %c0_i32_0 : i32, i32
  }
  func.func @transform_4(%arg0: i32) -> (i32, i32) {
    %c0_i32 = arith.constant 0 : i32
    %c0_i32_0 = arith.constant 0 : i32
    %c0_i32_1 = arith.constant 0 : i32
    return %c0_i32, %c0_i32_0 : i32, i32
  }
  func.func @transform_5(%arg0: i32) -> (i32, i32) {
    %c0_i32 = arith.constant 0 : i32
    %c0_i32_0 = arith.constant 0 : i32
    %c0_i32_1 = arith.constant 0 : i32
    return %c0_i32, %c0_i32_0 : i32, i32
  }
  func.func @transform_6(%arg0: i32) -> (i32, i32, i32) {
    %c0_i32 = arith.constant 0 : i32
    %c0_i32_0 = arith.constant 0 : i32
    %c0_i32_1 = arith.constant 0 : i32
    return %arg0, %c0_i32, %c0_i32_0 : i32, i32, i32
  }
}

</mosaic_0001>

<llo_original>
// kernel: box_prediction.1
$region0: #{box_prediction.1}
  #allocation0 [shape = 'u32[]', space=smem, size = 0x4, offset = 0x4, fixed_abs, tag = 'smem constant byte address 0x4 - core index']
  #allocation1 [shape = 'u32[144,128]{1,0:T(1,128)}', space=vmem, size = 0x12000, scoped, tag = 'internal scratch']
  %s0 = inlined_call_operand.vmem [shape: f32[2,360,32], index: 0, kind: input, shape index: {}]
  %s1 = inlined_call_operand.vmem [shape: bf16[9,32,32], index: 1, kind: input, shape index: {}]
  %s2 = inlined_call_operand.vmem [shape: f32[1,32], index: 2, kind: input, shape index: {}]
  %s3 = inlined_call_operand.vmem [shape: f32[1,32], index: 3, kind: input, shape index: {}]
  %s4 = inlined_call_operand.vmem [shape: bf16[32,36], index: 4, kind: input, shape index: {}]
  %s5 = inlined_call_operand.vmem [shape: f32[1,36], index: 5, kind: input, shape index: {}]
  %s6 = inlined_call_operand.vmem [shape: f32[2,288,36], index: 6, kind: output, shape index: {}]
  %s7 = sld [smem:[#allocation0]]
  $region57: #{box_prediction.1} parent=0
    _
  %s9 = ssub.s32 1, %s7
  %s10 = scalar_select 0, %s9, %s7
  loop: start=0, step=1, limit=4
  $region2: #{box_prediction.1} parent=0 // loop_pre_header
    _
  $region3: #{box_prediction.1} parent=0 // loop_header
    %s12 = sphi 0, %s16
    %p13 = scmp.ge.s32.totalorder %s12, 4
    %s22 = sphi 0, %s24
    %s25 = sphi 0, %s22
    %s26 = sphi 0, %s25
    %s42 = sphi 0, %s26
    %s46 = sphi 0, %s46
    %s48 = sphi 0, %s46
    %s49 = sphi 0, %s48
    %s63 = sphi 0, %s49
    %s67 = sphi 0, %s67
    %s69 = sphi 0, %s67
    %s70 = sphi 0, %s69
    %s84 = sphi 0, %s70
    %s88 = sphi 0, %s88
    %s90 = sphi 0, %s88
    %s91 = sphi 0, %s90
    %s105 = sphi 0, %s91
    %s109 = sphi 0, %s109
    %s111 = sphi 0, %s109
    %s112 = sphi 0, %s111
    %s126 = sphi 0, %s112
    %s130 = sphi 0, %s130
    %s132 = sphi 0, %s130
    %s133 = sphi 0, %s132
    %s147 = sphi 0, %s133
    %s153 = sphi 0, %s155
    %s156 = sphi 0, %s153
    %s157 = sphi 0, %s156
    %s173 = sphi 0, %s157
  $region4: #{box_prediction.1} parent=0 // loop_header_branch
    %15 = sbr.rel (%p13) target = $region8
  $region5: #{box_prediction.1} parent=0 // loop_body
    %s17 = ssub.s32 %s12, 1
    %s18 = ssub.s32 %s12, 2
    %s19 = sadd.s32 %s12, 1
    %s20 = ssub.s32 %s12, %s19
    %p21 = scmp.eq.s32.totalorder %s20, 0
    %s23 = sadd.s32 %s22, 1
    %s24 = scalar_select %p21, %s22, %s23
    %p27 = pneg %p21
    %p28 = scmp.eq.s32.totalorder %s12, 1
    %p29 = por %p27, %p28
    %p30 = scmp.ne.s32.totalorder %s22, %s25
    %p31 = scmp.eq.s32.totalorder %s12, 0
    %p32 = por %p30, %p31
    %p33 = scmp.ne.s32.totalorder %s22, %s25
    %p34 = scmp.eq.s32.totalorder %s17, 1
    %p35 = por %p33, %p34
    %p36 = scmp.ne.s32.totalorder %s25, %s26
    %p37 = scmp.eq.s32.totalorder %s17, 0
    %p38 = por %p36, %p37
    %p39 = scmp.ne.s32.totalorder %s25, %s26
    %p40 = scmp.eq.s32.totalorder %s18, 1
    %p41 = por %p39, %p40
    %p43 = scmp.ne.s32.totalorder %s26, %s42
    %p44 = scmp.eq.s32.totalorder %s18, 0
    %p45 = por %p43, %p44
    %s47 = sadd.s32 %s46, 1
    %p50 = scmp.eq.s32.totalorder %s12, 1
    %p51 = scmp.ne.s32.totalorder %s46, %s48
    %p52 = scmp.eq.s32.totalorder %s12, 0
    %p53 = por %p51, %p52
    %p54 = scmp.ne.s32.totalorder %s46, %s48
    %p55 = scmp.eq.s32.totalorder %s17, 1
    %p56 = por %p54, %p55
    %p57 = scmp.ne.s32.totalorder %s48, %s49
    %p58 = scmp.eq.s32.totalorder %s17, 0
    %p59 = por %p57, %p58
    %p60 = scmp.ne.s32.totalorder %s48, %s49
    %p61 = scmp.eq.s32.totalorder %s18, 1
    %p62 = por %p60, %p61
    %p64 = scmp.ne.s32.totalorder %s49, %s63
    %p65 = scmp.eq.s32.totalorder %s18, 0
    %p66 = por %p64, %p65
    %s68 = sadd.s32 %s67, 1
    %p71 = scmp.eq.s32.totalorder %s12, 1
    %p72 = scmp.ne.s32.totalorder %s67, %s69
    %p73 = scmp.eq.s32.totalorder %s12, 0
    %p74 = por %p72, %p73
    %p75 = scmp.ne.s32.totalorder %s67, %s69
    %p76 = scmp.eq.s32.totalorder %s17, 1
    %p77 = por %p75, %p76
    %p78 = scmp.ne.s32.totalorder %s69, %s70
    %p79 = scmp.eq.s32.totalorder %s17, 0
    %p80 = por %p78, %p79
    %p81 = scmp.ne.s32.totalorder %s69, %s70
    %p82 = scmp.eq.s32.totalorder %s18, 1
    %p83 = por %p81, %p82
    %p85 = scmp.ne.s32.totalorder %s70, %s84
    %p86 = scmp.eq.s32.totalorder %s18, 0
    %p87 = por %p85, %p86
    %s89 = sadd.s32 %s88, 1
    %p92 = scmp.eq.s32.totalorder %s12, 1
    %p93 = scmp.ne.s32.totalorder %s88, %s90
    %p94 = scmp.eq.s32.totalorder %s12, 0
    %p95 = por %p93, %p94
    %p96 = scmp.ne.s32.totalorder %s88, %s90
    %p97 = scmp.eq.s32.totalorder %s17, 1
    %p98 = por %p96, %p97
    %p99 = scmp.ne.s32.totalorder %s90, %s91
    %p100 = scmp.eq.s32.totalorder %s17, 0
    %p101 = por %p99, %p100
    %p102 = scmp.ne.s32.totalorder %s90, %s91
    %p103 = scmp.eq.s32.totalorder %s18, 1
    %p104 = por %p102, %p103
    %p106 = scmp.ne.s32.totalorder %s91, %s105
    %p107 = scmp.eq.s32.totalorder %s18, 0
    %p108 = por %p106, %p107
    %s110 = sadd.s32 %s109, 1
    %p113 = scmp.eq.s32.totalorder %s12, 1
    %p114 = scmp.ne.s32.totalorder %s109, %s111
    %p115 = scmp.eq.s32.totalorder %s12, 0
    %p116 = por %p114, %p115
    %p117 = scmp.ne.s32.totalorder %s109, %s111
    %p118 = scmp.eq.s32.totalorder %s17, 1
    %p119 = por %p117, %p118
    %p120 = scmp.ne.s32.totalorder %s111, %s112
    %p121 = scmp.eq.s32.totalorder %s17, 0
    %p122 = por %p120, %p121
    %p123 = scmp.ne.s32.totalorder %s111, %s112
    %p124 = scmp.eq.s32.totalorder %s18, 1
    %p125 = por %p123, %p124
    %p127 = scmp.ne.s32.totalorder %s112, %s126
    %p128 = scmp.eq.s32.totalorder %s18, 0
    %p129 = por %p127, %p128
    %s131 = sadd.s32 %s130, 1
    %p134 = scmp.eq.s32.totalorder %s12, 1
    %p135 = scmp.ne.s32.totalorder %s130, %s132
    %p136 = scmp.eq.s32.totalorder %s12, 0
    %p137 = por %p135, %p136
    %p138 = scmp.ne.s32.totalorder %s130, %s132
    %p139 = scmp.eq.s32.totalorder %s17, 1
    %p140 = por %p138, %p139
    %p141 = scmp.ne.s32.totalorder %s132, %s133
    %p142 = scmp.eq.s32.totalorder %s17, 0
    %p143 = por %p141, %p142
    %p144 = scmp.ne.s32.totalorder %s132, %s133
    %p145 = scmp.eq.s32.totalorder %s18, 1
    %p146 = por %p144, %p145
    %p148 = scmp.ne.s32.totalorder %s133, %s147
    %p149 = scmp.eq.s32.totalorder %s18, 0
    %p150 = por %p148, %p149
    %s151 = ssub.s32 %s12, %s19
    %p152 = scmp.eq.s32.totalorder %s151, 0
    %s154 = sadd.s32 %s153, 1
    %s155 = scalar_select %p152, %s153, %s154
    %p158 = pneg %p152
    %p159 = scmp.eq.s32.totalorder %s12, 1
    %p160 = por %p158, %p159
    %p161 = scmp.ne.s32.totalorder %s153, %s156
    %p162 = scmp.eq.s32.totalorder %s12, 0
    %p163 = por %p161, %p162
    %p164 = scmp.ne.s32.totalorder %s153, %s156
    %p165 = scmp.eq.s32.totalorder %s17, 1
    %p166 = por %p164, %p165
    %p167 = scmp.ne.s32.totalorder %s156, %s157
    %p168 = scmp.eq.s32.totalorder %s17, 0
    %p169 = por %p167, %p168
    %p170 = scmp.ne.s32.totalorder %s156, %s157
    %p171 = scmp.eq.s32.totalorder %s18, 1
    %p172 = por %p170, %p171
    %p174 = scmp.ne.s32.totalorder %s157, %s173
    %p175 = scmp.eq.s32.totalorder %s18, 0
    %p176 = por %p174, %p175
    %p177 = scmp.le.s32.totalorder 1, %s12
    %p178 = scmp.lt.s32.totalorder %s12, 3
    %p179 = pnand %p177, %p178
    %p180 = pneg %p179
    // Predicated region
    $region9: #{box_prediction.1} parent=5 // pred_check
      _
    $region10: #{box_prediction.1} parent=5 // pred_check_branch
      %182 = sbr.rel (%p179) target = $region12
    $region11: #{box_prediction.1} parent=5 // pred_region
      %s183 = ssub.s32 %s12, 1
      // Predicated region
      $region13: #{box_prediction.1} parent=11 // pred_check
        %p184 = pneg %p59
      $region14: #{box_prediction.1} parent=11 // pred_check_branch
        %186 = sbr.rel (%p184) target = $region16
      $region15: #{box_prediction.1} parent=11 // pred_region
        _
      $region16: #{box_prediction.1} parent=11 // pred_fallthru
        _
      // Predicated region
      $region17: #{box_prediction.1} parent=11 // pred_check
        %p187 = pneg %p80
      $region18: #{box_prediction.1} parent=11 // pred_check_branch
        %189 = sbr.rel (%p187) target = $region20
      $region19: #{box_prediction.1} parent=11 // pred_region
        _
      $region20: #{box_prediction.1} parent=11 // pred_fallthru
        _
      // Predicated region
      $region21: #{box_prediction.1} parent=11 // pred_check
        %p190 = pneg %p101
      $region22: #{box_prediction.1} parent=11 // pred_check_branch
        %192 = sbr.rel (%p190) target = $region24
      $region23: #{box_prediction.1} parent=11 // pred_region
        _
      $region24: #{box_prediction.1} parent=11 // pred_fallthru
        _
      // Predicated region
      $region25: #{box_prediction.1} parent=11 // pred_check
        %p193 = pneg %p122
      $region26: #{box_prediction.1} parent=11 // pred_check_branch
        %195 = sbr.rel (%p193) target = $region28
      $region27: #{box_prediction.1} parent=11 // pred_region
        _
      $region28: #{box_prediction.1} parent=11 // pred_fallthru
        _
      // Predicated region
      $region29: #{box_prediction.1} parent=11 // pred_check
        %p196 = pneg %p143
      $region30: #{box_prediction.1} parent=11 // pred_check_branch
        %198 = sbr.rel (%p196) target = $region32
      $region31: #{box_prediction.1} parent=11 // pred_region
        _
      $region32: #{box_prediction.1} parent=11 // pred_fallthru
        _
    $region12: #{box_prediction.1} parent=5 // pred_fallthru
      _
    %p199 = scmp.lt.s32.totalorder %s12, 2
    // Predicated region
    $region33: #{box_prediction.1} parent=5 // pred_check
      %p200 = pneg %p199
    $region34: #{box_prediction.1} parent=5 // pred_check_branch
      %202 = sbr.rel (%p200) target = $region36
    $region35: #{box_prediction.1} parent=5 // pred_region
      // Predicated region
      $region37: #{box_prediction.1} parent=35 // pred_check
        %p203 = pneg %p32
      $region38: #{box_prediction.1} parent=35 // pred_check_branch
        %205 = sbr.rel (%p203) target = $region40
      $region39: #{box_prediction.1} parent=35 // pred_region
        %p206 = scmp.lt.s32.totalorder %s12, 1
        %s207 = scalar_select %p206, %s12, 1
        %s208 = smul.addr %s207, 45
        %s209 = smul.addr %s208, 8
        %s210 = scalar_lea.vmem %s0, %s209
      $region40: #{box_prediction.1} parent=35 // pred_fallthru
        _
    $region36: #{box_prediction.1} parent=5 // pred_fallthru
      _
    %p211 = scmp.le.s32.totalorder 1, %s12
    %p212 = scmp.lt.s32.totalorder %s12, 3
    %p213 = pnand %p211, %p212
    %p214 = pneg %p213
    // Predicated region
    $region41: #{box_prediction.1} parent=5 // pred_check
      _
    $region42: #{box_prediction.1} parent=5 // pred_check_branch
      %216 = sbr.rel (%p213) target = $region44
    $region43: #{box_prediction.1} parent=5 // pred_region
      %s217 = ssub.s32 %s12, 1
      %p218 = scmp.lt.s32.totalorder %s17, 1
      %s219 = scalar_select %p218, %s17, 1
      %s220 = smul.addr %s219, 45
      %s221 = smul.addr %s220, 8
      %s222 = scalar_lea.vmem %s0, %s221
      %p223 = pneg %p38
      %p224 = pneg %p35
      %p225 = pneg %p59
      %p226 = pneg %p56
      %p227 = pneg %p80
      %p228 = pneg %p77
      %p229 = pneg %p101
      %p230 = pneg %p98
      %p231 = pneg %p122
      %p232 = pneg %p119
      %p233 = pneg %p143
      %p234 = pneg %p140
      %p235 = pneg %p169
      %p236 = pneg %p166
      %p237 = scmp.lt.s32.totalorder %s17, 1
      %s238 = scalar_select %p237, %s17, 1
      %s239 = smul.addr %s238, 36
      %s240 = smul.addr %s239, 8
      %s241 = scalar_lea.vmem %s6, %s240
      %p242 = scmp.lt.s32.totalorder %s17, 1
      %s243 = scalar_select %p242, %s17, 1
      %s244 = smul.addr %s243, 45
      %s245 = smul.addr %s244, 8
      %s246 = scalar_lea.vmem %s0, %s245
      %p247 = scmp.lt.s32.totalorder %s17, 1
      %s248 = scalar_select %p247, %s17, 1
      %s249 = smul.addr %s248, 36
      %s250 = smul.addr %s249, 8
      %s251 = scalar_lea.vmem %s6, %s250
      %v253 = vld [vmem:[%s246] sm:$0xff]
      %v254 = vld [vmem:[%s246 + $0x8] sm:$0xff]
      %v255 = vld [vmem:[%s246 + $0x10] sm:$0xff]
      %v256 = vld [vmem:[%s246 + $0x18] sm:$0xff]
      %v257 = vld [vmem:[%s246 + $0x20] sm:$0xff]
      %v258 = vld [vmem:[%s246 + $0x28] sm:$0xff]
      %v259 = vld [vmem:[%s246 + $0x30] sm:$0xff]
      %v260 = vld [vmem:[%s246 + $0x38] sm:$0xff]
      %v261 = vld [vmem:[%s246 + $0x40] sm:$0xff]
      %v262 = vld [vmem:[%s246 + $0x48] sm:$0xff]
      %v263 = vld [vmem:[%s246 + $0x50] sm:$0xff]
      %v264 = vld [vmem:[%s246 + $0x58] sm:$0xff]
      %v265 = vld [vmem:[%s246 + $0x60] sm:$0xff]
      %v266 = vld [vmem:[%s246 + $0x68] sm:$0xff]
      %v267 = vld [vmem:[%s246 + $0x70] sm:$0xff]
      %v268 = vld [vmem:[%s246 + $0x78] sm:$0xff]
      %v269 = vld [vmem:[%s246 + $0x80] sm:$0xff]
      %v270 = vld [vmem:[%s246 + $0x88] sm:$0xff]
      %v271 = vld [vmem:[%s246 + $0x90] sm:$0xff]
      %v272 = vld [vmem:[%s246 + $0x98] sm:$0xff]
      %v273 = vld [vmem:[%s246 + $0xa0] sm:$0xff]
      %v274 = vld [vmem:[%s246 + $0xa8] sm:$0xff]
      %v275 = vld [vmem:[%s246 + $0xb0] sm:$0xff]
      %v276 = vld [vmem:[%s246 + $0xb8] sm:$0xff]
      %v277 = vld [vmem:[%s246 + $0xc0] sm:$0xff]
      %v278 = vld [vmem:[%s246 + $0xc8] sm:$0xff]
      %v279 = vld [vmem:[%s246 + $0xd0] sm:$0xff]
      %v280 = vld [vmem:[%s246 + $0xd8] sm:$0xff]
      %v281 = vld [vmem:[%s246 + $0xe0] sm:$0xff]
      %v282 = vld [vmem:[%s246 + $0xe8] sm:$0xff]
      %v283 = vld [vmem:[%s246 + $0xf0] sm:$0xff]
      %v284 = vld [vmem:[%s246 + $0xf8] sm:$0xff]
      %v285 = vld [vmem:[%s246 + $0x100] sm:$0xff]
      %v286 = vld [vmem:[%s246 + $0x108] sm:$0xff]
      %v287 = vld [vmem:[%s246 + $0x110] sm:$0xff]
      %v288 = vld [vmem:[%s246 + $0x118] sm:$0xff]
      %v289 = vpack.c.bf16 %v254, %v253
      %v290 = vpack.c.bf16 %v256, %v255
      %v291 = vpack.c.bf16 %v258, %v257
      %v292 = vpack.c.bf16 %v260, %v259
      %v293 = vpack.c.bf16 %v262, %v261
      %v294 = vpack.c.bf16 %v264, %v263
      %v295 = vpack.c.bf16 %v266, %v265
      %v296 = vpack.c.bf16 %v268, %v267
      %v297 = vpack.c.bf16 %v270, %v269
      %v298 = vpack.c.bf16 %v272, %v271
      %v299 = vpack.c.bf16 %v274, %v273
      %v300 = vpack.c.bf16 %v276, %v275
      %v301 = vpack.c.bf16 %v278, %v277
      %v302 = vpack.c.bf16 %v280, %v279
      %v303 = vpack.c.bf16 %v282, %v281
      %v304 = vpack.c.bf16 %v284, %v283
      %v305 = vpack.c.bf16 %v286, %v285
      %v306 = vpack.c.bf16 %v288, %v287
      %v307 = vld [vmem:[%s1] sm:$0xf]
      %v308 = vld [vmem:[%s1 + $0x4] sm:$0xf]
      %v309 = vld [vmem:[%s1 + $0x8] sm:$0xf]
      %v310 = vld [vmem:[%s1 + $0xc] sm:$0xf]
      %v311 = vld [vmem:[%s246 + $0x1] sm:$0xff]
      %v312 = vld [vmem:[%s246 + $0x9] sm:$0xff]
      %v313 = vld [vmem:[%s246 + $0x11] sm:$0xff]
      %v314 = vld [vmem:[%s246 + $0x19] sm:$0xff]
      %v315 = vld [vmem:[%s246 + $0x21] sm:$0xff]
      %v316 = vld [vmem:[%s246 + $0x29] sm:$0xff]
      %v317 = vld [vmem:[%s246 + $0x31] sm:$0xff]
      %v318 = vld [vmem:[%s246 + $0x39] sm:$0xff]
      %v319 = vld [vmem:[%s246 + $0x41] sm:$0xff]
      %v320 = vld [vmem:[%s246 + $0x49] sm:$0xff]
      %v321 = vld [vmem:[%s246 + $0x51] sm:$0xff]
      %v322 = vld [vmem:[%s246 + $0x59] sm:$0xff]
      %v323 = vld [vmem:[%s246 + $0x61] sm:$0xff]
      %v324 = vld [vmem:[%s246 + $0x69] sm:$0xff]
      %v325 = vld [vmem:[%s246 + $0x71] sm:$0xff]
      %v326 = vld [vmem:[%s246 + $0x79] sm:$0xff]
      %v327 = vld [vmem:[%s246 + $0x81] sm:$0xff]
      %v328 = vld [vmem:[%s246 + $0x89] sm:$0xff]
      %v329 = vld [vmem:[%s246 + $0x91] sm:$0xff]
      %v330 = vld [vmem:[%s246 + $0x99] sm:$0xff]
      %v331 = vld [vmem:[%s246 + $0xa1] sm:$0xff]
      %v332 = vld [vmem:[%s246 + $0xa9] sm:$0xff]
      %v333 = vld [vmem:[%s246 + $0xb1] sm:$0xff]
      %v334 = vld [vmem:[%s246 + $0xb9] sm:$0xff]
      %v335 = vld [vmem:[%s246 + $0xc1] sm:$0xff]
      %v336 = vld [vmem:[%s246 + $0xc9] sm:$0xff]
      %v337 = vld [vmem:[%s246 + $0xd1] sm:$0xff]
      %v338 = vld [vmem:[%s246 + $0xd9] sm:$0xff]
      %v339 = vld [vmem:[%s246 + $0xe1] sm:$0xff]
      %v340 = vld [vmem:[%s246 + $0xe9] sm:$0xff]
      %v341 = vld [vmem:[%s246 + $0xf1] sm:$0xff]
      %v342 = vld [vmem:[%s246 + $0xf9] sm:$0xff]
      %v343 = vld [vmem:[%s246 + $0x101] sm:$0xff]
      %v344 = vld [vmem:[%s246 + $0x109] sm:$0xff]
      %v345 = vld [vmem:[%s246 + $0x111] sm:$0xff]
      %v346 = vld [vmem:[%s246 + $0x119] sm:$0xff]
      %v347 = vpack.c.bf16 %v312, %v311
      %v348 = vpack.c.bf16 %v314, %v313
      %v349 = vpack.c.bf16 %v316, %v315
      %v350 = vpack.c.bf16 %v318, %v317
      %v351 = vpack.c.bf16 %v320, %v319
      %v352 = vpack.c.bf16 %v322, %v321
      %v353 = vpack.c.bf16 %v324, %v323
      %v354 = vpack.c.bf16 %v326, %v325
      %v355 = vpack.c.bf16 %v328, %v327
      %v356 = vpack.c.bf16 %v330, %v329
      %v357 = vpack.c.bf16 %v332, %v331
      %v358 = vpack.c.bf16 %v334, %v333
      %v359 = vpack.c.bf16 %v336, %v335
      %v360 = vpack.c.bf16 %v338, %v337
      %v361 = vpack.c.bf16 %v340, %v339
      %v362 = vpack.c.bf16 %v342, %v341
      %v363 = vpack.c.bf16 %v344, %v343
      %v364 = vpack.c.bf16 %v346, %v345
      %s365 = scalar_lea.vmem %s1, 16
      %v366 = vld [vmem:[%s365] sm:$0xf]
      %v367 = vld [vmem:[%s365 + $0x4] sm:$0xf]
      %v368 = vld [vmem:[%s365 + $0x8] sm:$0xf]
      %v369 = vld [vmem:[%s365 + $0xc] sm:$0xf]
      %v374 = vunpack.c.l.b16 %v366
      %v375 = vunpack.c.l.b16 %v367
      %v376 = vunpack.c.l.b16 %v368
      %v377 = vunpack.c.l.b16 %v369
      %v378 = vpack.c.b16 %v375, %v374
      %v379 = vpack.c.b16 %v377, %v376
      %vm382 = vcmask 261120
      %v384 = vsel %vm382, %v347, 0
      %v387 = vsel %vm382, %v348, 0
      %v390 = vsel %vm382, %v349, 0
      %v393 = vsel %vm382, %v350, 0
      %v396 = vsel %vm382, %v351, 0
      %v399 = vsel %vm382, %v352, 0
      %v402 = vsel %vm382, %v353, 0
      %v405 = vsel %vm382, %v354, 0
      %v408 = vsel %vm382, %v355, 0
      %v411 = vsel %vm382, %v356, 0
      %v414 = vsel %vm382, %v357, 0
      %v417 = vsel %vm382, %v358, 0
      %v420 = vsel %vm382, %v359, 0
      %v423 = vsel %vm382, %v360, 0
      %v426 = vsel %vm382, %v361, 0
      %v429 = vsel %vm382, %v362, 0
      %v432 = vsel %vm382, %v363, 0
      %v435 = vsel %vm382, %v364, 0
      %437 = vmatprep.subr.bf16.mxu0 0
      %438 = vmatpush1.bf16.msra.mxu0 %v378
      %439 = vmatprep.subr.bf16.mxu0 0
      %440 = vmatpush1.bf16.msra.mxu0 %v379
      %441 = vmatprep.subr.bf16.mxu0 0
      %442 = vmatpush1.bf16.msra.mxu0 0
      %443 = vmatprep.subr.bf16.mxu0 0
      %444 = vmatpush1.bf16.msra.mxu0 0
      %445 = vmatprep.subr.bf16.mxu0 0
      %446 = vmatpush1.bf16.msra.mxu0 0
      %447 = vmatprep.subr.bf16.mxu0 0
      %448 = vmatpush1.bf16.msra.mxu0 0
      %449 = vmatprep.subr.bf16.mxu0 0
      %450 = vmatpush1.bf16.msra.mxu0 0
      %451 = vmatprep.subr.bf16.mxu0 0
      %452 = vmatpush1.bf16.msra.mxu0 0
      %453 = vmatprep.subr.bf16.mxu0 0
      %454 = vmatpush1.bf16.msra.mxu0 0
      %455 = vmatprep.subr.bf16.mxu0 0
      %456 = vmatpush1.bf16.msra.mxu0 0
      %457 = vmatprep.subr.bf16.mxu0 0
      %458 = vmatpush1.bf16.msra.mxu0 0
      %459 = vmatprep.subr.bf16.mxu0 0
      %460 = vmatpush1.bf16.msra.mxu0 0
      %461 = vmatprep.subr.bf16.mxu0 0
      %462 = vmatpush1.bf16.msra.mxu0 0
      %463 = vmatprep.subr.bf16.mxu0 0
      %464 = vmatpush1.bf16.msra.mxu0 0
      %465 = vmatprep.subr.bf16.mxu0 0
      %466 = vmatpush1.bf16.msra.mxu0 0
      %467 = vmatprep.subr.bf16.mxu0 0
      %468 = vmatpush1.bf16.msra.mxu0 0
      %469 = vmatprep.mubr.bf16.mxu0 0
      %470 = vmatmul.mubr.bf16.gmra.mrb[0].mxu0 %v384
      %v471 = vpop.f32.mrb[0].mxu0
      %v472 = vadd.f32 0.0, %v471
      %v473 = vpop.f32.mrb[0].mxu0
      %v474 = vpop.f32.mrb[0].mxu0
      %v475 = vadd.f32 0.0, %v474
      %v476 = vpop.f32.mrb[0].mxu0
      %477 = vmatprep.mubr.bf16.mxu0 0
      %478 = vmatmul.mubr.bf16.gmra.mrb[0].mxu0 %v387
      %v479 = vpop.f32.mrb[0].mxu0
      %v480 = vadd.f32 0.0, %v479
      %v481 = vpop.f32.mrb[0].mxu0
      %v482 = vpop.f32.mrb[0].mxu0
      %v483 = vadd.f32 0.0, %v482
      %v484 = vpop.f32.mrb[0].mxu0
      %485 = vmatprep.mubr.bf16.mxu0 0
      %486 = vmatmul.mubr.bf16.gmra.mrb[0].mxu0 %v390
      %v487 = vpop.f32.mrb[0].mxu0
      %v488 = vadd.f32 0.0, %v487
      %v489 = vpop.f32.mrb[0].mxu0
      %v490 = vpop.f32.mrb[0].mxu0
      %v491 = vadd.f32 0.0, %v490
      %v492 = vpop.f32.mrb[0].mxu0
      %493 = vmatprep.mubr.bf16.mxu0 0
      %494 = vmatmul.mubr.bf16.gmra.mrb[0].mxu0 %v393
      %v495 = vpop.f32.mrb[0].mxu0
      %v496 = vadd.f32 0.0, %v495
      %v497 = vpop.f32.mrb[0].mxu0
      %v498 = vpop.f32.mrb[0].mxu0
      %v499 = vadd.f32 0.0, %v498
      %v500 = vpop.f32.mrb[0].mxu0
      %501 = vmatprep.mubr.bf16.mxu0 0
      %502 = vmatmul.mubr.bf16.gmra.mrb[0].mxu0 %v396
      %v503 = vpop.f32.mrb[0].mxu0
      %v504 = vadd.f32 0.0, %v503
      %v505 = vpop.f32.mrb[0].mxu0
      %v506 = vpop.f32.mrb[0].mxu0
      %v507 = vadd.f32 0.0, %v506
      %v508 = vpop.f32.mrb[0].mxu0
      %509 = vmatprep.mubr.bf16.mxu0 0
      %510 = vmatmul.mubr.bf16.gmra.mrb[0].mxu0 %v399
      %v511 = vpop.f32.mrb[0].mxu0
      %v512 = vadd.f32 0.0, %v511
      %v513 = vpop.f32.mrb[0].mxu0
      %v514 = vpop.f32.mrb[0].mxu0
      %v515 = vadd.f32 0.0, %v514
      %v516 = vpop.f32.mrb[0].mxu0
      %517 = vmatprep.mubr.bf16.mxu0 0
      %518 = vmatmul.mubr.bf16.gmra.mrb[0].mxu0 %v402
      %v519 = vpop.f32.mrb[0].mxu0
      %v520 = vadd.f32 0.0, %v519
      %v521 = vpop.f32.mrb[0].mxu0
      %v522 = vpop.f32.mrb[0].mxu0
      %v523 = vadd.f32 0.0, %v522
      %v524 = vpop.f32.mrb[0].mxu0
      %525 = vmatprep.mubr.bf16.mxu0 0
      %526 = vmatmul.mubr.bf16.gmra.mrb[0].mxu0 %v405
      %v527 = vpop.f32.mrb[0].mxu0
      %v528 = vadd.f32 0.0, %v527
      %v529 = vpop.f32.mrb[0].mxu0
      %v530 = vpop.f32.mrb[0].mxu0
      %v531 = vadd.f32 0.0, %v530
      %v532 = vpop.f32.mrb[0].mxu0
      %533 = vmatprep.mubr.bf16.mxu0 0
      %534 = vmatmul.mubr.bf16.gmra.mrb[0].mxu0 %v408
      %v535 = vpop.f32.mrb[0].mxu0
      %v536 = vadd.f32 0.0, %v535
      %v537 = vpop.f32.mrb[0].mxu0
      %v538 = vpop.f32.mrb[0].mxu0
      %v539 = vadd.f32 0.0, %v538
      %v540 = vpop.f32.mrb[0].mxu0
      %541 = vmatprep.mubr.bf16.mxu0 0
      %542 = vmatmul.mubr.bf16.gmra.mrb[0].mxu0 %v411
      %v543 = vpop.f32.mrb[0].mxu0
      %v544 = vadd.f32 0.0, %v543
      %v545 = vpop.f32.mrb[0].mxu0
      %v546 = vpop.f32.mrb[0].mxu0
      %v547 = vadd.f32 0.0, %v546
      %v548 = vpop.f32.mrb[0].mxu0
      %549 = vmatprep.mubr.bf16.mxu0 0
      %550 = vmatmul.mubr.bf16.gmra.mrb[0].mxu0 %v414
      %v551 = vpop.f32.mrb[0].mxu0
      %v552 = vadd.f32 0.0, %v551
      %v553 = vpop.f32.mrb[0].mxu0
      %v554 = vpop.f32.mrb[0].mxu0
      %v555 = vadd.f32 0.0, %v554
      %v556 = vpop.f32.mrb[0].mxu0
      %557 = vmatprep.mubr.bf16.mxu0 0
      %558 = vmatmul.mubr.bf16.gmra.mrb[0].mxu0 %v417
      %v559 = vpop.f32.mrb[0].mxu0
      %v560 = vadd.f32 0.0, %v559
      %v561 = vpop.f32.mrb[0].mxu0
      %v562 = vpop.f32.mrb[0].mxu0
      %v563 = vadd.f32 0.0, %v562
      %v564 = vpop.f32.mrb[0].mxu0
      %565 = vmatprep.mubr.bf16.mxu0 0
      %566 = vmatmul.mubr.bf16.gmra.mrb[0].mxu0 %v420
      %v567 = vpop.f32.mrb[0].mxu0
      %v568 = vadd.f32 0.0, %v567
      %v569 = vpop.f32.mrb[0].mxu0
      %v570 = vpop.f32.mrb[0].mxu0
      %v571 = vadd.f32 0.0, %v570
      %v572 = vpop.f32.mrb[0].mxu0
      %573 = vmatprep.mubr.bf16.mxu0 0
      %574 = vmatmul.mubr.bf16.gmra.mrb[0].mxu0 %v423
      %v575 = vpop.f32.mrb[0].mxu0
      %v576 = vadd.f32 0.0, %v575
      %v577 = vpop.f32.mrb[0].mxu0
      %v578 = vpop.f32.mrb[0].mxu0
      %v579 = vadd.f32 0.0, %v578
      %v580 = vpop.f32.mrb[0].mxu0
      %581 = vmatprep.mubr.bf16.mxu0 0
      %582 = vmatmul.mubr.bf16.gmra.mrb[0].mxu0 %v426
      %v583 = vpop.f32.mrb[0].mxu0
      %v584 = vadd.f32 0.0, %v583
      %v585 = vpop.f32.mrb[0].mxu0
      %v586 = vpop.f32.mrb[0].mxu0
      %v587 = vadd.f32 0.0, %v586
      %v588 = vpop.f32.mrb[0].mxu0
      %589 = vmatprep.mubr.bf16.mxu0 0
      %590 = vmatmul.mubr.bf16.gmra.mrb[0].mxu0 %v429
      %v591 = vpop.f32.mrb[0].mxu0
      %v592 = vadd.f32 0.0, %v591
      %v593 = vpop.f32.mrb[0].mxu0
      %v594 = vpop.f32.mrb[0].mxu0
      %v595 = vadd.f32 0.0, %v594
      %v596 = vpop.f32.mrb[0].mxu0
      %597 = vmatprep.mubr.bf16.mxu0 0
      %598 = vmatmul.mubr.bf16.gmra.mrb[0].mxu0 %v432
      %v599 = vpop.f32.mrb[0].mxu0
      %v600 = vadd.f32 0.0, %v599
      %v601 = vpop.f32.mrb[0].mxu0
      %v602 = vpop.f32.mrb[0].mxu0
      %v603 = vadd.f32 0.0, %v602
      %v604 = vpop.f32.mrb[0].mxu0
      %605 = vmatprep.mubr.bf16.mxu0 0
      %606 = vmatmul.mubr.bf16.gmra.mrb[0].mxu0 %v435
      %v607 = vpop.f32.mrb[0].mxu0
      %v608 = vadd.f32 0.0, %v607
      %v609 = vpop.f32.mrb[0].mxu0
      %v610 = vpop.f32.mrb[0].mxu0
      %v611 = vadd.f32 0.0, %v610
      %v612 = vpop.f32.mrb[0].mxu0
      %613 = vdwg.mxu0
      %v618 = vunpack.c.l.b16 %v307
      %v619 = vunpack.c.l.b16 %v308
      %v620 = vunpack.c.l.b16 %v309
      %v621 = vunpack.c.l.b16 %v310
      %v622 = vpack.c.b16 %v619, %v618
      %v623 = vpack.c.b16 %v621, %v620
      %v627 = vsel %vm382, %v289, 0
      %v630 = vsel %vm382, %v290, 0
      %v633 = vsel %vm382, %v291, 0
      %v636 = vsel %vm382, %v292, 0
      %v639 = vsel %vm382, %v293, 0
      %v642 = vsel %vm382, %v294, 0
      %v645 = vsel %vm382, %v295, 0
      %v648 = vsel %vm382, %v296, 0
      %v651 = vsel %vm382, %v297, 0
      %v654 = vsel %vm382, %v298, 0
      %v657 = vsel %vm382, %v299, 0
      %v660 = vsel %vm382, %v300, 0
      %v663 = vsel %vm382, %v301, 0
      %v666 = vsel %vm382, %v302, 0
      %v669 = vsel %vm382, %v303, 0
      %v672 = vsel %vm382, %v304, 0
      %v675 = vsel %vm382, %v305, 0
      %v678 = vsel %vm382, %v306, 0
      %680 = vmatprep.subr.bf16.mxu0 0
      %681 = vmatpush1.bf16.msra.mxu0 %v622
      %682 = vmatprep.subr.bf16.mxu0 0
      %683 = vmatpush1.bf16.msra.mxu0 %v623
      %684 = vmatprep.subr.bf16.mxu0 0
      %685 = vmatpush1.bf16.msra.mxu0 0
      %686 = vmatprep.subr.bf16.mxu0 0
      %687 = vmatpush1.bf16.msra.mxu0 0
      %688 = vmatprep.subr.bf16.mxu0 0
      %689 = vmatpush1.bf16.msra.mxu0 0
      %690 = vmatprep.subr.bf16.mxu0 0
      %691 = vmatpush1.bf16.msra.mxu0 0
      %692 = vmatprep.subr.bf16.mxu0 0
      %693 = vmatpush1.bf16.msra.mxu0 0
      %694 = vmatprep.subr.bf16.mxu0 0
      %695 = vmatpush1.bf16.msra.mxu0 0
      %696 = vmatprep.subr.bf16.mxu0 0
      %697 = vmatpush1.bf16.msra.mxu0 0
      %698 = vmatprep.subr.bf16.mxu0 0
      %699 = vmatpush1.bf16.msra.mxu0 0
      %700 = vmatprep.subr.bf16.mxu0 0
      %701 = vmatpush1.bf16.msra.mxu0 0
      %702 = vmatprep.subr.bf16.mxu0 0
      %703 = vmatpush1.bf16.msra.mxu0 0
      %704 = vmatprep.subr.bf16.mxu0 0
      %705 = vmatpush1.bf16.msra.mxu0 0
      %706 = vmatprep.subr.bf16.mxu0 0
      %707 = vmatpush1.bf16.msra.mxu0 0
      %708 = vmatprep.subr.bf16.mxu0 0
      %709 = vmatpush1.bf16.msra.mxu0 0
      %710 = vmatprep.subr.bf16.mxu0 0
      %711 = vmatpush1.bf16.msra.mxu0 0
      %712 = vmatprep.mubr.bf16.mxu0 0
      %713 = vmatmul.mubr.bf16.gmra.mrb[0].mxu0 %v627
      %v714 = vpop.f32.mrb[0].mxu0
      %v715 = vadd.f32 %v472, %v714
      %v716 = vpop.f32.mrb[0].mxu0
      %v717 = vpop.f32.mrb[0].mxu0
      %v718 = vadd.f32 %v475, %v717
      %v719 = vpop.f32.mrb[0].mxu0
      %720 = vmatprep.mubr.bf16.mxu0 0
      %721 = vmatmul.mubr.bf16.gmra.mrb[0].mxu0 %v630
      %v722 = vpop.f32.mrb[0].mxu0
      %v723 = vadd.f32 %v480, %v722
      %v724 = vpop.f32.mrb[0].mxu0
      %v725 = vpop.f32.mrb[0].mxu0
      %v726 = vadd.f32 %v483, %v725
      %v727 = vpop.f32.mrb[0].mxu0
      %728 = vmatprep.mubr.bf16.mxu0 0
      %729 = vmatmul.mubr.bf16.gmra.mrb[0].mxu0 %v633
      %v730 = vpop.f32.mrb[0].mxu0
      %v731 = vadd.f32 %v488, %v730
      %v732 = vpop.f32.mrb[0].mxu0
      %v733 = vpop.f32.mrb[0].mxu0
      %v734 = vadd.f32 %v491, %v733
      %v735 = vpop.f32.mrb[0].mxu0
      %736 = vmatprep.mubr.bf16.mxu0 0
      %737 = vmatmul.mubr.bf16.gmra.mrb[0].mxu0 %v636
      %v738 = vpop.f32.mrb[0].mxu0
      %v739 = vadd.f32 %v496, %v738
      %v740 = vpop.f32.mrb[0].mxu0
      %v741 = vpop.f32.mrb[0].mxu0
      %v742 = vadd.f32 %v499, %v741
      %v743 = vpop.f32.mrb[0].mxu0
      %744 = vmatprep.mubr.bf16.mxu0 0
      %745 = vmatmul.mubr.bf16.gmra.mrb[0].mxu0 %v639
      %v746 = vpop.f32.mrb[0].mxu0
      %v747 = vadd.f32 %v504, %v746
      %v748 = vpop.f32.mrb[0].mxu0
      %v749 = vpop.f32.mrb[0].mxu0
      %v750 = vadd.f32 %v507, %v749
      %v751 = vpop.f32.mrb[0].mxu0
      %752 = vmatprep.mubr.bf16.mxu0 0
      %753 = vmatmul.mubr.bf16.gmra.mrb[0].mxu0 %v642
      %v754 = vpop.f32.mrb[0].mxu0
      %v755 = vadd.f32 %v512, %v754
      %v756 = vpop.f32.mrb[0].mxu0
      %v757 = vpop.f32.mrb[0].mxu0
      %v758 = vadd.f32 %v515, %v757
      %v759 = vpop.f32.mrb[0].mxu0
      %760 = vmatprep.mubr.bf16.mxu0 0
      %761 = vmatmul.mubr.bf16.gmra.mrb[0].mxu0 %v645
      %v762 = vpop.f32.mrb[0].mxu0
      %v763 = vadd.f32 %v520, %v762
      %v764 = vpop.f32.mrb[0].mxu0
      %v765 = vpop.f32.mrb[0].mxu0
      %v766 = vadd.f32 %v523, %v765
      %v767 = vpop.f32.mrb[0].mxu0
      %768 = vmatprep.mubr.bf16.mxu0 0
      %769 = vmatmul.mubr.bf16.gmra.mrb[0].mxu0 %v648
      %v770 = vpop.f32.mrb[0].mxu0
      %v771 = vadd.f32 %v528, %v770
      %v772 = vpop.f32.mrb[0].mxu0
      %v773 = vpop.f32.mrb[0].mxu0
      %v774 = vadd.f32 %v531, %v773
      %v775 = vpop.f32.mrb[0].mxu0
      %776 = vmatprep.mubr.bf16.mxu0 0
      %777 = vmatmul.mubr.bf16.gmra.mrb[0].mxu0 %v651
      %v778 = vpop.f32.mrb[0].mxu0
      %v779 = vadd.f32 %v536, %v778
      %v780 = vpop.f32.mrb[0].mxu0
      %v781 = vpop.f32.mrb[0].mxu0
      %v782 = vadd.f32 %v539, %v781
      %v783 = vpop.f32.mrb[0].mxu0
      %784 = vmatprep.mubr.bf16.mxu0 0
      %785 = vmatmul.mubr.bf16.gmra.mrb[0].mxu0 %v654
      %v786 = vpop.f32.mrb[0].mxu0
      %v787 = vadd.f32 %v544, %v786
      %v788 = vpop.f32.mrb[0].mxu0
      %v789 = vpop.f32.mrb[0].mxu0
      %v790 = vadd.f32 %v547, %v789
      %v791 = vpop.f32.mrb[0].mxu0
      %792 = vmatprep.mubr.bf16.mxu0 0
      %793 = vmatmul.mubr.bf16.gmra.mrb[0].mxu0 %v657
      %v794 = vpop.f32.mrb[0].mxu0
      %v795 = vadd.f32 %v552, %v794
      %v796 = vpop.f32.mrb[0].mxu0
      %v797 = vpop.f32.mrb[0].mxu0
      %v798 = vadd.f32 %v555, %v797
      %v799 = vpop.f32.mrb[0].mxu0
      %800 = vmatprep.mubr.bf16.mxu0 0
      %801 = vmatmul.mubr.bf16.gmra.mrb[0].mxu0 %v660
      %v802 = vpop.f32.mrb[0].mxu0
      %v803 = vadd.f32 %v560, %v802
      %v804 = vpop.f32.mrb[0].mxu0
      %v805 = vpop.f32.mrb[0].mxu0
      %v806 = vadd.f32 %v563, %v805
      %v807 = vpop.f32.mrb[0].mxu0
      %808 = vmatprep.mubr.bf16.mxu0 0
      %809 = vmatmul.mubr.bf16.gmra.mrb[0].mxu0 %v663
      %v810 = vpop.f32.mrb[0].mxu0
      %v811 = vadd.f32 %v568, %v810
      %v812 = vpop.f32.mrb[0].mxu0
      %v813 = vpop.f32.mrb[0].mxu0
      %v814 = vadd.f32 %v571, %v813
      %v815 = vpop.f32.mrb[0].mxu0
      %816 = vmatprep.mubr.bf16.mxu0 0
      %817 = vmatmul.mubr.bf16.gmra.mrb[0].mxu0 %v666
      %v818 = vpop.f32.mrb[0].mxu0
      %v819 = vadd.f32 %v576, %v818
      %v820 = vpop.f32.mrb[0].mxu0
      %v821 = vpop.f32.mrb[0].mxu0
      %v822 = vadd.f32 %v579, %v821
      %v823 = vpop.f32.mrb[0].mxu0
      %824 = vmatprep.mubr.bf16.mxu0 0
      %825 = vmatmul.mubr.bf16.gmra.mrb[0].mxu0 %v669
      %v826 = vpop.f32.mrb[0].mxu0
      %v827 = vadd.f32 %v584, %v826
      %v828 = vpop.f32.mrb[0].mxu0
      %v829 = vpop.f32.mrb[0].mxu0
      %v830 = vadd.f32 %v587, %v829
      %v831 = vpop.f32.mrb[0].mxu0
      %832 = vmatprep.mubr.bf16.mxu0 0
      %833 = vmatmul.mubr.bf16.gmra.mrb[0].mxu0 %v672
      %v834 = vpop.f32.mrb[0].mxu0
      %v835 = vadd.f32 %v592, %v834
      %v836 = vpop.f32.mrb[0].mxu0
      %v837 = vpop.f32.mrb[0].mxu0
      %v838 = vadd.f32 %v595, %v837
      %v839 = vpop.f32.mrb[0].mxu0
      %840 = vmatprep.mubr.bf16.mxu0 0
      %841 = vmatmul.mubr.bf16.gmra.mrb[0].mxu0 %v675
      %v842 = vpop.f32.mrb[0].mxu0
      %v843 = vadd.f32 %v600, %v842
      %v844 = vpop.f32.mrb[0].mxu0
      %v845 = vpop.f32.mrb[0].mxu0
      %v846 = vadd.f32 %v603, %v845
      %v847 = vpop.f32.mrb[0].mxu0
      %848 = vmatprep.mubr.bf16.mxu0 0
      %849 = vmatmul.mubr.bf16.gmra.mrb[0].mxu0 %v678
      %v850 = vpop.f32.mrb[0].mxu0
      %v851 = vadd.f32 %v608, %v850
      %v852 = vpop.f32.mrb[0].mxu0
      %v853 = vpop.f32.mrb[0].mxu0
      %v854 = vadd.f32 %v611, %v853
      %v855 = vpop.f32.mrb[0].mxu0
      %856 = vdwg.mxu0
      %v857 = vld [vmem:[%s246 + $0x2] sm:$0xff]
      %v858 = vld [vmem:[%s246 + $0xa] sm:$0xff]
      %v859 = vld [vmem:[%s246 + $0x12] sm:$0xff]
      %v860 = vld [vmem:[%s246 + $0x1a] sm:$0xff]
      %v861 = vld [vmem:[%s246 + $0x22] sm:$0xff]
      %v862 = vld [vmem:[%s246 + $0x2a] sm:$0xff]
      %v863 = vld [vmem:[%s246 + $0x32] sm:$0xff]
      %v864 = vld [vmem:[%s246 + $0x3a] sm:$0xff]
      %v865 = vld [vmem:[%s246 + $0x42] sm:$0xff]
      %v866 = vld [vmem:[%s246 + $0x4a] sm:$0xff]
      %v867 = vld [vmem:[%s246 + $0x52] sm:$0xff]
      %v868 = vld [vmem:[%s246 + $0x5a] sm:$0xff]
      %v869 = vld [vmem:[%s246 + $0x62] sm:$0xff]
      %v870 = vld [vmem:[%s246 + $0x6a] sm:$0xff]
      %v871 = vld [vmem:[%s246 + $0x72] sm:$0xff]
      %v872 = vld [vmem:[%s246 + $0x7a] sm:$0xff]
      %v873 = vld [vmem:[%s246 + $0x82] sm:$0xff]
      %v874 = vld [vmem:[%s246 + $0x8a] sm:$0xff]
      %v875 = vld [vmem:[%s246 + $0x92] sm:$0xff]
      %v876 = vld [vmem:[%s246 + $0x9a] sm:$0xff]
      %v877 = vld [vmem:[%s246 + $0xa2] sm:$0xff]
      %v878 = vld [vmem:[%s246 + $0xaa] sm:$0xff]
      %v879 = vld [vmem:[%s246 + $0xb2] sm:$0xff]
      %v880 = vld [vmem:[%s246 + $0xba] sm:$0xff]
      %v881 = vld [vmem:[%s246 + $0xc2] sm:$0xff]
      %v882 = vld [vmem:[%s246 + $0xca] sm:$0xff]
      %v883 = vld [vmem:[%s246 + $0xd2] sm:$0xff]
      %v884 = vld [vmem:[%s246 + $0xda] sm:$0xff]
      %v885 = vld [vmem:[%s246 + $0xe2] sm:$0xff]
      %v886 = vld [vmem:[%s246 + $0xea] sm:$0xff]
      %v887 = vld [vmem:[%s246 + $0xf2] sm:$0xff]
      %v888 = vld [vmem:[%s246 + $0xfa] sm:$0xff]
      %v889 = vld [vmem:[%s246 + $0x102] sm:$0xff]
      %v890 = vld [vmem:[%s246 + $0x10a] sm:$0xff]
      %v891 = vld [vmem:[%s246 + $0x112] sm:$0xff]
      %v892 = vld [vmem:[%s246 + $0x11a] sm:$0xff]
      %v893 = vpack.c.bf16 %v858, %v857
      %v894 = vpack.c.bf16 %v860, %v859
      %v895 = vpack.c.bf16 %v862, %v861
      %v896 = vpack.c.bf16 %v864, %v863
      %v897 = vpack.c.bf16 %v866, %v865
      %v898 = vpack.c.bf16 %v868, %v867
      %v899 = vpack.c.bf16 %v870, %v869
      %v900 = vpack.c.bf16 %v872, %v871
      %v901 = vpack.c.bf16 %v874, %v873
      %v902 = vpack.c.bf16 %v876, %v875
      %v903 = vpack.c.bf16 %v878, %v877
      %v904 = vpack.c.bf16 %v880, %v879
      %v905 = vpack.c.bf16 %v882, %v881
      %v906 = vpack.c.bf16 %v884, %v883
      %v907 = vpack.c.bf16 %v886, %v885
      %v908 = vpack.c.bf16 %v888, %v887
      %v909 = vpack.c.bf16 %v890, %v889
      %v910 = vpack.c.bf16 %v892, %v891
      %s911 = scalar_lea.vmem %s1, 32
      %v912 = vld [vmem:[%s911] sm:$0xf]
      %v913 = vld [vmem:[%s911 + $0x4] sm:$0xf]
      %v914 = vld [vmem:[%s911 + $0x8] sm:$0xf]
      %v915 = vld [vmem:[%s911 + $0xc] sm:$0xf]
      %v920 = vunpack.c.l.b16 %v912
      %v921 = vunpack.c.l.b16 %v913
      %v922 = vunpack.c.l.b16 %v914
      %v923 = vunpack.c.l.b16 %v915
      %v924 = vpack.c.b16 %v921, %v920
      %v925 = vpack.c.b16 %v923, %v922
      %v929 = vsel %vm382, %v893, 0
      %v932 = vsel %vm382, %v894, 0
      %v935 = vsel %vm382, %v895, 0
      %v938 = vsel %vm382, %v896, 0
      %v941 = vsel %vm382, %v897, 0
      %v944 = vsel %vm382, %v898, 0
      %v947 = vsel %vm382, %v899, 0
      %v950 = vsel %vm382, %v900, 0
      %v953 = vsel %vm382, %v901, 0
      %v956 = vsel %vm382, %v902, 0
      %v959 = vsel %vm382, %v903, 0
      %v962 = vsel %vm382, %v904, 0
      %v965 = vsel %vm382, %v905, 0
      %v968 = vsel %vm382, %v906, 0
      %v971 = vsel %vm382, %v907, 0
      %v974 = vsel %vm382, %v908, 0
      %v977 = vsel %vm382, %v909, 0
      %v980 = vsel %vm382, %v910, 0
      %982 = vmatprep.subr.bf16.mxu0 0
      %983 = vmatpush1.bf16.msra.mxu0 %v924
      %984 = vmatprep.subr.bf16.mxu0 0
      %985 = vmatpush1.bf16.msra.mxu0 %v925
      %986 = vmatprep.subr.bf16.mxu0 0
      %987 = vmatpush1.bf16.msra.mxu0 0
      %988 = vmatprep.subr.bf16.mxu0 0
      %989 = vmatpush1.bf16.msra.mxu0 0
      %990 = vmatprep.subr.bf16.mxu0 0
      %991 = vmatpush1.bf16.msra.mxu0 0
      %992 = vmatprep.subr.bf16.mxu0 0
      %993 = vmatpush1.bf16.msra.mxu0 0
      %994 = vmatprep.subr.bf16.mxu0 0
      %995 = vmatpush1.bf16.msra.mxu0 0
      %996 = vmatprep.subr.bf16.mxu0 0
      %997 = vmatpush1.bf16.msra.mxu0 0
      %998 = vmatprep.subr.bf16.mxu0 0
      %999 = vmatpush1.bf16.msra.mxu0 0
      %1000 = vmatprep.subr.bf16.mxu0 0
      %1001 = vmatpush1.bf16.msra.mxu0 0
      %1002 = vmatprep.subr.bf16.mxu0 0
      %1003 = vmatpush1.bf16.msra.mxu0 0
      %1004 = vmatprep.subr.bf16.mxu0 0
      %1005 = vmatpush1.bf16.msra.mxu0 0
      %1006 = vmatprep.subr.bf16.mxu0 0
      %1007 = vmatpush1.bf16.msra.mxu0 0
      %1008 = vmatprep.subr.bf16.mxu0 0
      %1009 = vmatpush1.bf16.msra.mxu0 0
      %1010 = vmatprep.subr.bf16.mxu0 0
      %1011 = vmatpush1.bf16.msra.mxu0 0
      %1012 = vmatprep.subr.bf16.mxu0 0
      %1013 = vmatpush1.bf16.msra.mxu0 0
      %1014 = vmatprep.mubr.bf16.mxu0 0
      %1015 = vmatmul.mubr.bf16.gmra.mrb[0].mxu0 %v929
      %v1016 = vpop.f32.mrb[0].mxu0
      %v1017 = vadd.f32 0.0, %v1016
      %v1018 = vpop.f32.mrb[0].mxu0
      %v1019 = vpop.f32.mrb[0].mxu0
      %v1020 = vadd.f32 0.0, %v1019
      %v1021 = vpop.f32.mrb[0].mxu0
      %1022 = vmatprep.mubr.bf16.mxu0 0
      %1023 = vmatmul.mubr.bf16.gmra.mrb[0].mxu0 %v932
      %v1024 = vpop.f32.mrb[0].mxu0
      %v1025 = vadd.f32 0.0, %v1024
      %v1026 = vpop.f32.mrb[0].mxu0
      %v1027 = vpop.f32.mrb[0].mxu0
      %v1028 = vadd.f32 0.0, %v1027
      %v1029 = vpop.f32.mrb[0].mxu0
      %1030 = vmatprep.mubr.bf16.mxu0 0
      %1031 = vmatmul.mubr.bf16.gmra.mrb[0].mxu0 %v935
      %v1032 = vpop.f32.mrb[0].mxu0
      %v1033 = vadd.f32 0.0, %v1032
      %v1034 = vpop.f32.mrb[0].mxu0
      %v1035 = vpop.f32.mrb[0].mxu0
      %v1036 = vadd.f32 0.0, %v1035
      %v1037 = vpop.f32.mrb[0].mxu0
      %1038 = vmatprep.mubr.bf16.mxu0 0
      %1039 = vmatmul.mubr.bf16.gmra.mrb[0].mxu0 %v938
      %v1040 = vpop.f32.mrb[0].mxu0
      %v1041 = vadd.f32 0.0, %v1040
      %v1042 = vpop.f32.mrb[0].mxu0
      %v1043 = vpop.f32.mrb[0].mxu0
      %v1044 = vadd.f32 0.0, %v1043
      %v1045 = vpop.f32.mrb[0].mxu0
      %1046 = vmatprep.mubr.bf16.mxu0 0
      %1047 = vmatmul.mubr.bf16.gmra.mrb[0].mxu0 %v941
      %v1048 = vpop.f32.mrb[0].mxu0
      %v1049 = vadd.f32 0.0, %v1048
      %v1050 = vpop.f32.mrb[0].mxu0
      %v1051 = vpop.f32.mrb[0].mxu0
      %v1052 = vadd.f32 0.0, %v1051
      %v1053 = vpop.f32.mrb[0].mxu0
      %1054 = vmatprep.mubr.bf16.mxu0 0
      %1055 = vmatmul.mubr.bf16.gmra.mrb[0].mxu0 %v944
      %v1056 = vpop.f32.mrb[0].mxu0
      %v1057 = vadd.f32 0.0, %v1056
      %v1058 = vpop.f32.mrb[0].mxu0
      %v1059 = vpop.f32.mrb[0].mxu0
      %v1060 = vadd.f32 0.0, %v1059
      %v1061 = vpop.f32.mrb[0].mxu0
      %1062 = vmatprep.mubr.bf16.mxu0 0
      %1063 = vmatmul.mubr.bf16.gmra.mrb[0].mxu0 %v947
      %v1064 = vpop.f32.mrb[0].mxu0
      %v1065 = vadd.f32 0.0, %v1064
      %v1066 = vpop.f32.mrb[0].mxu0
      %v1067 = vpop.f32.mrb[0].mxu0
      %v1068 = vadd.f32 0.0, %v1067
      %v1069 = vpop.f32.mrb[0].mxu0
      %1070 = vmatprep.mubr.bf16.mxu0 0
      %1071 = vmatmul.mubr.bf16.gmra.mrb[0].mxu0 %v950
      %v1072 = vpop.f32.mrb[0].mxu0
      %v1073 = vadd.f32 0.0, %v1072
      %v1074 = vpop.f32.mrb[0].mxu0
      %v1075 = vpop.f32.mrb[0].mxu0
      %v1076 = vadd.f32 0.0, %v1075
      %v1077 = vpop.f32.mrb[0].mxu0
      %1078 = vmatprep.mubr.bf16.mxu0 0
      %1079 = vmatmul.mubr.bf16.gmra.mrb[0].mxu0 %v953
      %v1080 = vpop.f32.mrb[0].mxu0
      %v1081 = vadd.f32 0.0, %v1080
      %v1082 = vpop.f32.mrb[0].mxu0
      %v1083 = vpop.f32.mrb[0].mxu0
      %v1084 = vadd.f32 0.0, %v1083
      %v1085 = vpop.f32.mrb[0].mxu0
      %1086 = vmatprep.mubr.bf16.mxu0 0
      %1087 = vmatmul.mubr.bf16.gmra.mrb[0].mxu0 %v956
      %v1088 = vpop.f32.mrb[0].mxu0
      %v1089 = vadd.f32 0.0, %v1088
      %v1090 = vpop.f32.mrb[0].mxu0
      %v1091 = vpop.f32.mrb[0].mxu0
      %v1092 = vadd.f32 0.0, %v1091
      %v1093 = vpop.f32.mrb[0].mxu0
      %1094 = vmatprep.mubr.bf16.mxu0 0
      %1095 = vmatmul.mubr.bf16.gmra.mrb[0].mxu0 %v959
      %v1096 = vpop.f32.mrb[0].mxu0
      %v1097 = vadd.f32 0.0, %v1096
      %v1098 = vpop.f32.mrb[0].mxu0
      %v1099 = vpop.f32.mrb[0].mxu0
      %v1100 = vadd.f32 0.0, %v1099
      %v1101 = vpop.f32.mrb[0].mxu0
      %1102 = vmatprep.mubr.bf16.mxu0 0
      %1103 = vmatmul.mubr.bf16.gmra.mrb[0].mxu0 %v962
      %v1104 = vpop.f32.mrb[0].mxu0
      %v1105 = vadd.f32 0.0, %v1104
      %v1106 = vpop.f32.mrb[0].mxu0
      %v1107 = vpop.f32.mrb[0].mxu0
      %v1108 = vadd.f32 0.0, %v1107
      %v1109 = vpop.f32.mrb[0].mxu0
      %1110 = vmatprep.mubr.bf16.mxu0 0
      %1111 = vmatmul.mubr.bf16.gmra.mrb[0].mxu0 %v965
      %v1112 = vpop.f32.mrb[0].mxu0
      %v1113 = vadd.f32 0.0, %v1112
      %v1114 = vpop.f32.mrb[0].mxu0
      %v1115 = vpop.f32.mrb[0].mxu0
      %v1116 = vadd.f32 0.0, %v1115
      %v1117 = vpop.f32.mrb[0].mxu0
      %1118 = vmatprep.mubr.bf16.mxu0 0
      %1119 = vmatmul.mubr.bf16.gmra.mrb[0].mxu0 %v968
      %v1120 = vpop.f32.mrb[0].mxu0
      %v1121 = vadd.f32 0.0, %v1120
      %v1122 = vpop.f32.mrb[0].mxu0
      %v1123 = vpop.f32.mrb[0].mxu0
      %v1124 = vadd.f32 0.0, %v1123
      %v1125 = vpop.f32.mrb[0].mxu0
      %1126 = vmatprep.mubr.bf16.mxu0 0
      %1127 = vmatmul.mubr.bf16.gmra.mrb[0].mxu0 %v971
      %v1128 = vpop.f32.mrb[0].mxu0
      %v1129 = vadd.f32 0.0, %v1128
      %v1130 = vpop.f32.mrb[0].mxu0
      %v1131 = vpop.f32.mrb[0].mxu0
      %v1132 = vadd.f32 0.0, %v1131
      %v1133 = vpop.f32.mrb[0].mxu0
      %1134 = vmatprep.mubr.bf16.mxu0 0
      %1135 = vmatmul.mubr.bf16.gmra.mrb[0].mxu0 %v974
      %v1136 = vpop.f32.mrb[0].mxu0
      %v1137 = vadd.f32 0.0, %v1136
      %v1138 = vpop.f32.mrb[0].mxu0
      %v1139 = vpop.f32.mrb[0].mxu0
      %v1140 = vadd.f32 0.0, %v1139
      %v1141 = vpop.f32.mrb[0].mxu0
      %1142 = vmatprep.mubr.bf16.mxu0 0
      %1143 = vmatmul.mubr.bf16.gmra.mrb[0].mxu0 %v977
      %v1144 = vpop.f32.mrb[0].mxu0
      %v1145 = vadd.f32 0.0, %v1144
      %v1146 = vpop.f32.mrb[0].mxu0
      %v1147 = vpop.f32.mrb[0].mxu0
      %v1148 = vadd.f32 0.0, %v1147
      %v1149 = vpop.f32.mrb[0].mxu0
      %1150 = vmatprep.mubr.bf16.mxu0 0
      %1151 = vmatmul.mubr.bf16.gmra.mrb[0].mxu0 %v980
      %v1152 = vpop.f32.mrb[0].mxu0
      %v1153 = vadd.f32 0.0, %v1152
      %v1154 = vpop.f32.mrb[0].mxu0
      %v1155 = vpop.f32.mrb[0].mxu0
      %v1156 = vadd.f32 0.0, %v1155
      %v1157 = vpop.f32.mrb[0].mxu0
      %1158 = vdwg.mxu0
      %v1159 = vadd.f32 %v715, %v1017
      %v1160 = vadd.f32 %v718, %v1020
      %v1161 = vadd.f32 %v723, %v1025
      %v1162 = vadd.f32 %v726, %v1028
      %v1163 = vadd.f32 %v731, %v1033
      %v1164 = vadd.f32 %v734, %v1036
      %v1165 = vadd.f32 %v739, %v1041
      %v1166 = vadd.f32 %v742, %v1044
      %v1167 = vadd.f32 %v747, %v1049
      %v1168 = vadd.f32 %v750, %v1052
      %v1169 = vadd.f32 %v755, %v1057
      %v1170 = vadd.f32 %v758, %v1060
      %v1171 = vadd.f32 %v763, %v1065
      %v1172 = vadd.f32 %v766, %v1068
      %v1173 = vadd.f32 %v771, %v1073
      %v1174 = vadd.f32 %v774, %v1076
      %v1175 = vadd.f32 %v779, %v1081
      %v1176 = vadd.f32 %v782, %v1084
      %v1177 = vadd.f32 %v787, %v1089
      %v1178 = vadd.f32 %v790, %v1092
      %v1179 = vadd.f32 %v795, %v1097
      %v1180 = vadd.f32 %v798, %v1100
      %v1181 = vadd.f32 %v803, %v1105
      %v1182 = vadd.f32 %v806, %v1108
      %v1183 = vadd.f32 %v811, %v1113
      %v1184 = vadd.f32 %v814, %v1116
      %v1185 = vadd.f32 %v819, %v1121
      %v1186 = vadd.f32 %v822, %v1124
      %v1187 = vadd.f32 %v827, %v1129
      %v1188 = vadd.f32 %v830, %v1132
      %v1189 = vadd.f32 %v835, %v1137
      %v1190 = vadd.f32 %v838, %v1140
      %v1191 = vadd.f32 %v843, %v1145
      %v1192 = vadd.f32 %v846, %v1148
      %v1193 = vadd.f32 %v851, %v1153
      %v1194 = vadd.f32 %v854, %v1156
      %v1195 = vld [vmem:[%s246 + $0x12] sm:$0xff]
      %v1196 = vld [vmem:[%s246 + $0x1a] sm:$0xff]
      %v1197 = vld [vmem:[%s246 + $0x22] sm:$0xff]
      %v1198 = vld [vmem:[%s246 + $0x2a] sm:$0xff]
      %v1199 = vld [vmem:[%s246 + $0x32] sm:$0xff]
      %v1200 = vld [vmem:[%s246 + $0x3a] sm:$0xff]
      %v1201 = vld [vmem:[%s246 + $0x42] sm:$0xff]
      %v1202 = vld [vmem:[%s246 + $0x4a] sm:$0xff]
      %v1203 = vld [vmem:[%s246 + $0x52] sm:$0xff]
      %v1204 = vld [vmem:[%s246 + $0x5a] sm:$0xff]
      %v1205 = vld [vmem:[%s246 + $0x62] sm:$0xff]
      %v1206 = vld [vmem:[%s246 + $0x6a] sm:$0xff]
      %v1207 = vld [vmem:[%s246 + $0x72] sm:$0xff]
      %v1208 = vld [vmem:[%s246 + $0x7a] sm:$0xff]
      %v1209 = vld [vmem:[%s246 + $0x82] sm:$0xff]
      %v1210 = vld [vmem:[%s246 + $0x8a] sm:$0xff]
      %v1211 = vld [vmem:[%s246 + $0x92] sm:$0xff]
      %v1212 = vld [vmem:[%s246 + $0x9a] sm:$0xff]
      %v1213 = vld [vmem:[%s246 + $0xa2] sm:$0xff]
      %v1214 = vld [vmem:[%s246 + $0xaa] sm:$0xff]
      %v1215 = vld [vmem:[%s246 + $0xb2] sm:$0xff]
      %v1216 = vld [vmem:[%s246 + $0xba] sm:$0xff]
      %v1217 = vld [vmem:[%s246 + $0xc2] sm:$0xff]
      %v1218 = vld [vmem:[%s246 + $0xca] sm:$0xff]
      %v1219 = vld [vmem:[%s246 + $0xd2] sm:$0xff]
      %v1220 = vld [vmem:[%s246 + $0xda] sm:$0xff]
      %v1221 = vld [vmem:[%s246 + $0xe2] sm:$0xff]
      %v1222 = vld [vmem:[%s246 + $0xea] sm:$0xff]
      %v1223 = vld [vmem:[%s246 + $0xf2] sm:$0xff]
      %v1224 = vld [vmem:[%s246 + $0xfa] sm:$0xff]
      %v1225 = vld [vmem:[%s246 + $0x102] sm:$0xff]
      %v1226 = vld [vmem:[%s246 + $0x10a] sm:$0xff]
      %v1227 = vld [vmem:[%s246 + $0x112] sm:$0xff]
      %v1228 = vld [vmem:[%s246 + $0x11a] sm:$0xff]
      %v1229 = vld [vmem:[%s246 + $0x122] sm:$0xff]
      %v1230 = vld [vmem:[%s246 + $0x12a] sm:$0xff]
      %v1231 = vpack.c.bf16 %v1196, %v1195
      %v1232 = vpack.c.bf16 %v1198, %v1197
      %v1233 = vpack.c.bf16 %v1200, %v1199
      %v1234 = vpack.c.bf16 %v1202, %v1201
      %v1235 = vpack.c.bf16 %v1204, %v1203
      %v1236 = vpack.c.bf16 %v1206, %v1205
      %v1237 = vpack.c.bf16 %v1208, %v1207
      %v1238 = vpack.c.bf16 %v1210, %v1209
      %v1239 = vpack.c.bf16 %v1212, %v1211
      %v1240 = vpack.c.bf16 %v1214, %v1213
      %v1241 = vpack.c.bf16 %v1216, %v1215
      %v1242 = vpack.c.bf16 %v1218, %v1217
      %v1243 = vpack.c.bf16 %v1220, %v1219
      %v1244 = vpack.c.bf16 %v1222, %v1221
      %v1245 = vpack.c.bf16 %v1224, %v1223
      %v1246 = vpack.c.bf16 %v1226, %v1225
      %v1247 = vpack.c.bf16 %v1228, %v1227
      %v1248 = vpack.c.bf16 %v1230, %v1229
      %s1249 = scalar_lea.vmem %s1, 48
      %v1250 = vld [vmem:[%s1249] sm:$0xf]
      %v1251 = vld [vmem:[%s1249 + $0x4] sm:$0xf]
      %v1252 = vld [vmem:[%s1249 + $0x8] sm:$0xf]
      %v1253 = vld [vmem:[%s1249 + $0xc] sm:$0xf]
      %v1258 = vunpack.c.l.b16 %v1250
      %v1259 = vunpack.c.l.b16 %v1251
      %v1260 = vunpack.c.l.b16 %v1252
      %v1261 = vunpack.c.l.b16 %v1253
      %v1262 = vpack.c.b16 %v1259, %v1258
      %v1263 = vpack.c.b16 %v1261, %v1260
      %v1267 = vsel %vm382, %v1231, 0
      %v1270 = vsel %vm382, %v1232, 0
      %v1273 = vsel %vm382, %v1233, 0
      %v1276 = vsel %vm382, %v1234, 0
      %v1279 = vsel %vm382, %v1235, 0
      %v1282 = vsel %vm382, %v1236, 0
      %v1285 = vsel %vm382, %v1237, 0
      %v1288 = vsel %vm382, %v1238, 0
      %v1291 = vsel %vm382, %v1239, 0
      %v1294 = vsel %vm382, %v1240, 0
      %v1297 = vsel %vm382, %v1241, 0
      %v1300 = vsel %vm382, %v1242, 0
      %v1303 = vsel %vm382, %v1243, 0
      %v1306 = vsel %vm382, %v1244, 0
      %v1309 = vsel %vm382, %v1245, 0
      %v1312 = vsel %vm382, %v1246, 0
      %v1315 = vsel %vm382, %v1247, 0
      %v1318 = vsel %vm382, %v1248, 0
      %1320 = vmatprep.subr.bf16.mxu0 0
      %1321 = vmatpush1.bf16.msra.mxu0 %v1262
      %1322 = vmatprep.subr.bf16.mxu0 0
      %1323 = vmatpush1.bf16.msra.mxu0 %v1263
      %1324 = vmatprep.subr.bf16.mxu0 0
      %1325 = vmatpush1.bf16.msra.mxu0 0
      %1326 = vmatprep.subr.bf16.mxu0 0
      %1327 = vmatpush1.bf16.msra.mxu0 0
      %1328 = vmatprep.subr.bf16.mxu0 0
      %1329 = vmatpush1.bf16.msra.mxu0 0
      %1330 = vmatprep.subr.bf16.mxu0 0
      %1331 = vmatpush1.bf16.msra.mxu0 0
      %1332 = vmatprep.subr.bf16.mxu0 0
      %1333 = vmatpush1.bf16.msra.mxu0 0
      %1334 = vmatprep.subr.bf16.mxu0 0
      %1335 = vmatpush1.bf16.msra.mxu0 0
      %1336 = vmatprep.subr.bf16.mxu0 0
      %1337 = vmatpush1.bf16.msra.mxu0 0
      %1338 = vmatprep.subr.bf16.mxu0 0
      %1339 = vmatpush1.bf16.msra.mxu0 0
      %1340 = vmatprep.subr.bf16.mxu0 0
      %1341 = vmatpush1.bf16.msra.mxu0 0
      %1342 = vmatprep.subr.bf16.mxu0 0
      %1343 = vmatpush1.bf16.msra.mxu0 0
      %1344 = vmatprep.subr.bf16.mxu0 0
      %1345 = vmatpush1.bf16.msra.mxu0 0
      %1346 = vmatprep.subr.bf16.mxu0 0
      %1347 = vmatpush1.bf16.msra.mxu0 0
      %1348 = vmatprep.subr.bf16.mxu0 0
      %1349 = vmatpush1.bf16.msra.mxu0 0
      %1350 = vmatprep.subr.bf16.mxu0 0
      %1351 = vmatpush1.bf16.msra.mxu0 0
      %1352 = vmatprep.mubr.bf16.mxu0 0
      %1353 = vmatmul.mubr.bf16.gmra.mrb[0].mxu0 %v1267
      %v1354 = vpop.f32.mrb[0].mxu0
      %v1355 = vadd.f32 0.0, %v1354
      %v1356 = vpop.f32.mrb[0].mxu0
      %v1357 = vpop.f32.mrb[0].mxu0
      %v1358 = vadd.f32 0.0, %v1357
      %v1359 = vpop.f32.mrb[0].mxu0
      %1360 = vmatprep.mubr.bf16.mxu0 0
      %1361 = vmatmul.mubr.bf16.gmra.mrb[0].mxu0 %v1270
      %v1362 = vpop.f32.mrb[0].mxu0
      %v1363 = vadd.f32 0.0, %v1362
      %v1364 = vpop.f32.mrb[0].mxu0
      %v1365 = vpop.f32.mrb[0].mxu0
      %v1366 = vadd.f32 0.0, %v1365
      %v1367 = vpop.f32.mrb[0].mxu0
      %1368 = vmatprep.mubr.bf16.mxu0 0
      %1369 = vmatmul.mubr.bf16.gmra.mrb[0].mxu0 %v1273
      %v1370 = vpop.f32.mrb[0].mxu0
      %v1371 = vadd.f32 0.0, %v1370
      %v1372 = vpop.f32.mrb[0].mxu0
      %v1373 = vpop.f32.mrb[0].mxu0
      %v1374 = vadd.f32 0.0, %v1373
      %v1375 = vpop.f32.mrb[0].mxu0
      %1376 = vmatprep.mubr.bf16.mxu0 0
      %1377 = vmatmul.mubr.bf16.gmra.mrb[0].mxu0 %v1276
      %v1378 = vpop.f32.mrb[0].mxu0
      %v1379 = vadd.f32 0.0, %v1378
      %v1380 = vpop.f32.mrb[0].mxu0
      %v1381 = vpop.f32.mrb[0].mxu0
      %v1382 = vadd.f32 0.0, %v1381
      %v1383 = vpop.f32.mrb[0].mxu0
      %1384 = vmatprep.mubr.bf16.mxu0 0
      %1385 = vmatmul.mubr.bf16.gmra.mrb[0].mxu0 %v1279
      %v1386 = vpop.f32.mrb[0].mxu0
      %v1387 = vadd.f32 0.0, %v1386
      %v1388 = vpop.f32.mrb[0].mxu0
      %v1389 = vpop.f32.mrb[0].mxu0
      %v1390 = vadd.f32 0.0, %v1389
      %v1391 = vpop.f32.mrb[0].mxu0
      %1392 = vmatprep.mubr.bf16.mxu0 0
      %1393 = vmatmul.mubr.bf16.gmra.mrb[0].mxu0 %v1282
      %v1394 = vpop.f32.mrb[0].mxu0
      %v1395 = vadd.f32 0.0, %v1394
      %v1396 = vpop.f32.mrb[0].mxu0
      %v1397 = vpop.f32.mrb[0].mxu0
      %v1398 = vadd.f32 0.0, %v1397
      %v1399 = vpop.f32.mrb[0].mxu0
      %1400 = vmatprep.mubr.bf16.mxu0 0
      %1401 = vmatmul.mubr.bf16.gmra.mrb[0].mxu0 %v1285
      %v1402 = vpop.f32.mrb[0].mxu0
      %v1403 = vadd.f32 0.0, %v1402
      %v1404 = vpop.f32.mrb[0].mxu0
      %v1405 = vpop.f32.mrb[0].mxu0
      %v1406 = vadd.f32 0.0, %v1405
      %v1407 = vpop.f32.mrb[0].mxu0
      %1408 = vmatprep.mubr.bf16.mxu0 0
      %1409 = vmatmul.mubr.bf16.gmra.mrb[0].mxu0 %v1288
      %v1410 = vpop.f32.mrb[0].mxu0
      %v1411 = vadd.f32 0.0, %v1410
      %v1412 = vpop.f32.mrb[0].mxu0
      %v1413 = vpop.f32.mrb[0].mxu0
      %v1414 = vadd.f32 0.0, %v1413
      %v1415 = vpop.f32.mrb[0].mxu0
      %1416 = vmatprep.mubr.bf16.mxu0 0
      %1417 = vmatmul.mubr.bf16.gmra.mrb[0].mxu0 %v1291
      %v1418 = vpop.f32.mrb[0].mxu0
      %v1419 = vadd.f32 0.0, %v1418
      %v1420 = vpop.f32.mrb[0].mxu0
      %v1421 = vpop.f32.mrb[0].mxu0
      %v1422 = vadd.f32 0.0, %v1421
      %v1423 = vpop.f32.mrb[0].mxu0
      %1424 = vmatprep.mubr.bf16.mxu0 0
      %1425 = vmatmul.mubr.bf16.gmra.mrb[0].mxu0 %v1294
      %v1426 = vpop.f32.mrb[0].mxu0
      %v1427 = vadd.f32 0.0, %v1426
      %v1428 = vpop.f32.mrb[0].mxu0
      %v1429 = vpop.f32.mrb[0].mxu0
      %v1430 = vadd.f32 0.0, %v1429
      %v1431 = vpop.f32.mrb[0].mxu0
      %1432 = vmatprep.mubr.bf16.mxu0 0
      %1433 = vmatmul.mubr.bf16.gmra.mrb[0].mxu0 %v1297
      %v1434 = vpop.f32.mrb[0].mxu0
      %v1435 = vadd.f32 0.0, %v1434
      %v1436 = vpop.f32.mrb[0].mxu0
      %v1437 = vpop.f32.mrb[0].mxu0
      %v1438 = vadd.f32 0.0, %v1437
      %v1439 = vpop.f32.mrb[0].mxu0
      %1440 = vmatprep.mubr.bf16.mxu0 0
      %1441 = vmatmul.mubr.bf16.gmra.mrb[0].mxu0 %v1300
      %v1442 = vpop.f32.mrb[0].mxu0
      %v1443 = vadd.f32 0.0, %v1442
      %v1444 = vpop.f32.mrb[0].mxu0
      %v1445 = vpop.f32.mrb[0].mxu0
      %v1446 = vadd.f32 0.0, %v1445
      %v1447 = vpop.f32.mrb[0].mxu0
      %1448 = vmatprep.mubr.bf16.mxu0 0
      %1449 = vmatmul.mubr.bf16.gmra.mrb[0].mxu0 %v1303
      %v1450 = vpop.f32.mrb[0].mxu0
      %v1451 = vadd.f32 0.0, %v1450
      %v1452 = vpop.f32.mrb[0].mxu0
      %v1453 = vpop.f32.mrb[0].mxu0
      %v1454 = vadd.f32 0.0, %v1453
      %v1455 = vpop.f32.mrb[0].mxu0
      %1456 = vmatprep.mubr.bf16.mxu0 0
      %1457 = vmatmul.mubr.bf16.gmra.mrb[0].mxu0 %v1306
      %v1458 = vpop.f32.mrb[0].mxu0
      %v1459 = vadd.f32 0.0, %v1458
      %v1460 = vpop.f32.mrb[0].mxu0
      %v1461 = vpop.f32.mrb[0].mxu0
      %v1462 = vadd.f32 0.0, %v1461
      %v1463 = vpop.f32.mrb[0].mxu0
      %1464 = vmatprep.mubr.bf16.mxu0 0
      %1465 = vmatmul.mubr.bf16.gmra.mrb[0].mxu0 %v1309
      %v1466 = vpop.f32.mrb[0].mxu0
      %v1467 = vadd.f32 0.0, %v1466
      %v1468 = vpop.f32.mrb[0].mxu0
      %v1469 = vpop.f32.mrb[0].mxu0
      %v1470 = vadd.f32 0.0, %v1469
      %v1471 = vpop.f32.mrb[0].mxu0
      %1472 = vmatprep.mubr.bf16.mxu0 0
      %1473 = vmatmul.mubr.bf16.gmra.mrb[0].mxu0 %v1312
      %v1474 = vpop.f32.mrb[0].mxu0
      %v1475 = vadd.f32 0.0, %v1474
      %v1476 = vpop.f32.mrb[0].mxu0
      %v1477 = vpop.f32.mrb[0].mxu0
      %v1478 = vadd.f32 0.0, %v1477
      %v1479 = vpop.f32.mrb[0].mxu0
      %1480 = vmatprep.mubr.bf16.mxu0 0
      %1481 = vmatmul.mubr.bf16.gmra.mrb[0].mxu0 %v1315
      %v1482 = vpop.f32.mrb[0].mxu0
      %v1483 = vadd.f32 0.0, %v1482
      %v1484 = vpop.f32.mrb[0].mxu0
      %v1485 = vpop.f32.mrb[0].mxu0
      %v1486 = vadd.f32 0.0, %v1485
      %v1487 = vpop.f32.mrb[0].mxu0
      %1488 = vmatprep.mubr.bf16.mxu0 0
      %1489 = vmatmul.mubr.bf16.gmra.mrb[0].mxu0 %v1318
      %v1490 = vpop.f32.mrb[0].mxu0
      %v1491 = vadd.f32 0.0, %v1490
      %v1492 = vpop.f32.mrb[0].mxu0
      %v1493 = vpop.f32.mrb[0].mxu0
      %v1494 = vadd.f32 0.0, %v1493
      %v1495 = vpop.f32.mrb[0].mxu0
      %1496 = vdwg.mxu0
      %v1497 = vadd.f32 %v1159, %v1355
      %v1498 = vadd.f32 %v1160, %v1358
      %v1499 = vadd.f32 %v1161, %v1363
      %v1500 = vadd.f32 %v1162, %v1366
      %v1501 = vadd.f32 %v1163, %v1371
      %v1502 = vadd.f32 %v1164, %v1374
      %v1503 = vadd.f32 %v1165, %v1379
      %v1504 = vadd.f32 %v1166, %v1382
      %v1505 = vadd.f32 %v1167, %v1387
      %v1506 = vadd.f32 %v1168, %v1390
      %v1507 = vadd.f32 %v1169, %v1395
      %v1508 = vadd.f32 %v1170, %v1398
      %v1509 = vadd.f32 %v1171, %v1403
      %v1510 = vadd.f32 %v1172, %v1406
      %v1511 = vadd.f32 %v1173, %v1411
      %v1512 = vadd.f32 %v1174, %v1414
      %v1513 = vadd.f32 %v1175, %v1419
      %v1514 = vadd.f32 %v1176, %v1422
      %v1515 = vadd.f32 %v1177, %v1427
      %v1516 = vadd.f32 %v1178, %v1430
      %v1517 = vadd.f32 %v1179, %v1435
      %v1518 = vadd.f32 %v1180, %v1438
      %v1519 = vadd.f32 %v1181, %v1443
      %v1520 = vadd.f32 %v1182, %v1446
      %v1521 = vadd.f32 %v1183, %v1451
      %v1522 = vadd.f32 %v1184, %v1454
      %v1523 = vadd.f32 %v1185, %v1459
      %v1524 = vadd.f32 %v1186, %v1462
      %v1525 = vadd.f32 %v1187, %v1467
      %v1526 = vadd.f32 %v1188, %v1470
      %v1527 = vadd.f32 %v1189, %v1475
      %v1528 = vadd.f32 %v1190, %v1478
      %v1529 = vadd.f32 %v1191, %v1483
      %v1530 = vadd.f32 %v1192, %v1486
      %v1531 = vadd.f32 %v1193, %v1491
      %v1532 = vadd.f32 %v1194, %v1494
      %v1533 = vld [vmem:[%s246 + $0x13] sm:$0xff]
      %v1534 = vld [vmem:[%s246 + $0x1b] sm:$0xff]
      %v1535 = vld [vmem:[%s246 + $0x23] sm:$0xff]
      %v1536 = vld [vmem:[%s246 + $0x2b] sm:$0xff]
      %v1537 = vld [vmem:[%s246 + $0x33] sm:$0xff]
      %v1538 = vld [vmem:[%s246 + $0x3b] sm:$0xff]
      %v1539 = vld [vmem:[%s246 + $0x43] sm:$0xff]
      %v1540 = vld [vmem:[%s246 + $0x4b] sm:$0xff]
      %v1541 = vld [vmem:[%s246 + $0x53] sm:$0xff]
      %v1542 = vld [vmem:[%s246 + $0x5b] sm:$0xff]
      %v1543 = vld [vmem:[%s246 + $0x63] sm:$0xff]
      %v1544 = vld [vmem:[%s246 + $0x6b] sm:$0xff]
      %v1545 = vld [vmem:[%s246 + $0x73] sm:$0xff]
      %v1546 = vld [vmem:[%s246 + $0x7b] sm:$0xff]
      %v1547 = vld [vmem:[%s246 + $0x83] sm:$0xff]
      %v1548 = vld [vmem:[%s246 + $0x8b] sm:$0xff]
      %v1549 = vld [vmem:[%s246 + $0x93] sm:$0xff]
      %v1550 = vld [vmem:[%s246 + $0x9b] sm:$0xff]
      %v1551 = vld [vmem:[%s246 + $0xa3] sm:$0xff]
      %v1552 = vld [vmem:[%s246 + $0xab] sm:$0xff]
      %v1553 = vld [vmem:[%s246 + $0xb3] sm:$0xff]
      %v1554 = vld [vmem:[%s246 + $0xbb] sm:$0xff]
      %v1555 = vld [vmem:[%s246 + $0xc3] sm:$0xff]
      %v1556 = vld [vmem:[%s246 + $0xcb] sm:$0xff]
      %v1557 = vld [vmem:[%s246 + $0xd3] sm:$0xff]
      %v1558 = vld [vmem:[%s246 + $0xdb] sm:$0xff]
      %v1559 = vld [vmem:[%s246 + $0xe3] sm:$0xff]
      %v1560 = vld [vmem:[%s246 + $0xeb] sm:$0xff]
      %v1561 = vld [vmem:[%s246 + $0xf3] sm:$0xff]
      %v1562 = vld [vmem:[%s246 + $0xfb] sm:$0xff]
      %v1563 = vld [vmem:[%s246 + $0x103] sm:$0xff]
      %v1564 = vld [vmem:[%s246 + $0x10b] sm:$0xff]
      %v1565 = vld [vmem:[%s246 + $0x113] sm:$0xff]
      %v1566 = vld [vmem:[%s246 + $0x11b] sm:$0xff]
      %v1567 = vld [vmem:[%s246 + $0x123] sm:$0xff]
      %v1568 = vld [vmem:[%s246 + $0x12b] sm:$0xff]
      %v1569 = vpack.c.bf16 %v1534, %v1533
      %v1570 = vpack.c.bf16 %v1536, %v1535
      %v1571 = vpack.c.bf16 %v1538, %v1537
      %v1572 = vpack.c.bf16 %v1540, %v1539
      %v1573 = vpack.c.bf16 %v1542, %v1541
      %v1574 = vpack.c.bf16 %v1544, %v1543
      %v1575 = vpack.c.bf16 %v1546, %v1545
      %v1576 = vpack.c.bf16 %v1548, %v1547
      %v1577 = vpack.c.bf16 %v1550, %v1549
      %v1578 = vpack.c.bf16 %v1552, %v1551
      %v1579 = vpack.c.bf16 %v1554, %v1553
      %v1580 = vpack.c.bf16 %v1556, %v1555
      %v1581 = vpack.c.bf16 %v1558, %v1557
      %v1582 = vpack.c.bf16 %v1560, %v1559
      %v1583 = vpack.c.bf16 %v1562, %v1561
      %v1584 = vpack.c.bf16 %v1564, %v1563
      %v1585 = vpack.c.bf16 %v1566, %v1565
      %v1586 = vpack.c.bf16 %v1568, %v1567
      %s1587 = scalar_lea.vmem %s1, 64
      %v1588 = vld [vmem:[%s1587] sm:$0xf]
      %v1589 = vld [vmem:[%s1587 + $0x4] sm:$0xf]
      %v1590 = vld [vmem:[%s1587 + $0x8] sm:$0xf]
      %v1591 = vld [vmem:[%s1587 + $0xc] sm:$0xf]
      %v1596 = vunpack.c.l.b16 %v1588
      %v1597 = vunpack.c.l.b16 %v1589
      %v1598 = vunpack.c.l.b16 %v1590
      %v1599 = vunpack.c.l.b16 %v1591
      %v1600 = vpack.c.b16 %v1597, %v1596
      %v1601 = vpack.c.b16 %v1599, %v1598
      %v1605 = vsel %vm382, %v1569, 0
      %v1608 = vsel %vm382, %v1570, 0
      %v1611 = vsel %vm382, %v1571, 0
      %v1614 = vsel %vm382, %v1572, 0
      %v1617 = vsel %vm382, %v1573, 0
      %v1620 = vsel %vm382, %v1574, 0
      %v1623 = vsel %vm382, %v1575, 0
      %v1626 = vsel %vm382, %v1576, 0
      %v1629 = vsel %vm382, %v1577, 0
      %v1632 = vsel %vm382, %v1578, 0
      %v1635 = vsel %vm382, %v1579, 0
      %v1638 = vsel %vm382, %v1580, 0
      %v1641 = vsel %vm382, %v1581, 0
      %v1644 = vsel %vm382, %v1582, 0
      %v1647 = vsel %vm382, %v1583, 0
      %v1650 = vsel %vm382, %v1584, 0
      %v1653 = vsel %vm382, %v1585, 0
      %v1656 = vsel %vm382, %v1586, 0
      %1658 = vmatprep.subr.bf16.mxu0 0
      %1659 = vmatpush1.bf16.msra.mxu0 %v1600
      %1660 = vmatprep.subr.bf16.mxu0 0
      %1661 = vmatpush1.bf16.msra.mxu0 %v1601
      %1662 = vmatprep.subr.bf16.mxu0 0
      %1663 = vmatpush1.bf16.msra.mxu0 0
      %1664 = vmatprep.subr.bf16.mxu0 0
      %1665 = vmatpush1.bf16.msra.mxu0 0
      %1666 = vmatprep.subr.bf16.mxu0 0
      %1667 = vmatpush1.bf16.msra.mxu0 0
      %1668 = vmatprep.subr.bf16.mxu0 0
      %1669 = vmatpush1.bf16.msra.mxu0 0
      %1670 = vmatprep.subr.bf16.mxu0 0
      %1671 = vmatpush1.bf16.msra.mxu0 0
      %1672 = vmatprep.subr.bf16.mxu0 0
      %1673 = vmatpush1.bf16.msra.mxu0 0
      %1674 = vmatprep.subr.bf16.mxu0 0
      %1675 = vmatpush1.bf16.msra.mxu0 0
      %1676 = vmatprep.subr.bf16.mxu0 0
      %1677 = vmatpush1.bf16.msra.mxu0 0
      %1678 = vmatprep.subr.bf16.mxu0 0
      %1679 = vmatpush1.bf16.msra.mxu0 0
      %1680 = vmatprep.subr.bf16.mxu0 0
      %1681 = vmatpush1.bf16.msra.mxu0 0
      %1682 = vmatprep.subr.bf16.mxu0 0
      %1683 = vmatpush1.bf16.msra.mxu0 0
      %1684 = vmatprep.subr.bf16.mxu0 0
      %1685 = vmatpush1.bf16.msra.mxu0 0
      %1686 = vmatprep.subr.bf16.mxu0 0
      %1687 = vmatpush1.bf16.msra.mxu0 0
      %1688 = vmatprep.subr.bf16.mxu0 0
      %1689 = vmatpush1.bf16.msra.mxu0 0
      %1690 = vmatprep.mubr.bf16.mxu0 0
      %1691 = vmatmul.mubr.bf16.gmra.mrb[0].mxu0 %v1605
      %v1692 = vpop.f32.mrb[0].mxu0
      %v1693 = vadd.f32 0.0, %v1692
      %v1694 = vpop.f32.mrb[0].mxu0
      %v1695 = vpop.f32.mrb[0].mxu0
      %v1696 = vadd.f32 0.0, %v1695
      %v1697 = vpop.f32.mrb[0].mxu0
      %1698 = vmatprep.mubr.bf16.mxu0 0
      %1699 = vmatmul.mubr.bf16.gmra.mrb[0].mxu0 %v1608
      %v1700 = vpop.f32.mrb[0].mxu0
      %v1701 = vadd.f32 0.0, %v1700
      %v1702 = vpop.f32.mrb[0].mxu0
      %v1703 = vpop.f32.mrb[0].mxu0
      %v1704 = vadd.f32 0.0, %v1703
      %v1705 = vpop.f32.mrb[0].mxu0
      %1706 = vmatprep.mubr.bf16.mxu0 0
      %1707 = vmatmul.mubr.bf16.gmra.mrb[0].mxu0 %v1611
      %v1708 = vpop.f32.mrb[0].mxu0
      %v1709 = vadd.f32 0.0, %v1708
      %v1710 = vpop.f32.mrb[0].mxu0
      %v1711 = vpop.f32.mrb[0].mxu0
      %v1712 = vadd.f32 0.0, %v1711
      %v1713 = vpop.f32.mrb[0].mxu0
      %1714 = vmatprep.mubr.bf16.mxu0 0
      %1715 = vmatmul.mubr.bf16.gmra.mrb[0].mxu0 %v1614
      %v1716 = vpop.f32.mrb[0].mxu0
      %v1717 = vadd.f32 0.0, %v1716
      %v1718 = vpop.f32.mrb[0].mxu0
      %v1719 = vpop.f32.mrb[0].mxu0
      %v1720 = vadd.f32 0.0, %v1719
      %v1721 = vpop.f32.mrb[0].mxu0
      %1722 = vmatprep.mubr.bf16.mxu0 0
      %1723 = vmatmul.mubr.bf16.gmra.mrb[0].mxu0 %v1617
      %v1724 = vpop.f32.mrb[0].mxu0
      %v1725 = vadd.f32 0.0, %v1724
      %v1726 = vpop.f32.mrb[0].mxu0
      %v1727 = vpop.f32.mrb[0].mxu0
      %v1728 = vadd.f32 0.0, %v1727
      %v1729 = vpop.f32.mrb[0].mxu0
      %1730 = vmatprep.mubr.bf16.mxu0 0
      %1731 = vmatmul.mubr.bf16.gmra.mrb[0].mxu0 %v1620
      %v1732 = vpop.f32.mrb[0].mxu0
      %v1733 = vadd.f32 0.0, %v1732
      %v1734 = vpop.f32.mrb[0].mxu0
      %v1735 = vpop.f32.mrb[0].mxu0
      %v1736 = vadd.f32 0.0, %v1735
      %v1737 = vpop.f32.mrb[0].mxu0
      %1738 = vmatprep.mubr.bf16.mxu0 0
      %1739 = vmatmul.mubr.bf16.gmra.mrb[0].mxu0 %v1623
      %v1740 = vpop.f32.mrb[0].mxu0
      %v1741 = vadd.f32 0.0, %v1740
      %v1742 = vpop.f32.mrb[0].mxu0
      %v1743 = vpop.f32.mrb[0].mxu0
      %v1744 = vadd.f32 0.0, %v1743
      %v1745 = vpop.f32.mrb[0].mxu0
      %1746 = vmatprep.mubr.bf16.mxu0 0
      %1747 = vmatmul.mubr.bf16.gmra.mrb[0].mxu0 %v1626
      %v1748 = vpop.f32.mrb[0].mxu0
      %v1749 = vadd.f32 0.0, %v1748
      %v1750 = vpop.f32.mrb[0].mxu0
      %v1751 = vpop.f32.mrb[0].mxu0
      %v1752 = vadd.f32 0.0, %v1751
      %v1753 = vpop.f32.mrb[0].mxu0
      %1754 = vmatprep.mubr.bf16.mxu0 0
      %1755 = vmatmul.mubr.bf16.gmra.mrb[0].mxu0 %v1629
      %v1756 = vpop.f32.mrb[0].mxu0
      %v1757 = vadd.f32 0.0, %v1756
      %v1758 = vpop.f32.mrb[0].mxu0
      %v1759 = vpop.f32.mrb[0].mxu0
      %v1760 = vadd.f32 0.0, %v1759
      %v1761 = vpop.f32.mrb[0].mxu0
      %1762 = vmatprep.mubr.bf16.mxu0 0
      %1763 = vmatmul.mubr.bf16.gmra.mrb[0].mxu0 %v1632
      %v1764 = vpop.f32.mrb[0].mxu0
      %v1765 = vadd.f32 0.0, %v1764
      %v1766 = vpop.f32.mrb[0].mxu0
      %v1767 = vpop.f32.mrb[0].mxu0
      %v1768 = vadd.f32 0.0, %v1767
      %v1769 = vpop.f32.mrb[0].mxu0
      %1770 = vmatprep.mubr.bf16.mxu0 0
      %1771 = vmatmul.mubr.bf16.gmra.mrb[0].mxu0 %v1635
      %v1772 = vpop.f32.mrb[0].mxu0
      %v1773 = vadd.f32 0.0, %v1772
      %v1774 = vpop.f32.mrb[0].mxu0
      %v1775 = vpop.f32.mrb[0].mxu0
      %v1776 = vadd.f32 0.0, %v1775
      %v1777 = vpop.f32.mrb[0].mxu0
      %1778 = vmatprep.mubr.bf16.mxu0 0
      %1779 = vmatmul.mubr.bf16.gmra.mrb[0].mxu0 %v1638
      %v1780 = vpop.f32.mrb[0].mxu0
      %v1781 = vadd.f32 0.0, %v1780
      %v1782 = vpop.f32.mrb[0].mxu0
      %v1783 = vpop.f32.mrb[0].mxu0
      %v1784 = vadd.f32 0.0, %v1783
      %v1785 = vpop.f32.mrb[0].mxu0
      %1786 = vmatprep.mubr.bf16.mxu0 0
      %1787 = vmatmul.mubr.bf16.gmra.mrb[0].mxu0 %v1641
      %v1788 = vpop.f32.mrb[0].mxu0
      %v1789 = vadd.f32 0.0, %v1788
      %v1790 = vpop.f32.mrb[0].mxu0
      %v1791 = vpop.f32.mrb[0].mxu0
      %v1792 = vadd.f32 0.0, %v1791
      %v1793 = vpop.f32.mrb[0].mxu0
      %1794 = vmatprep.mubr.bf16.mxu0 0
      %1795 = vmatmul.mubr.bf16.gmra.mrb[0].mxu0 %v1644
      %v1796 = vpop.f32.mrb[0].mxu0
      %v1797 = vadd.f32 0.0, %v1796
      %v1798 = vpop.f32.mrb[0].mxu0
      %v1799 = vpop.f32.mrb[0].mxu0
      %v1800 = vadd.f32 0.0, %v1799
      %v1801 = vpop.f32.mrb[0].mxu0
      %1802 = vmatprep.mubr.bf16.mxu0 0
      %1803 = vmatmul.mubr.bf16.gmra.mrb[0].mxu0 %v1647
      %v1804 = vpop.f32.mrb[0].mxu0
      %v1805 = vadd.f32 0.0, %v1804
      %v1806 = vpop.f32.mrb[0].mxu0
      %v1807 = vpop.f32.mrb[0].mxu0
      %v1808 = vadd.f32 0.0, %v1807
      %v1809 = vpop.f32.mrb[0].mxu0
      %1810 = vmatprep.mubr.bf16.mxu0 0
      %1811 = vmatmul.mubr.bf16.gmra.mrb[0].mxu0 %v1650
      %v1812 = vpop.f32.mrb[0].mxu0
      %v1813 = vadd.f32 0.0, %v1812
      %v1814 = vpop.f32.mrb[0].mxu0
      %v1815 = vpop.f32.mrb[0].mxu0
      %v1816 = vadd.f32 0.0, %v1815
      %v1817 = vpop.f32.mrb[0].mxu0
      %1818 = vmatprep.mubr.bf16.mxu0 0
      %1819 = vmatmul.mubr.bf16.gmra.mrb[0].mxu0 %v1653
      %v1820 = vpop.f32.mrb[0].mxu0
      %v1821 = vadd.f32 0.0, %v1820
      %v1822 = vpop.f32.mrb[0].mxu0
      %v1823 = vpop.f32.mrb[0].mxu0
      %v1824 = vadd.f32 0.0, %v1823
      %v1825 = vpop.f32.mrb[0].mxu0
      %1826 = vmatprep.mubr.bf16.mxu0 0
      %1827 = vmatmul.mubr.bf16.gmra.mrb[0].mxu0 %v1656
      %v1828 = vpop.f32.mrb[0].mxu0
      %v1829 = vadd.f32 0.0, %v1828
      %v1830 = vpop.f32.mrb[0].mxu0
      %v1831 = vpop.f32.mrb[0].mxu0
      %v1832 = vadd.f32 0.0, %v1831
      %v1833 = vpop.f32.mrb[0].mxu0
      %1834 = vdwg.mxu0
      %v1835 = vadd.f32 %v1497, %v1693
      %v1836 = vadd.f32 %v1498, %v1696
      %v1837 = vadd.f32 %v1499, %v1701
      %v1838 = vadd.f32 %v1500, %v1704
      %v1839 = vadd.f32 %v1501, %v1709
      %v1840 = vadd.f32 %v1502, %v1712
      %v1841 = vadd.f32 %v1503, %v1717
      %v1842 = vadd.f32 %v1504, %v1720
      %v1843 = vadd.f32 %v1505, %v1725
      %v1844 = vadd.f32 %v1506, %v1728
      %v1845 = vadd.f32 %v1507, %v1733
      %v1846 = vadd.f32 %v1508, %v1736
      %v1847 = vadd.f32 %v1509, %v1741
      %v1848 = vadd.f32 %v1510, %v1744
      %v1849 = vadd.f32 %v1511, %v1749
      %v1850 = vadd.f32 %v1512, %v1752
      %v1851 = vadd.f32 %v1513, %v1757
      %v1852 = vadd.f32 %v1514, %v1760
      %v1853 = vadd.f32 %v1515, %v1765
      %v1854 = vadd.f32 %v1516, %v1768
      %v1855 = vadd.f32 %v1517, %v1773
      %v1856 = vadd.f32 %v1518, %v1776
      %v1857 = vadd.f32 %v1519, %v1781
      %v1858 = vadd.f32 %v1520, %v1784
      %v1859 = vadd.f32 %v1521, %v1789
      %v1860 = vadd.f32 %v1522, %v1792
      %v1861 = vadd.f32 %v1523, %v1797
      %v1862 = vadd.f32 %v1524, %v1800
      %v1863 = vadd.f32 %v1525, %v1805
      %v1864 = vadd.f32 %v1526, %v1808
      %v1865 = vadd.f32 %v1527, %v1813
      %v1866 = vadd.f32 %v1528, %v1816
      %v1867 = vadd.f32 %v1529, %v1821
      %v1868 = vadd.f32 %v1530, %v1824
      %v1869 = vadd.f32 %v1531, %v1829
      %v1870 = vadd.f32 %v1532, %v1832
      %v1871 = vld [vmem:[%s246 + $0x14] sm:$0xff]
      %v1872 = vld [vmem:[%s246 + $0x1c] sm:$0xff]
      %v1873 = vld [vmem:[%s246 + $0x24] sm:$0xff]
      %v1874 = vld [vmem:[%s246 + $0x2c] sm:$0xff]
      %v1875 = vld [vmem:[%s246 + $0x34] sm:$0xff]
      %v1876 = vld [vmem:[%s246 + $0x3c] sm:$0xff]
      %v1877 = vld [vmem:[%s246 + $0x44] sm:$0xff]
      %v1878 = vld [vmem:[%s246 + $0x4c] sm:$0xff]
      %v1879 = vld [vmem:[%s246 + $0x54] sm:$0xff]
      %v1880 = vld [vmem:[%s246 + $0x5c] sm:$0xff]
      %v1881 = vld [vmem:[%s246 + $0x64] sm:$0xff]
      %v1882 = vld [vmem:[%s246 + $0x6c] sm:$0xff]
      %v1883 = vld [vmem:[%s246 + $0x74] sm:$0xff]
      %v1884 = vld [vmem:[%s246 + $0x7c] sm:$0xff]
      %v1885 = vld [vmem:[%s246 + $0x84] sm:$0xff]
      %v1886 = vld [vmem:[%s246 + $0x8c] sm:$0xff]
      %v1887 = vld [vmem:[%s246 + $0x94] sm:$0xff]
      %v1888 = vld [vmem:[%s246 + $0x9c] sm:$0xff]
      %v1889 = vld [vmem:[%s246 + $0xa4] sm:$0xff]
      %v1890 = vld [vmem:[%s246 + $0xac] sm:$0xff]
      %v1891 = vld [vmem:[%s246 + $0xb4] sm:$0xff]
      %v1892 = vld [vmem:[%s246 + $0xbc] sm:$0xff]
      %v1893 = vld [vmem:[%s246 + $0xc4] sm:$0xff]
      %v1894 = vld [vmem:[%s246 + $0xcc] sm:$0xff]
      %v1895 = vld [vmem:[%s246 + $0xd4] sm:$0xff]
      %v1896 = vld [vmem:[%s246 + $0xdc] sm:$0xff]
      %v1897 = vld [vmem:[%s246 + $0xe4] sm:$0xff]
      %v1898 = vld [vmem:[%s246 + $0xec] sm:$0xff]
      %v1899 = vld [vmem:[%s246 + $0xf4] sm:$0xff]
      %v1900 = vld [vmem:[%s246 + $0xfc] sm:$0xff]
      %v1901 = vld [vmem:[%s246 + $0x104] sm:$0xff]
      %v1902 = vld [vmem:[%s246 + $0x10c] sm:$0xff]
      %v1903 = vld [vmem:[%s246 + $0x114] sm:$0xff]
      %v1904 = vld [vmem:[%s246 + $0x11c] sm:$0xff]
      %v1905 = vld [vmem:[%s246 + $0x124] sm:$0xff]
      %v1906 = vld [vmem:[%s246 + $0x12c] sm:$0xff]
      %v1907 = vpack.c.bf16 %v1872, %v1871
      %v1908 = vpack.c.bf16 %v1874, %v1873
      %v1909 = vpack.c.bf16 %v1876, %v1875
      %v1910 = vpack.c.bf16 %v1878, %v1877
      %v1911 = vpack.c.bf16 %v1880, %v1879
      %v1912 = vpack.c.bf16 %v1882, %v1881
      %v1913 = vpack.c.bf16 %v1884, %v1883
      %v1914 = vpack.c.bf16 %v1886, %v1885
      %v1915 = vpack.c.bf16 %v1888, %v1887
      %v1916 = vpack.c.bf16 %v1890, %v1889
      %v1917 = vpack.c.bf16 %v1892, %v1891
      %v1918 = vpack.c.bf16 %v1894, %v1893
      %v1919 = vpack.c.bf16 %v1896, %v1895
      %v1920 = vpack.c.bf16 %v1898, %v1897
      %v1921 = vpack.c.bf16 %v1900, %v1899
      %v1922 = vpack.c.bf16 %v1902, %v1901
      %v1923 = vpack.c.bf16 %v1904, %v1903
      %v1924 = vpack.c.bf16 %v1906, %v1905
      %s1925 = scalar_lea.vmem %s1, 80
      %v1926 = vld [vmem:[%s1925] sm:$0xf]
      %v1927 = vld [vmem:[%s1925 + $0x4] sm:$0xf]
      %v1928 = vld [vmem:[%s1925 + $0x8] sm:$0xf]
      %v1929 = vld [vmem:[%s1925 + $0xc] sm:$0xf]
      %v1934 = vunpack.c.l.b16 %v1926
      %v1935 = vunpack.c.l.b16 %v1927
      %v1936 = vunpack.c.l.b16 %v1928
      %v1937 = vunpack.c.l.b16 %v1929
      %v1938 = vpack.c.b16 %v1935, %v1934
      %v1939 = vpack.c.b16 %v1937, %v1936
      %v1943 = vsel %vm382, %v1907, 0
      %v1946 = vsel %vm382, %v1908, 0
      %v1949 = vsel %vm382, %v1909, 0
      %v1952 = vsel %vm382, %v1910, 0
      %v1955 = vsel %vm382, %v1911, 0
      %v1958 = vsel %vm382, %v1912, 0
      %v1961 = vsel %vm382, %v1913, 0
      %v1964 = vsel %vm382, %v1914, 0
      %v1967 = vsel %vm382, %v1915, 0
      %v1970 = vsel %vm382, %v1916, 0
      %v1973 = vsel %vm382, %v1917, 0
      %v1976 = vsel %vm382, %v1918, 0
      %v1979 = vsel %vm382, %v1919, 0
      %v1982 = vsel %vm382, %v1920, 0
      %v1985 = vsel %vm382, %v1921, 0
      %v1988 = vsel %vm382, %v1922, 0
      %v1991 = vsel %vm382, %v1923, 0
      %v1994 = vsel %vm382, %v1924, 0
      %1996 = vmatprep.subr.bf16.mxu0 0
      %1997 = vmatpush1.bf16.msra.mxu0 %v1938
      %1998 = vmatprep.subr.bf16.mxu0 0
      %1999 = vmatpush1.bf16.msra.mxu0 %v1939
      %2000 = vmatprep.subr.bf16.mxu0 0
      %2001 = vmatpush1.bf16.msra.mxu0 0
      %2002 = vmatprep.subr.bf16.mxu0 0
      %2003 = vmatpush1.bf16.msra.mxu0 0
      %2004 = vmatprep.subr.bf16.mxu0 0
      %2005 = vmatpush1.bf16.msra.mxu0 0
      %2006 = vmatprep.subr.bf16.mxu0 0
      %2007 = vmatpush1.bf16.msra.mxu0 0
      %2008 = vmatprep.subr.bf16.mxu0 0
      %2009 = vmatpush1.bf16.msra.mxu0 0
      %2010 = vmatprep.subr.bf16.mxu0 0
      %2011 = vmatpush1.bf16.msra.mxu0 0
      %2012 = vmatprep.subr.bf16.mxu0 0
      %2013 = vmatpush1.bf16.msra.mxu0 0
      %2014 = vmatprep.subr.bf16.mxu0 0
      %2015 = vmatpush1.bf16.msra.mxu0 0
      %2016 = vmatprep.subr.bf16.mxu0 0
      %2017 = vmatpush1.bf16.msra.mxu0 0
      %2018 = vmatprep.subr.bf16.mxu0 0
      %2019 = vmatpush1.bf16.msra.mxu0 0
      %2020 = vmatprep.subr.bf16.mxu0 0
      %2021 = vmatpush1.bf16.msra.mxu0 0
      %2022 = vmatprep.subr.bf16.mxu0 0
      %2023 = vmatpush1.bf16.msra.mxu0 0
      %2024 = vmatprep.subr.bf16.mxu0 0
      %2025 = vmatpush1.bf16.msra.mxu0 0
      %2026 = vmatprep.subr.bf16.mxu0 0
      %2027 = vmatpush1.bf16.msra.mxu0 0
      %2028 = vmatprep.mubr.bf16.mxu0 0
      %2029 = vmatmul.mubr.bf16.gmra.mrb[0].mxu0 %v1943
      %v2030 = vpop.f32.mrb[0].mxu0
      %v2031 = vadd.f32 0.0, %v2030
      %v2032 = vpop.f32.mrb[0].mxu0
      %v2033 = vpop.f32.mrb[0].mxu0
      %v2034 = vadd.f32 0.0, %v2033
      %v2035 = vpop.f32.mrb[0].mxu0
      %2036 = vmatprep.mubr.bf16.mxu0 0
      %2037 = vmatmul.mubr.bf16.gmra.mrb[0].mxu0 %v1946
      %v2038 = vpop.f32.mrb[0].mxu0
      %v2039 = vadd.f32 0.0, %v2038
      %v2040 = vpop.f32.mrb[0].mxu0
      %v2041 = vpop.f32.mrb[0].mxu0
      %v2042 = vadd.f32 0.0, %v2041
      %v2043 = vpop.f32.mrb[0].mxu0
      %2044 = vmatprep.mubr.bf16.mxu0 0
      %2045 = vmatmul.mubr.bf16.gmra.mrb[0].mxu0 %v1949
      %v2046 = vpop.f32.mrb[0].mxu0
      %v2047 = vadd.f32 0.0, %v2046
      %v2048 = vpop.f32.mrb[0].mxu0
      %v2049 = vpop.f32.mrb[0].mxu0
      %v2050 = vadd.f32 0.0, %v2049
      %v2051 = vpop.f32.mrb[0].mxu0
      %2052 = vmatprep.mubr.bf16.mxu0 0
      %2053 = vmatmul.mubr.bf16.gmra.mrb[0].mxu0 %v1952
      %v2054 = vpop.f32.mrb[0].mxu0
      %v2055 = vadd.f32 0.0, %v2054
      %v2056 = vpop.f32.mrb[0].mxu0
      %v2057 = vpop.f32.mrb[0].mxu0
      %v2058 = vadd.f32 0.0, %v2057
      %v2059 = vpop.f32.mrb[0].mxu0
      %2060 = vmatprep.mubr.bf16.mxu0 0
      %2061 = vmatmul.mubr.bf16.gmra.mrb[0].mxu0 %v1955
      %v2062 = vpop.f32.mrb[0].mxu0
      %v2063 = vadd.f32 0.0, %v2062
      %v2064 = vpop.f32.mrb[0].mxu0
      %v2065 = vpop.f32.mrb[0].mxu0
      %v2066 = vadd.f32 0.0, %v2065
      %v2067 = vpop.f32.mrb[0].mxu0
      %2068 = vmatprep.mubr.bf16.mxu0 0
      %2069 = vmatmul.mubr.bf16.gmra.mrb[0].mxu0 %v1958
      %v2070 = vpop.f32.mrb[0].mxu0
      %v2071 = vadd.f32 0.0, %v2070
      %v2072 = vpop.f32.mrb[0].mxu0
      %v2073 = vpop.f32.mrb[0].mxu0
      %v2074 = vadd.f32 0.0, %v2073
      %v2075 = vpop.f32.mrb[0].mxu0
      %2076 = vmatprep.mubr.bf16.mxu0 0
      %2077 = vmatmul.mubr.bf16.gmra.mrb[0].mxu0 %v1961
      %v2078 = vpop.f32.mrb[0].mxu0
      %v2079 = vadd.f32 0.0, %v2078
      %v2080 = vpop.f32.mrb[0].mxu0
      %v2081 = vpop.f32.mrb[0].mxu0
      %v2082 = vadd.f32 0.0, %v2081
      %v2083 = vpop.f32.mrb[0].mxu0
      %2084 = vmatprep.mubr.bf16.mxu0 0
      %2085 = vmatmul.mubr.bf16.gmra.mrb[0].mxu0 %v1964
      %v2086 = vpop.f32.mrb[0].mxu0
      %v2087 = vadd.f32 0.0, %v2086
      %v2088 = vpop.f32.mrb[0].mxu0
      %v2089 = vpop.f32.mrb[0].mxu0
      %v2090 = vadd.f32 0.0, %v2089
      %v2091 = vpop.f32.mrb[0].mxu0
      %2092 = vmatprep.mubr.bf16.mxu0 0
      %2093 = vmatmul.mubr.bf16.gmra.mrb[0].mxu0 %v1967
      %v2094 = vpop.f32.mrb[0].mxu0
      %v2095 = vadd.f32 0.0, %v2094
      %v2096 = vpop.f32.mrb[0].mxu0
      %v2097 = vpop.f32.mrb[0].mxu0
      %v2098 = vadd.f32 0.0, %v2097
      %v2099 = vpop.f32.mrb[0].mxu0
      %2100 = vmatprep.mubr.bf16.mxu0 0
      %2101 = vmatmul.mubr.bf16.gmra.mrb[0].mxu0 %v1970
      %v2102 = vpop.f32.mrb[0].mxu0
      %v2103 = vadd.f32 0.0, %v2102
      %v2104 = vpop.f32.mrb[0].mxu0
      %v2105 = vpop.f32.mrb[0].mxu0
      %v2106 = vadd.f32 0.0, %v2105
      %v2107 = vpop.f32.mrb[0].mxu0
      %2108 = vmatprep.mubr.bf16.mxu0 0
      %2109 = vmatmul.mubr.bf16.gmra.mrb[0].mxu0 %v1973
      %v2110 = vpop.f32.mrb[0].mxu0
      %v2111 = vadd.f32 0.0, %v2110
      %v2112 = vpop.f32.mrb[0].mxu0
      %v2113 = vpop.f32.mrb[0].mxu0
      %v2114 = vadd.f32 0.0, %v2113
      %v2115 = vpop.f32.mrb[0].mxu0
      %2116 = vmatprep.mubr.bf16.mxu0 0
      %2117 = vmatmul.mubr.bf16.gmra.mrb[0].mxu0 %v1976
      %v2118 = vpop.f32.mrb[0].mxu0
      %v2119 = vadd.f32 0.0, %v2118
      %v2120 = vpop.f32.mrb[0].mxu0
      %v2121 = vpop.f32.mrb[0].mxu0
      %v2122 = vadd.f32 0.0, %v2121
      %v2123 = vpop.f32.mrb[0].mxu0
      %2124 = vmatprep.mubr.bf16.mxu0 0
      %2125 = vmatmul.mubr.bf16.gmra.mrb[0].mxu0 %v1979
      %v2126 = vpop.f32.mrb[0].mxu0
      %v2127 = vadd.f32 0.0, %v2126
      %v2128 = vpop.f32.mrb[0].mxu0
      %v2129 = vpop.f32.mrb[0].mxu0
      %v2130 = vadd.f32 0.0, %v2129
      %v2131 = vpop.f32.mrb[0].mxu0
      %2132 = vmatprep.mubr.bf16.mxu0 0
      %2133 = vmatmul.mubr.bf16.gmra.mrb[0].mxu0 %v1982
      %v2134 = vpop.f32.mrb[0].mxu0
      %v2135 = vadd.f32 0.0, %v2134
      %v2136 = vpop.f32.mrb[0].mxu0
      %v2137 = vpop.f32.mrb[0].mxu0
      %v2138 = vadd.f32 0.0, %v2137
      %v2139 = vpop.f32.mrb[0].mxu0
      %2140 = vmatprep.mubr.bf16.mxu0 0
      %2141 = vmatmul.mubr.bf16.gmra.mrb[0].mxu0 %v1985
      %v2142 = vpop.f32.mrb[0].mxu0
      %v2143 = vadd.f32 0.0, %v2142
      %v2144 = vpop.f32.mrb[0].mxu0
      %v2145 = vpop.f32.mrb[0].mxu0
      %v2146 = vadd.f32 0.0, %v2145
      %v2147 = vpop.f32.mrb[0].mxu0
      %2148 = vmatprep.mubr.bf16.mxu0 0
      %2149 = vmatmul.mubr.bf16.gmra.mrb[0].mxu0 %v1988
      %v2150 = vpop.f32.mrb[0].mxu0
      %v2151 = vadd.f32 0.0, %v2150
      %v2152 = vpop.f32.mrb[0].mxu0
      %v2153 = vpop.f32.mrb[0].mxu0
      %v2154 = vadd.f32 0.0, %v2153
      %v2155 = vpop.f32.mrb[0].mxu0
      %2156 = vmatprep.mubr.bf16.mxu0 0
      %2157 = vmatmul.mubr.bf16.gmra.mrb[0].mxu0 %v1991
      %v2158 = vpop.f32.mrb[0].mxu0
      %v2159 = vadd.f32 0.0, %v2158
      %v2160 = vpop.f32.mrb[0].mxu0
      %v2161 = vpop.f32.mrb[0].mxu0
      %v2162 = vadd.f32 0.0, %v2161
      %v2163 = vpop.f32.mrb[0].mxu0
      %2164 = vmatprep.mubr.bf16.mxu0 0
      %2165 = vmatmul.mubr.bf16.gmra.mrb[0].mxu0 %v1994
      %v2166 = vpop.f32.mrb[0].mxu0
      %v2167 = vadd.f32 0.0, %v2166
      %v2168 = vpop.f32.mrb[0].mxu0
      %v2169 = vpop.f32.mrb[0].mxu0
      %v2170 = vadd.f32 0.0, %v2169
      %v2171 = vpop.f32.mrb[0].mxu0
      %2172 = vdwg.mxu0
      %v2173 = vadd.f32 %v1835, %v2031
      %v2174 = vadd.f32 %v1836, %v2034
      %v2175 = vadd.f32 %v1837, %v2039
      %v2176 = vadd.f32 %v1838, %v2042
      %v2177 = vadd.f32 %v1839, %v2047
      %v2178 = vadd.f32 %v1840, %v2050
      %v2179 = vadd.f32 %v1841, %v2055
      %v2180 = vadd.f32 %v1842, %v2058
      %v2181 = vadd.f32 %v1843, %v2063
      %v2182 = vadd.f32 %v1844, %v2066
      %v2183 = vadd.f32 %v1845, %v2071
      %v2184 = vadd.f32 %v1846, %v2074
      %v2185 = vadd.f32 %v1847, %v2079
      %v2186 = vadd.f32 %v1848, %v2082
      %v2187 = vadd.f32 %v1849, %v2087
      %v2188 = vadd.f32 %v1850, %v2090
      %v2189 = vadd.f32 %v1851, %v2095
      %v2190 = vadd.f32 %v1852, %v2098
      %v2191 = vadd.f32 %v1853, %v2103
      %v2192 = vadd.f32 %v1854, %v2106
      %v2193 = vadd.f32 %v1855, %v2111
      %v2194 = vadd.f32 %v1856, %v2114
      %v2195 = vadd.f32 %v1857, %v2119
      %v2196 = vadd.f32 %v1858, %v2122
      %v2197 = vadd.f32 %v1859, %v2127
      %v2198 = vadd.f32 %v1860, %v2130
      %v2199 = vadd.f32 %v1861, %v2135
      %v2200 = vadd.f32 %v1862, %v2138
      %v2201 = vadd.f32 %v1863, %v2143
      %v2202 = vadd.f32 %v1864, %v2146
      %v2203 = vadd.f32 %v1865, %v2151
      %v2204 = vadd.f32 %v1866, %v2154
      %v2205 = vadd.f32 %v1867, %v2159
      %v2206 = vadd.f32 %v1868, %v2162
      %v2207 = vadd.f32 %v1869, %v2167
      %v2208 = vadd.f32 %v1870, %v2170
      %v2209 = vld [vmem:[%s246 + $0x24] sm:$0xff]
      %v2210 = vld [vmem:[%s246 + $0x2c] sm:$0xff]
      %v2211 = vld [vmem:[%s246 + $0x34] sm:$0xff]
      %v2212 = vld [vmem:[%s246 + $0x3c] sm:$0xff]
      %v2213 = vld [vmem:[%s246 + $0x44] sm:$0xff]
      %v2214 = vld [vmem:[%s246 + $0x4c] sm:$0xff]
      %v2215 = vld [vmem:[%s246 + $0x54] sm:$0xff]
      %v2216 = vld [vmem:[%s246 + $0x5c] sm:$0xff]
      %v2217 = vld [vmem:[%s246 + $0x64] sm:$0xff]
      %v2218 = vld [vmem:[%s246 + $0x6c] sm:$0xff]
      %v2219 = vld [vmem:[%s246 + $0x74] sm:$0xff]
      %v2220 = vld [vmem:[%s246 + $0x7c] sm:$0xff]
      %v2221 = vld [vmem:[%s246 + $0x84] sm:$0xff]
      %v2222 = vld [vmem:[%s246 + $0x8c] sm:$0xff]
      %v2223 = vld [vmem:[%s246 + $0x94] sm:$0xff]
      %v2224 = vld [vmem:[%s246 + $0x9c] sm:$0xff]
      %v2225 = vld [vmem:[%s246 + $0xa4] sm:$0xff]
      %v2226 = vld [vmem:[%s246 + $0xac] sm:$0xff]
      %v2227 = vld [vmem:[%s246 + $0xb4] sm:$0xff]
      %v2228 = vld [vmem:[%s246 + $0xbc] sm:$0xff]
      %v2229 = vld [vmem:[%s246 + $0xc4] sm:$0xff]
      %v2230 = vld [vmem:[%s246 + $0xcc] sm:$0xff]
      %v2231 = vld [vmem:[%s246 + $0xd4] sm:$0xff]
      %v2232 = vld [vmem:[%s246 + $0xdc] sm:$0xff]
      %v2233 = vld [vmem:[%s246 + $0xe4] sm:$0xff]
      %v2234 = vld [vmem:[%s246 + $0xec] sm:$0xff]
      %v2235 = vld [vmem:[%s246 + $0xf4] sm:$0xff]
      %v2236 = vld [vmem:[%s246 + $0xfc] sm:$0xff]
      %v2237 = vld [vmem:[%s246 + $0x104] sm:$0xff]
      %v2238 = vld [vmem:[%s246 + $0x10c] sm:$0xff]
      %v2239 = vld [vmem:[%s246 + $0x114] sm:$0xff]
      %v2240 = vld [vmem:[%s246 + $0x11c] sm:$0xff]
      %v2241 = vld [vmem:[%s246 + $0x124] sm:$0xff]
      %v2242 = vld [vmem:[%s246 + $0x12c] sm:$0xff]
      %v2243 = vld [vmem:[%s246 + $0x134] sm:$0xff]
      %v2244 = vld [vmem:[%s246 + $0x13c] sm:$0xff]
      %v2245 = vpack.c.bf16 %v2210, %v2209
      %v2246 = vpack.c.bf16 %v2212, %v2211
      %v2247 = vpack.c.bf16 %v2214, %v2213
      %v2248 = vpack.c.bf16 %v2216, %v2215
      %v2249 = vpack.c.bf16 %v2218, %v2217
      %v2250 = vpack.c.bf16 %v2220, %v2219
      %v2251 = vpack.c.bf16 %v2222, %v2221
      %v2252 = vpack.c.bf16 %v2224, %v2223
      %v2253 = vpack.c.bf16 %v2226, %v2225
      %v2254 = vpack.c.bf16 %v2228, %v2227
      %v2255 = vpack.c.bf16 %v2230, %v2229
      %v2256 = vpack.c.bf16 %v2232, %v2231
      %v2257 = vpack.c.bf16 %v2234, %v2233
      %v2258 = vpack.c.bf16 %v2236, %v2235
      %v2259 = vpack.c.bf16 %v2238, %v2237
      %v2260 = vpack.c.bf16 %v2240, %v2239
      %v2261 = vpack.c.bf16 %v2242, %v2241
      %v2262 = vpack.c.bf16 %v2244, %v2243
      %s2263 = scalar_lea.vmem %s1, 96
      %v2264 = vld [vmem:[%s2263] sm:$0xf]
      %v2265 = vld [vmem:[%s2263 + $0x4] sm:$0xf]
      %v2266 = vld [vmem:[%s2263 + $0x8] sm:$0xf]
      %v2267 = vld [vmem:[%s2263 + $0xc] sm:$0xf]
      %v2272 = vunpack.c.l.b16 %v2264
      %v2273 = vunpack.c.l.b16 %v2265
      %v2274 = vunpack.c.l.b16 %v2266
      %v2275 = vunpack.c.l.b16 %v2267
      %v2276 = vpack.c.b16 %v2273, %v2272
      %v2277 = vpack.c.b16 %v2275, %v2274
      %v2281 = vsel %vm382, %v2245, 0
      %v2284 = vsel %vm382, %v2246, 0
      %v2287 = vsel %vm382, %v2247, 0
      %v2290 = vsel %vm382, %v2248, 0
      %v2293 = vsel %vm382, %v2249, 0
      %v2296 = vsel %vm382, %v2250, 0
      %v2299 = vsel %vm382, %v2251, 0
      %v2302 = vsel %vm382, %v2252, 0
      %v2305 = vsel %vm382, %v2253, 0
      %v2308 = vsel %vm382, %v2254, 0
      %v2311 = vsel %vm382, %v2255, 0
      %v2314 = vsel %vm382, %v2256, 0
      %v2317 = vsel %vm382, %v2257, 0
      %v2320 = vsel %vm382, %v2258, 0
      %v2323 = vsel %vm382, %v2259, 0
      %v2326 = vsel %vm382, %v2260, 0
      %v2329 = vsel %vm382, %v2261, 0
      %v2332 = vsel %vm382, %v2262, 0
      %2334 = vmatprep.subr.bf16.mxu0 0
      %2335 = vmatpush1.bf16.msra.mxu0 %v2276
      %2336 = vmatprep.subr.bf16.mxu0 0
      %2337 = vmatpush1.bf16.msra.mxu0 %v2277
      %2338 = vmatprep.subr.bf16.mxu0 0
      %2339 = vmatpush1.bf16.msra.mxu0 0
      %2340 = vmatprep.subr.bf16.mxu0 0
      %2341 = vmatpush1.bf16.msra.mxu0 0
      %2342 = vmatprep.subr.bf16.mxu0 0
      %2343 = vmatpush1.bf16.msra.mxu0 0
      %2344 = vmatprep.subr.bf16.mxu0 0
      %2345 = vmatpush1.bf16.msra.mxu0 0
      %2346 = vmatprep.subr.bf16.mxu0 0
      %2347 = vmatpush1.bf16.msra.mxu0 0
      %2348 = vmatprep.subr.bf16.mxu0 0
      %2349 = vmatpush1.bf16.msra.mxu0 0
      %2350 = vmatprep.subr.bf16.mxu0 0
      %2351 = vmatpush1.bf16.msra.mxu0 0
      %2352 = vmatprep.subr.bf16.mxu0 0
      %2353 = vmatpush1.bf16.msra.mxu0 0
      %2354 = vmatprep.subr.bf16.mxu0 0
      %2355 = vmatpush1.bf16.msra.mxu0 0
      %2356 = vmatprep.subr.bf16.mxu0 0
      %2357 = vmatpush1.bf16.msra.mxu0 0
      %2358 = vmatprep.subr.bf16.mxu0 0
      %2359 = vmatpush1.bf16.msra.mxu0 0
      %2360 = vmatprep.subr.bf16.mxu0 0
      %2361 = vmatpush1.bf16.msra.mxu0 0
      %2362 = vmatprep.subr.bf16.mxu0 0
      %2363 = vmatpush1.bf16.msra.mxu0 0
      %2364 = vmatprep.subr.bf16.mxu0 0
      %2365 = vmatpush1.bf16.msra.mxu0 0
      %2366 = vmatprep.mubr.bf16.mxu0 0
      %2367 = vmatmul.mubr.bf16.gmra.mrb[0].mxu0 %v2281
      %v2368 = vpop.f32.mrb[0].mxu0
      %v2369 = vadd.f32 0.0, %v2368
      %v2370 = vpop.f32.mrb[0].mxu0
      %v2371 = vpop.f32.mrb[0].mxu0
      %v2372 = vadd.f32 0.0, %v2371
      %v2373 = vpop.f32.mrb[0].mxu0
      %2374 = vmatprep.mubr.bf16.mxu0 0
      %2375 = vmatmul.mubr.bf16.gmra.mrb[0].mxu0 %v2284
      %v2376 = vpop.f32.mrb[0].mxu0
      %v2377 = vadd.f32 0.0, %v2376
      %v2378 = vpop.f32.mrb[0].mxu0
      %v2379 = vpop.f32.mrb[0].mxu0
      %v2380 = vadd.f32 0.0, %v2379
      %v2381 = vpop.f32.mrb[0].mxu0
      %2382 = vmatprep.mubr.bf16.mxu0 0
      %2383 = vmatmul.mubr.bf16.gmra.mrb[0].mxu0 %v2287
      %v2384 = vpop.f32.mrb[0].mxu0
      %v2385 = vadd.f32 0.0, %v2384
      %v2386 = vpop.f32.mrb[0].mxu0
      %v2387 = vpop.f32.mrb[0].mxu0
      %v2388 = vadd.f32 0.0, %v2387
      %v2389 = vpop.f32.mrb[0].mxu0
      %2390 = vmatprep.mubr.bf16.mxu0 0
      %2391 = vmatmul.mubr.bf16.gmra.mrb[0].mxu0 %v2290
      %v2392 = vpop.f32.mrb[0].mxu0
      %v2393 = vadd.f32 0.0, %v2392
      %v2394 = vpop.f32.mrb[0].mxu0
      %v2395 = vpop.f32.mrb[0].mxu0
      %v2396 = vadd.f32 0.0, %v2395
      %v2397 = vpop.f32.mrb[0].mxu0
      %2398 = vmatprep.mubr.bf16.mxu0 0
      %2399 = vmatmul.mubr.bf16.gmra.mrb[0].mxu0 %v2293
      %v2400 = vpop.f32.mrb[0].mxu0
      %v2401 = vadd.f32 0.0, %v2400
      %v2402 = vpop.f32.mrb[0].mxu0
      %v2403 = vpop.f32.mrb[0].mxu0
      %v2404 = vadd.f32 0.0, %v2403
      %v2405 = vpop.f32.mrb[0].mxu0
      %2406 = vmatprep.mubr.bf16.mxu0 0
      %2407 = vmatmul.mubr.bf16.gmra.mrb[0].mxu0 %v2296
      %v2408 = vpop.f32.mrb[0].mxu0
      %v2409 = vadd.f32 0.0, %v2408
      %v2410 = vpop.f32.mrb[0].mxu0
      %v2411 = vpop.f32.mrb[0].mxu0
      %v2412 = vadd.f32 0.0, %v2411
      %v2413 = vpop.f32.mrb[0].mxu0
      %2414 = vmatprep.mubr.bf16.mxu0 0
      %2415 = vmatmul.mubr.bf16.gmra.mrb[0].mxu0 %v2299
      %v2416 = vpop.f32.mrb[0].mxu0
      %v2417 = vadd.f32 0.0, %v2416
      %v2418 = vpop.f32.mrb[0].mxu0
      %v2419 = vpop.f32.mrb[0].mxu0
      %v2420 = vadd.f32 0.0, %v2419
      %v2421 = vpop.f32.mrb[0].mxu0
      %2422 = vmatprep.mubr.bf16.mxu0 0
      %2423 = vmatmul.mubr.bf16.gmra.mrb[0].mxu0 %v2302
      %v2424 = vpop.f32.mrb[0].mxu0
      %v2425 = vadd.f32 0.0, %v2424
      %v2426 = vpop.f32.mrb[0].mxu0
      %v2427 = vpop.f32.mrb[0].mxu0
      %v2428 = vadd.f32 0.0, %v2427
      %v2429 = vpop.f32.mrb[0].mxu0
      %2430 = vmatprep.mubr.bf16.mxu0 0
      %2431 = vmatmul.mubr.bf16.gmra.mrb[0].mxu0 %v2305
      %v2432 = vpop.f32.mrb[0].mxu0
      %v2433 = vadd.f32 0.0, %v2432
      %v2434 = vpop.f32.mrb[0].mxu0
      %v2435 = vpop.f32.mrb[0].mxu0
      %v2436 = vadd.f32 0.0, %v2435
      %v2437 = vpop.f32.mrb[0].mxu0
      %2438 = vmatprep.mubr.bf16.mxu0 0
      %2439 = vmatmul.mubr.bf16.gmra.mrb[0].mxu0 %v2308
      %v2440 = vpop.f32.mrb[0].mxu0
      %v2441 = vadd.f32 0.0, %v2440
      %v2442 = vpop.f32.mrb[0].mxu0
      %v2443 = vpop.f32.mrb[0].mxu0
      %v2444 = vadd.f32 0.0, %v2443
      %v2445 = vpop.f32.mrb[0].mxu0
      %2446 = vmatprep.mubr.bf16.mxu0 0
      %2447 = vmatmul.mubr.bf16.gmra.mrb[0].mxu0 %v2311
      %v2448 = vpop.f32.mrb[0].mxu0
      %v2449 = vadd.f32 0.0, %v2448
      %v2450 = vpop.f32.mrb[0].mxu0
      %v2451 = vpop.f32.mrb[0].mxu0
      %v2452 = vadd.f32 0.0, %v2451
      %v2453 = vpop.f32.mrb[0].mxu0
      %2454 = vmatprep.mubr.bf16.mxu0 0
      %2455 = vmatmul.mubr.bf16.gmra.mrb[0].mxu0 %v2314
      %v2456 = vpop.f32.mrb[0].mxu0
      %v2457 = vadd.f32 0.0, %v2456
      %v2458 = vpop.f32.mrb[0].mxu0
      %v2459 = vpop.f32.mrb[0].mxu0
      %v2460 = vadd.f32 0.0, %v2459
      %v2461 = vpop.f32.mrb[0].mxu0
      %2462 = vmatprep.mubr.bf16.mxu0 0
      %2463 = vmatmul.mubr.bf16.gmra.mrb[0].mxu0 %v2317
      %v2464 = vpop.f32.mrb[0].mxu0
      %v2465 = vadd.f32 0.0, %v2464
      %v2466 = vpop.f32.mrb[0].mxu0
      %v2467 = vpop.f32.mrb[0].mxu0
      %v2468 = vadd.f32 0.0, %v2467
      %v2469 = vpop.f32.mrb[0].mxu0
      %2470 = vmatprep.mubr.bf16.mxu0 0
      %2471 = vmatmul.mubr.bf16.gmra.mrb[0].mxu0 %v2320
      %v2472 = vpop.f32.mrb[0].mxu0
      %v2473 = vadd.f32 0.0, %v2472
      %v2474 = vpop.f32.mrb[0].mxu0
      %v2475 = vpop.f32.mrb[0].mxu0
      %v2476 = vadd.f32 0.0, %v2475
      %v2477 = vpop.f32.mrb[0].mxu0
      %2478 = vmatprep.mubr.bf16.mxu0 0
      %2479 = vmatmul.mubr.bf16.gmra.mrb[0].mxu0 %v2323
      %v2480 = vpop.f32.mrb[0].mxu0
      %v2481 = vadd.f32 0.0, %v2480
      %v2482 = vpop.f32.mrb[0].mxu0
      %v2483 = vpop.f32.mrb[0].mxu0
      %v2484 = vadd.f32 0.0, %v2483
      %v2485 = vpop.f32.mrb[0].mxu0
      %2486 = vmatprep.mubr.bf16.mxu0 0
      %2487 = vmatmul.mubr.bf16.gmra.mrb[0].mxu0 %v2326
      %v2488 = vpop.f32.mrb[0].mxu0
      %v2489 = vadd.f32 0.0, %v2488
      %v2490 = vpop.f32.mrb[0].mxu0
      %v2491 = vpop.f32.mrb[0].mxu0
      %v2492 = vadd.f32 0.0, %v2491
      %v2493 = vpop.f32.mrb[0].mxu0
      %2494 = vmatprep.mubr.bf16.mxu0 0
      %2495 = vmatmul.mubr.bf16.gmra.mrb[0].mxu0 %v2329
      %v2496 = vpop.f32.mrb[0].mxu0
      %v2497 = vadd.f32 0.0, %v2496
      %v2498 = vpop.f32.mrb[0].mxu0
      %v2499 = vpop.f32.mrb[0].mxu0
      %v2500 = vadd.f32 0.0, %v2499
      %v2501 = vpop.f32.mrb[0].mxu0
      %2502 = vmatprep.mubr.bf16.mxu0 0
      %2503 = vmatmul.mubr.bf16.gmra.mrb[0].mxu0 %v2332
      %v2504 = vpop.f32.mrb[0].mxu0
      %v2505 = vadd.f32 0.0, %v2504
      %v2506 = vpop.f32.mrb[0].mxu0
      %v2507 = vpop.f32.mrb[0].mxu0
      %v2508 = vadd.f32 0.0, %v2507
      %v2509 = vpop.f32.mrb[0].mxu0
      %2510 = vdwg.mxu0
      %v2511 = vadd.f32 %v2173, %v2369
      %v2512 = vadd.f32 %v2174, %v2372
      %v2513 = vadd.f32 %v2175, %v2377
      %v2514 = vadd.f32 %v2176, %v2380
      %v2515 = vadd.f32 %v2177, %v2385
      %v2516 = vadd.f32 %v2178, %v2388
      %v2517 = vadd.f32 %v2179, %v2393
      %v2518 = vadd.f32 %v2180, %v2396
      %v2519 = vadd.f32 %v2181, %v2401
      %v2520 = vadd.f32 %v2182, %v2404
      %v2521 = vadd.f32 %v2183, %v2409
      %v2522 = vadd.f32 %v2184, %v2412
      %v2523 = vadd.f32 %v2185, %v2417
      %v2524 = vadd.f32 %v2186, %v2420
      %v2525 = vadd.f32 %v2187, %v2425
      %v2526 = vadd.f32 %v2188, %v2428
      %v2527 = vadd.f32 %v2189, %v2433
      %v2528 = vadd.f32 %v2190, %v2436
      %v2529 = vadd.f32 %v2191, %v2441
      %v2530 = vadd.f32 %v2192, %v2444
      %v2531 = vadd.f32 %v2193, %v2449
      %v2532 = vadd.f32 %v2194, %v2452
      %v2533 = vadd.f32 %v2195, %v2457
      %v2534 = vadd.f32 %v2196, %v2460
      %v2535 = vadd.f32 %v2197, %v2465
      %v2536 = vadd.f32 %v2198, %v2468
      %v2537 = vadd.f32 %v2199, %v2473
      %v2538 = vadd.f32 %v2200, %v2476
      %v2539 = vadd.f32 %v2201, %v2481
      %v2540 = vadd.f32 %v2202, %v2484
      %v2541 = vadd.f32 %v2203, %v2489
      %v2542 = vadd.f32 %v2204, %v2492
      %v2543 = vadd.f32 %v2205, %v2497
      %v2544 = vadd.f32 %v2206, %v2500
      %v2545 = vadd.f32 %v2207, %v2505
      %v2546 = vadd.f32 %v2208, %v2508
      %v2547 = vld [vmem:[%s246 + $0x25] sm:$0xff]
      %v2548 = vld [vmem:[%s246 + $0x2d] sm:$0xff]
      %v2549 = vld [vmem:[%s246 + $0x35] sm:$0xff]
      %v2550 = vld [vmem:[%s246 + $0x3d] sm:$0xff]
      %v2551 = vld [vmem:[%s246 + $0x45] sm:$0xff]
      %v2552 = vld [vmem:[%s246 + $0x4d] sm:$0xff]
      %v2553 = vld [vmem:[%s246 + $0x55] sm:$0xff]
      %v2554 = vld [vmem:[%s246 + $0x5d] sm:$0xff]
      %v2555 = vld [vmem:[%s246 + $0x65] sm:$0xff]
      %v2556 = vld [vmem:[%s246 + $0x6d] sm:$0xff]
      %v2557 = vld [vmem:[%s246 + $0x75] sm:$0xff]
      %v2558 = vld [vmem:[%s246 + $0x7d] sm:$0xff]
      %v2559 = vld [vmem:[%s246 + $0x85] sm:$0xff]
      %v2560 = vld [vmem:[%s246 + $0x8d] sm:$0xff]
      %v2561 = vld [vmem:[%s246 + $0x95] sm:$0xff]
      %v2562 = vld [vmem:[%s246 + $0x9d] sm:$0xff]
      %v2563 = vld [vmem:[%s246 + $0xa5] sm:$0xff]
      %v2564 = vld [vmem:[%s246 + $0xad] sm:$0xff]
      %v2565 = vld [vmem:[%s246 + $0xb5] sm:$0xff]
      %v2566 = vld [vmem:[%s246 + $0xbd] sm:$0xff]
      %v2567 = vld [vmem:[%s246 + $0xc5] sm:$0xff]
      %v2568 = vld [vmem:[%s246 + $0xcd] sm:$0xff]
      %v2569 = vld [vmem:[%s246 + $0xd5] sm:$0xff]
      %v2570 = vld [vmem:[%s246 + $0xdd] sm:$0xff]
      %v2571 = vld [vmem:[%s246 + $0xe5] sm:$0xff]
      %v2572 = vld [vmem:[%s246 + $0xed] sm:$0xff]
      %v2573 = vld [vmem:[%s246 + $0xf5] sm:$0xff]
      %v2574 = vld [vmem:[%s246 + $0xfd] sm:$0xff]
      %v2575 = vld [vmem:[%s246 + $0x105] sm:$0xff]
      %v2576 = vld [vmem:[%s246 + $0x10d] sm:$0xff]
      %v2577 = vld [vmem:[%s246 + $0x115] sm:$0xff]
      %v2578 = vld [vmem:[%s246 + $0x11d] sm:$0xff]
      %v2579 = vld [vmem:[%s246 + $0x125] sm:$0xff]
      %v2580 = vld [vmem:[%s246 + $0x12d] sm:$0xff]
      %v2581 = vld [vmem:[%s246 + $0x135] sm:$0xff]
      %v2582 = vld [vmem:[%s246 + $0x13d] sm:$0xff]
      %v2583 = vpack.c.bf16 %v2548, %v2547
      %v2584 = vpack.c.bf16 %v2550, %v2549
      %v2585 = vpack.c.bf16 %v2552, %v2551
      %v2586 = vpack.c.bf16 %v2554, %v2553
      %v2587 = vpack.c.bf16 %v2556, %v2555
      %v2588 = vpack.c.bf16 %v2558, %v2557
      %v2589 = vpack.c.bf16 %v2560, %v2559
      %v2590 = vpack.c.bf16 %v2562, %v2561
      %v2591 = vpack.c.bf16 %v2564, %v2563
      %v2592 = vpack.c.bf16 %v2566, %v2565
      %v2593 = vpack.c.bf16 %v2568, %v2567
      %v2594 = vpack.c.bf16 %v2570, %v2569
      %v2595 = vpack.c.bf16 %v2572, %v2571
      %v2596 = vpack.c.bf16 %v2574, %v2573
      %v2597 = vpack.c.bf16 %v2576, %v2575
      %v2598 = vpack.c.bf16 %v2578, %v2577
      %v2599 = vpack.c.bf16 %v2580, %v2579
      %v2600 = vpack.c.bf16 %v2582, %v2581
      %s2601 = scalar_lea.vmem %s1, 112
      %v2602 = vld [vmem:[%s2601] sm:$0xf]
      %v2603 = vld [vmem:[%s2601 + $0x4] sm:$0xf]
      %v2604 = vld [vmem:[%s2601 + $0x8] sm:$0xf]
      %v2605 = vld [vmem:[%s2601 + $0xc] sm:$0xf]
      %v2610 = vunpack.c.l.b16 %v2602
      %v2611 = vunpack.c.l.b16 %v2603
      %v2612 = vunpack.c.l.b16 %v2604
      %v2613 = vunpack.c.l.b16 %v2605
      %v2614 = vpack.c.b16 %v2611, %v2610
      %v2615 = vpack.c.b16 %v2613, %v2612
      %v2619 = vsel %vm382, %v2583, 0
      %v2622 = vsel %vm382, %v2584, 0
      %v2625 = vsel %vm382, %v2585, 0
      %v2628 = vsel %vm382, %v2586, 0
      %v2631 = vsel %vm382, %v2587, 0
      %v2634 = vsel %vm382, %v2588, 0
      %v2637 = vsel %vm382, %v2589, 0
      %v2640 = vsel %vm382, %v2590, 0
      %v2643 = vsel %vm382, %v2591, 0
      %v2646 = vsel %vm382, %v2592, 0
      %v2649 = vsel %vm382, %v2593, 0
      %v2652 = vsel %vm382, %v2594, 0
      %v2655 = vsel %vm382, %v2595, 0
      %v2658 = vsel %vm382, %v2596, 0
      %v2661 = vsel %vm382, %v2597, 0
      %v2664 = vsel %vm382, %v2598, 0
      %v2667 = vsel %vm382, %v2599, 0
      %v2670 = vsel %vm382, %v2600, 0
      %2672 = vmatprep.subr.bf16.mxu0 0
      %2673 = vmatpush1.bf16.msra.mxu0 %v2614
      %2674 = vmatprep.subr.bf16.mxu0 0
      %2675 = vmatpush1.bf16.msra.mxu0 %v2615
      %2676 = vmatprep.subr.bf16.mxu0 0
      %2677 = vmatpush1.bf16.msra.mxu0 0
      %2678 = vmatprep.subr.bf16.mxu0 0
      %2679 = vmatpush1.bf16.msra.mxu0 0
      %2680 = vmatprep.subr.bf16.mxu0 0
      %2681 = vmatpush1.bf16.msra.mxu0 0
      %2682 = vmatprep.subr.bf16.mxu0 0
      %2683 = vmatpush1.bf16.msra.mxu0 0
      %2684 = vmatprep.subr.bf16.mxu0 0
      %2685 = vmatpush1.bf16.msra.mxu0 0
      %2686 = vmatprep.subr.bf16.mxu0 0
      %2687 = vmatpush1.bf16.msra.mxu0 0
      %2688 = vmatprep.subr.bf16.mxu0 0
      %2689 = vmatpush1.bf16.msra.mxu0 0
      %2690 = vmatprep.subr.bf16.mxu0 0
      %2691 = vmatpush1.bf16.msra.mxu0 0
      %2692 = vmatprep.subr.bf16.mxu0 0
      %2693 = vmatpush1.bf16.msra.mxu0 0
      %2694 = vmatprep.subr.bf16.mxu0 0
      %2695 = vmatpush1.bf16.msra.mxu0 0
      %2696 = vmatprep.subr.bf16.mxu0 0
      %2697 = vmatpush1.bf16.msra.mxu0 0
      %2698 = vmatprep.subr.bf16.mxu0 0
      %2699 = vmatpush1.bf16.msra.mxu0 0
      %2700 = vmatprep.subr.bf16.mxu0 0
      %2701 = vmatpush1.bf16.msra.mxu0 0
      %2702 = vmatprep.subr.bf16.mxu0 0
      %2703 = vmatpush1.bf16.msra.mxu0 0
      %2704 = vmatprep.mubr.bf16.mxu0 0
      %2705 = vmatmul.mubr.bf16.gmra.mrb[0].mxu0 %v2619
      %v2706 = vpop.f32.mrb[0].mxu0
      %v2707 = vadd.f32 0.0, %v2706
      %v2708 = vpop.f32.mrb[0].mxu0
      %v2709 = vpop.f32.mrb[0].mxu0
      %v2710 = vadd.f32 0.0, %v2709
      %v2711 = vpop.f32.mrb[0].mxu0
      %2712 = vmatprep.mubr.bf16.mxu0 0
      %2713 = vmatmul.mubr.bf16.gmra.mrb[0].mxu0 %v2622
      %v2714 = vpop.f32.mrb[0].mxu0
      %v2715 = vadd.f32 0.0, %v2714
      %v2716 = vpop.f32.mrb[0].mxu0
      %v2717 = vpop.f32.mrb[0].mxu0
      %v2718 = vadd.f32 0.0, %v2717
      %v2719 = vpop.f32.mrb[0].mxu0
      %2720 = vmatprep.mubr.bf16.mxu0 0
      %2721 = vmatmul.mubr.bf16.gmra.mrb[0].mxu0 %v2625
      %v2722 = vpop.f32.mrb[0].mxu0
      %v2723 = vadd.f32 0.0, %v2722
      %v2724 = vpop.f32.mrb[0].mxu0
      %v2725 = vpop.f32.mrb[0].mxu0
      %v2726 = vadd.f32 0.0, %v2725
      %v2727 = vpop.f32.mrb[0].mxu0
      %2728 = vmatprep.mubr.bf16.mxu0 0
      %2729 = vmatmul.mubr.bf16.gmra.mrb[0].mxu0 %v2628
      %v2730 = vpop.f32.mrb[0].mxu0
      %v2731 = vadd.f32 0.0, %v2730
      %v2732 = vpop.f32.mrb[0].mxu0
      %v2733 = vpop.f32.mrb[0].mxu0
      %v2734 = vadd.f32 0.0, %v2733
      %v2735 = vpop.f32.mrb[0].mxu0
      %2736 = vmatprep.mubr.bf16.mxu0 0
      %2737 = vmatmul.mubr.bf16.gmra.mrb[0].mxu0 %v2631
      %v2738 = vpop.f32.mrb[0].mxu0
      %v2739 = vadd.f32 0.0, %v2738
      %v2740 = vpop.f32.mrb[0].mxu0
      %v2741 = vpop.f32.mrb[0].mxu0
      %v2742 = vadd.f32 0.0, %v2741
      %v2743 = vpop.f32.mrb[0].mxu0
      %2744 = vmatprep.mubr.bf16.mxu0 0
      %2745 = vmatmul.mubr.bf16.gmra.mrb[0].mxu0 %v2634
      %v2746 = vpop.f32.mrb[0].mxu0
      %v2747 = vadd.f32 0.0, %v2746
      %v2748 = vpop.f32.mrb[0].mxu0
      %v2749 = vpop.f32.mrb[0].mxu0
      %v2750 = vadd.f32 0.0, %v2749
      %v2751 = vpop.f32.mrb[0].mxu0
      %2752 = vmatprep.mubr.bf16.mxu0 0
      %2753 = vmatmul.mubr.bf16.gmra.mrb[0].mxu0 %v2637
      %v2754 = vpop.f32.mrb[0].mxu0
      %v2755 = vadd.f32 0.0, %v2754
      %v2756 = vpop.f32.mrb[0].mxu0
      %v2757 = vpop.f32.mrb[0].mxu0
      %v2758 = vadd.f32 0.0, %v2757
      %v2759 = vpop.f32.mrb[0].mxu0
      %2760 = vmatprep.mubr.bf16.mxu0 0
      %2761 = vmatmul.mubr.bf16.gmra.mrb[0].mxu0 %v2640
      %v2762 = vpop.f32.mrb[0].mxu0
      %v2763 = vadd.f32 0.0, %v2762
      %v2764 = vpop.f32.mrb[0].mxu0
      %v2765 = vpop.f32.mrb[0].mxu0
      %v2766 = vadd.f32 0.0, %v2765
      %v2767 = vpop.f32.mrb[0].mxu0
      %2768 = vmatprep.mubr.bf16.mxu0 0
      %2769 = vmatmul.mubr.bf16.gmra.mrb[0].mxu0 %v2643
      %v2770 = vpop.f32.mrb[0].mxu0
      %v2771 = vadd.f32 0.0, %v2770
      %v2772 = vpop.f32.mrb[0].mxu0
      %v2773 = vpop.f32.mrb[0].mxu0
      %v2774 = vadd.f32 0.0, %v2773
      %v2775 = vpop.f32.mrb[0].mxu0
      %2776 = vmatprep.mubr.bf16.mxu0 0
      %2777 = vmatmul.mubr.bf16.gmra.mrb[0].mxu0 %v2646
      %v2778 = vpop.f32.mrb[0].mxu0
      %v2779 = vadd.f32 0.0, %v2778
      %v2780 = vpop.f32.mrb[0].mxu0
      %v2781 = vpop.f32.mrb[0].mxu0
      %v2782 = vadd.f32 0.0, %v2781
      %v2783 = vpop.f32.mrb[0].mxu0
      %2784 = vmatprep.mubr.bf16.mxu0 0
      %2785 = vmatmul.mubr.bf16.gmra.mrb[0].mxu0 %v2649
      %v2786 = vpop.f32.mrb[0].mxu0
      %v2787 = vadd.f32 0.0, %v2786
      %v2788 = vpop.f32.mrb[0].mxu0
      %v2789 = vpop.f32.mrb[0].mxu0
      %v2790 = vadd.f32 0.0, %v2789
      %v2791 = vpop.f32.mrb[0].mxu0
      %2792 = vmatprep.mubr.bf16.mxu0 0
      %2793 = vmatmul.mubr.bf16.gmra.mrb[0].mxu0 %v2652
      %v2794 = vpop.f32.mrb[0].mxu0
      %v2795 = vadd.f32 0.0, %v2794
      %v2796 = vpop.f32.mrb[0].mxu0
      %v2797 = vpop.f32.mrb[0].mxu0
      %v2798 = vadd.f32 0.0, %v2797
      %v2799 = vpop.f32.mrb[0].mxu0
      %2800 = vmatprep.mubr.bf16.mxu0 0
      %2801 = vmatmul.mubr.bf16.gmra.mrb[0].mxu0 %v2655
      %v2802 = vpop.f32.mrb[0].mxu0
      %v2803 = vadd.f32 0.0, %v2802
      %v2804 = vpop.f32.mrb[0].mxu0
      %v2805 = vpop.f32.mrb[0].mxu0
      %v2806 = vadd.f32 0.0, %v2805
      %v2807 = vpop.f32.mrb[0].mxu0
      %2808 = vmatprep.mubr.bf16.mxu0 0
      %2809 = vmatmul.mubr.bf16.gmra.mrb[0].mxu0 %v2658
      %v2810 = vpop.f32.mrb[0].mxu0
      %v2811 = vadd.f32 0.0, %v2810
      %v2812 = vpop.f32.mrb[0].mxu0
      %v2813 = vpop.f32.mrb[0].mxu0
      %v2814 = vadd.f32 0.0, %v2813
      %v2815 = vpop.f32.mrb[0].mxu0
      %2816 = vmatprep.mubr.bf16.mxu0 0
      %2817 = vmatmul.mubr.bf16.gmra.mrb[0].mxu0 %v2661
      %v2818 = vpop.f32.mrb[0].mxu0
      %v2819 = vadd.f32 0.0, %v2818
      %v2820 = vpop.f32.mrb[0].mxu0
      %v2821 = vpop.f32.mrb[0].mxu0
      %v2822 = vadd.f32 0.0, %v2821
      %v2823 = vpop.f32.mrb[0].mxu0
      %2824 = vmatprep.mubr.bf16.mxu0 0
      %2825 = vmatmul.mubr.bf16.gmra.mrb[0].mxu0 %v2664
      %v2826 = vpop.f32.mrb[0].mxu0
      %v2827 = vadd.f32 0.0, %v2826
      %v2828 = vpop.f32.mrb[0].mxu0
      %v2829 = vpop.f32.mrb[0].mxu0
      %v2830 = vadd.f32 0.0, %v2829
      %v2831 = vpop.f32.mrb[0].mxu0
      %2832 = vmatprep.mubr.bf16.mxu0 0
      %2833 = vmatmul.mubr.bf16.gmra.mrb[0].mxu0 %v2667
      %v2834 = vpop.f32.mrb[0].mxu0
      %v2835 = vadd.f32 0.0, %v2834
      %v2836 = vpop.f32.mrb[0].mxu0
      %v2837 = vpop.f32.mrb[0].mxu0
      %v2838 = vadd.f32 0.0, %v2837
      %v2839 = vpop.f32.mrb[0].mxu0
      %2840 = vmatprep.mubr.bf16.mxu0 0
      %2841 = vmatmul.mubr.bf16.gmra.mrb[0].mxu0 %v2670
      %v2842 = vpop.f32.mrb[0].mxu0
      %v2843 = vadd.f32 0.0, %v2842
      %v2844 = vpop.f32.mrb[0].mxu0
      %v2845 = vpop.f32.mrb[0].mxu0
      %v2846 = vadd.f32 0.0, %v2845
      %v2847 = vpop.f32.mrb[0].mxu0
      %2848 = vdwg.mxu0
      %v2849 = vadd.f32 %v2511, %v2707
      %v2850 = vadd.f32 %v2512, %v2710
      %v2851 = vadd.f32 %v2513, %v2715
      %v2852 = vadd.f32 %v2514, %v2718
      %v2853 = vadd.f32 %v2515, %v2723
      %v2854 = vadd.f32 %v2516, %v2726
      %v2855 = vadd.f32 %v2517, %v2731
      %v2856 = vadd.f32 %v2518, %v2734
      %v2857 = vadd.f32 %v2519, %v2739
      %v2858 = vadd.f32 %v2520, %v2742
      %v2859 = vadd.f32 %v2521, %v2747
      %v2860 = vadd.f32 %v2522, %v2750
      %v2861 = vadd.f32 %v2523, %v2755
      %v2862 = vadd.f32 %v2524, %v2758
      %v2863 = vadd.f32 %v2525, %v2763
      %v2864 = vadd.f32 %v2526, %v2766
      %v2865 = vadd.f32 %v2527, %v2771
      %v2866 = vadd.f32 %v2528, %v2774
      %v2867 = vadd.f32 %v2529, %v2779
      %v2868 = vadd.f32 %v2530, %v2782
      %v2869 = vadd.f32 %v2531, %v2787
      %v2870 = vadd.f32 %v2532, %v2790
      %v2871 = vadd.f32 %v2533, %v2795
      %v2872 = vadd.f32 %v2534, %v2798
      %v2873 = vadd.f32 %v2535, %v2803
      %v2874 = vadd.f32 %v2536, %v2806
      %v2875 = vadd.f32 %v2537, %v2811
      %v2876 = vadd.f32 %v2538, %v2814
      %v2877 = vadd.f32 %v2539, %v2819
      %v2878 = vadd.f32 %v2540, %v2822
      %v2879 = vadd.f32 %v2541, %v2827
      %v2880 = vadd.f32 %v2542, %v2830
      %v2881 = vadd.f32 %v2543, %v2835
      %v2882 = vadd.f32 %v2544, %v2838
      %v2883 = vadd.f32 %v2545, %v2843
      %v2884 = vadd.f32 %v2546, %v2846
      %v2885 = vld [vmem:[%s246 + $0x26] sm:$0xff]
      %v2886 = vld [vmem:[%s246 + $0x2e] sm:$0xff]
      %v2887 = vld [vmem:[%s246 + $0x36] sm:$0xff]
      %v2888 = vld [vmem:[%s246 + $0x3e] sm:$0xff]
      %v2889 = vld [vmem:[%s246 + $0x46] sm:$0xff]
      %v2890 = vld [vmem:[%s246 + $0x4e] sm:$0xff]
      %v2891 = vld [vmem:[%s246 + $0x56] sm:$0xff]
      %v2892 = vld [vmem:[%s246 + $0x5e] sm:$0xff]
      %v2893 = vld [vmem:[%s246 + $0x66] sm:$0xff]
      %v2894 = vld [vmem:[%s246 + $0x6e] sm:$0xff]
      %v2895 = vld [vmem:[%s246 + $0x76] sm:$0xff]
      %v2896 = vld [vmem:[%s246 + $0x7e] sm:$0xff]
      %v2897 = vld [vmem:[%s246 + $0x86] sm:$0xff]
      %v2898 = vld [vmem:[%s246 + $0x8e] sm:$0xff]
      %v2899 = vld [vmem:[%s246 + $0x96] sm:$0xff]
      %v2900 = vld [vmem:[%s246 + $0x9e] sm:$0xff]
      %v2901 = vld [vmem:[%s246 + $0xa6] sm:$0xff]
      %v2902 = vld [vmem:[%s246 + $0xae] sm:$0xff]
      %v2903 = vld [vmem:[%s246 + $0xb6] sm:$0xff]
      %v2904 = vld [vmem:[%s246 + $0xbe] sm:$0xff]
      %v2905 = vld [vmem:[%s246 + $0xc6] sm:$0xff]
      %v2906 = vld [vmem:[%s246 + $0xce] sm:$0xff]
      %v2907 = vld [vmem:[%s246 + $0xd6] sm:$0xff]
      %v2908 = vld [vmem:[%s246 + $0xde] sm:$0xff]
      %v2909 = vld [vmem:[%s246 + $0xe6] sm:$0xff]
      %v2910 = vld [vmem:[%s246 + $0xee] sm:$0xff]
      %v2911 = vld [vmem:[%s246 + $0xf6] sm:$0xff]
      %v2912 = vld [vmem:[%s246 + $0xfe] sm:$0xff]
      %v2913 = vld [vmem:[%s246 + $0x106] sm:$0xff]
      %v2914 = vld [vmem:[%s246 + $0x10e] sm:$0xff]
      %v2915 = vld [vmem:[%s246 + $0x116] sm:$0xff]
      %v2916 = vld [vmem:[%s246 + $0x11e] sm:$0xff]
      %v2917 = vld [vmem:[%s246 + $0x126] sm:$0xff]
      %v2918 = vld [vmem:[%s246 + $0x12e] sm:$0xff]
      %v2919 = vld [vmem:[%s246 + $0x136] sm:$0xff]
      %v2920 = vld [vmem:[%s246 + $0x13e] sm:$0xff]
      %v2921 = vpack.c.bf16 %v2886, %v2885
      %v2922 = vpack.c.bf16 %v2888, %v2887
      %v2923 = vpack.c.bf16 %v2890, %v2889
      %v2924 = vpack.c.bf16 %v2892, %v2891
      %v2925 = vpack.c.bf16 %v2894, %v2893
      %v2926 = vpack.c.bf16 %v2896, %v2895
      %v2927 = vpack.c.bf16 %v2898, %v2897
      %v2928 = vpack.c.bf16 %v2900, %v2899
      %v2929 = vpack.c.bf16 %v2902, %v2901
      %v2930 = vpack.c.bf16 %v2904, %v2903
      %v2931 = vpack.c.bf16 %v2906, %v2905
      %v2932 = vpack.c.bf16 %v2908, %v2907
      %v2933 = vpack.c.bf16 %v2910, %v2909
      %v2934 = vpack.c.bf16 %v2912, %v2911
      %v2935 = vpack.c.bf16 %v2914, %v2913
      %v2936 = vpack.c.bf16 %v2916, %v2915
      %v2937 = vpack.c.bf16 %v2918, %v2917
      %v2938 = vpack.c.bf16 %v2920, %v2919
      %s2939 = scalar_lea.vmem %s1, 128
      %v2940 = vld [vmem:[%s2939] sm:$0xf]
      %v2941 = vld [vmem:[%s2939 + $0x4] sm:$0xf]
      %v2942 = vld [vmem:[%s2939 + $0x8] sm:$0xf]
      %v2943 = vld [vmem:[%s2939 + $0xc] sm:$0xf]
      %v2948 = vunpack.c.l.b16 %v2940
      %v2949 = vunpack.c.l.b16 %v2941
      %v2950 = vunpack.c.l.b16 %v2942
      %v2951 = vunpack.c.l.b16 %v2943
      %v2952 = vpack.c.b16 %v2949, %v2948
      %v2953 = vpack.c.b16 %v2951, %v2950
      %v2957 = vsel %vm382, %v2921, 0
      %v2960 = vsel %vm382, %v2922, 0
      %v2963 = vsel %vm382, %v2923, 0
      %v2966 = vsel %vm382, %v2924, 0
      %v2969 = vsel %vm382, %v2925, 0
      %v2972 = vsel %vm382, %v2926, 0
      %v2975 = vsel %vm382, %v2927, 0
      %v2978 = vsel %vm382, %v2928, 0
      %v2981 = vsel %vm382, %v2929, 0
      %v2984 = vsel %vm382, %v2930, 0
      %v2987 = vsel %vm382, %v2931, 0
      %v2990 = vsel %vm382, %v2932, 0
      %v2993 = vsel %vm382, %v2933, 0
      %v2996 = vsel %vm382, %v2934, 0
      %v2999 = vsel %vm382, %v2935, 0
      %v3002 = vsel %vm382, %v2936, 0
      %v3005 = vsel %vm382, %v2937, 0
      %v3008 = vsel %vm382, %v2938, 0
      %3010 = vmatprep.subr.bf16.mxu0 0
      %3011 = vmatpush1.bf16.msra.mxu0 %v2952
      %3012 = vmatprep.subr.bf16.mxu0 0
      %3013 = vmatpush1.bf16.msra.mxu0 %v2953
      %3014 = vmatprep.subr.bf16.mxu0 0
      %3015 = vmatpush1.bf16.msra.mxu0 0
      %3016 = vmatprep.subr.bf16.mxu0 0
      %3017 = vmatpush1.bf16.msra.mxu0 0
      %3018 = vmatprep.subr.bf16.mxu0 0
      %3019 = vmatpush1.bf16.msra.mxu0 0
      %3020 = vmatprep.subr.bf16.mxu0 0
      %3021 = vmatpush1.bf16.msra.mxu0 0
      %3022 = vmatprep.subr.bf16.mxu0 0
      %3023 = vmatpush1.bf16.msra.mxu0 0
      %3024 = vmatprep.subr.bf16.mxu0 0
      %3025 = vmatpush1.bf16.msra.mxu0 0
      %3026 = vmatprep.subr.bf16.mxu0 0
      %3027 = vmatpush1.bf16.msra.mxu0 0
      %3028 = vmatprep.subr.bf16.mxu0 0
      %3029 = vmatpush1.bf16.msra.mxu0 0
      %3030 = vmatprep.subr.bf16.mxu0 0
      %3031 = vmatpush1.bf16.msra.mxu0 0
      %3032 = vmatprep.subr.bf16.mxu0 0
      %3033 = vmatpush1.bf16.msra.mxu0 0
      %3034 = vmatprep.subr.bf16.mxu0 0
      %3035 = vmatpush1.bf16.msra.mxu0 0
      %3036 = vmatprep.subr.bf16.mxu0 0
      %3037 = vmatpush1.bf16.msra.mxu0 0
      %3038 = vmatprep.subr.bf16.mxu0 0
      %3039 = vmatpush1.bf16.msra.mxu0 0
      %3040 = vmatprep.subr.bf16.mxu0 0
      %3041 = vmatpush1.bf16.msra.mxu0 0
      %3042 = vmatprep.mubr.bf16.mxu0 0
      %3043 = vmatmul.mubr.bf16.gmra.mrb[0].mxu0 %v2957
      %v3044 = vpop.f32.mrb[0].mxu0
      %v3045 = vadd.f32 0.0, %v3044
      %v3046 = vpop.f32.mrb[0].mxu0
      %v3047 = vpop.f32.mrb[0].mxu0
      %v3048 = vadd.f32 0.0, %v3047
      %v3049 = vpop.f32.mrb[0].mxu0
      %3050 = vmatprep.mubr.bf16.mxu0 0
      %3051 = vmatmul.mubr.bf16.gmra.mrb[0].mxu0 %v2960
      %v3052 = vpop.f32.mrb[0].mxu0
      %v3053 = vadd.f32 0.0, %v3052
      %v3054 = vpop.f32.mrb[0].mxu0
      %v3055 = vpop.f32.mrb[0].mxu0
      %v3056 = vadd.f32 0.0, %v3055
      %v3057 = vpop.f32.mrb[0].mxu0
      %3058 = vmatprep.mubr.bf16.mxu0 0
      %3059 = vmatmul.mubr.bf16.gmra.mrb[0].mxu0 %v2963
      %v3060 = vpop.f32.mrb[0].mxu0
      %v3061 = vadd.f32 0.0, %v3060
      %v3062 = vpop.f32.mrb[0].mxu0
      %v3063 = vpop.f32.mrb[0].mxu0
      %v3064 = vadd.f32 0.0, %v3063
      %v3065 = vpop.f32.mrb[0].mxu0
      %3066 = vmatprep.mubr.bf16.mxu0 0
      %3067 = vmatmul.mubr.bf16.gmra.mrb[0].mxu0 %v2966
      %v3068 = vpop.f32.mrb[0].mxu0
      %v3069 = vadd.f32 0.0, %v3068
      %v3070 = vpop.f32.mrb[0].mxu0
      %v3071 = vpop.f32.mrb[0].mxu0
      %v3072 = vadd.f32 0.0, %v3071
      %v3073 = vpop.f32.mrb[0].mxu0
      %3074 = vmatprep.mubr.bf16.mxu0 0
      %3075 = vmatmul.mubr.bf16.gmra.mrb[0].mxu0 %v2969
      %v3076 = vpop.f32.mrb[0].mxu0
      %v3077 = vadd.f32 0.0, %v3076
      %v3078 = vpop.f32.mrb[0].mxu0
      %v3079 = vpop.f32.mrb[0].mxu0
      %v3080 = vadd.f32 0.0, %v3079
      %v3081 = vpop.f32.mrb[0].mxu0
      %3082 = vmatprep.mubr.bf16.mxu0 0
      %3083 = vmatmul.mubr.bf16.gmra.mrb[0].mxu0 %v2972
      %v3084 = vpop.f32.mrb[0].mxu0
      %v3085 = vadd.f32 0.0, %v3084
      %v3086 = vpop.f32.mrb[0].mxu0
      %v3087 = vpop.f32.mrb[0].mxu0
      %v3088 = vadd.f32 0.0, %v3087
      %v3089 = vpop.f32.mrb[0].mxu0
      %3090 = vmatprep.mubr.bf16.mxu0 0
      %3091 = vmatmul.mubr.bf16.gmra.mrb[0].mxu0 %v2975
      %v3092 = vpop.f32.mrb[0].mxu0
      %v3093 = vadd.f32 0.0, %v3092
      %v3094 = vpop.f32.mrb[0].mxu0
      %v3095 = vpop.f32.mrb[0].mxu0
      %v3096 = vadd.f32 0.0, %v3095
      %v3097 = vpop.f32.mrb[0].mxu0
      %3098 = vmatprep.mubr.bf16.mxu0 0
      %3099 = vmatmul.mubr.bf16.gmra.mrb[0].mxu0 %v2978
      %v3100 = vpop.f32.mrb[0].mxu0
      %v3101 = vadd.f32 0.0, %v3100
      %v3102 = vpop.f32.mrb[0].mxu0
      %v3103 = vpop.f32.mrb[0].mxu0
      %v3104 = vadd.f32 0.0, %v3103
      %v3105 = vpop.f32.mrb[0].mxu0
      %3106 = vmatprep.mubr.bf16.mxu0 0
      %3107 = vmatmul.mubr.bf16.gmra.mrb[0].mxu0 %v2981
      %v3108 = vpop.f32.mrb[0].mxu0
      %v3109 = vadd.f32 0.0, %v3108
      %v3110 = vpop.f32.mrb[0].mxu0
      %v3111 = vpop.f32.mrb[0].mxu0
      %v3112 = vadd.f32 0.0, %v3111
      %v3113 = vpop.f32.mrb[0].mxu0
      %3114 = vmatprep.mubr.bf16.mxu0 0
      %3115 = vmatmul.mubr.bf16.gmra.mrb[0].mxu0 %v2984
      %v3116 = vpop.f32.mrb[0].mxu0
      %v3117 = vadd.f32 0.0, %v3116
      %v3118 = vpop.f32.mrb[0].mxu0
      %v3119 = vpop.f32.mrb[0].mxu0
      %v3120 = vadd.f32 0.0, %v3119
      %v3121 = vpop.f32.mrb[0].mxu0
      %3122 = vmatprep.mubr.bf16.mxu0 0
      %3123 = vmatmul.mubr.bf16.gmra.mrb[0].mxu0 %v2987
      %v3124 = vpop.f32.mrb[0].mxu0
      %v3125 = vadd.f32 0.0, %v3124
      %v3126 = vpop.f32.mrb[0].mxu0
      %v3127 = vpop.f32.mrb[0].mxu0
      %v3128 = vadd.f32 0.0, %v3127
      %v3129 = vpop.f32.mrb[0].mxu0
      %3130 = vmatprep.mubr.bf16.mxu0 0
      %3131 = vmatmul.mubr.bf16.gmra.mrb[0].mxu0 %v2990
      %v3132 = vpop.f32.mrb[0].mxu0
      %v3133 = vadd.f32 0.0, %v3132
      %v3134 = vpop.f32.mrb[0].mxu0
      %v3135 = vpop.f32.mrb[0].mxu0
      %v3136 = vadd.f32 0.0, %v3135
      %v3137 = vpop.f32.mrb[0].mxu0
      %3138 = vmatprep.mubr.bf16.mxu0 0
      %3139 = vmatmul.mubr.bf16.gmra.mrb[0].mxu0 %v2993
      %v3140 = vpop.f32.mrb[0].mxu0
      %v3141 = vadd.f32 0.0, %v3140
      %v3142 = vpop.f32.mrb[0].mxu0
      %v3143 = vpop.f32.mrb[0].mxu0
      %v3144 = vadd.f32 0.0, %v3143
      %v3145 = vpop.f32.mrb[0].mxu0
      %3146 = vmatprep.mubr.bf16.mxu0 0
      %3147 = vmatmul.mubr.bf16.gmra.mrb[0].mxu0 %v2996
      %v3148 = vpop.f32.mrb[0].mxu0
      %v3149 = vadd.f32 0.0, %v3148
      %v3150 = vpop.f32.mrb[0].mxu0
      %v3151 = vpop.f32.mrb[0].mxu0
      %v3152 = vadd.f32 0.0, %v3151
      %v3153 = vpop.f32.mrb[0].mxu0
      %3154 = vmatprep.mubr.bf16.mxu0 0
      %3155 = vmatmul.mubr.bf16.gmra.mrb[0].mxu0 %v2999
      %v3156 = vpop.f32.mrb[0].mxu0
      %v3157 = vadd.f32 0.0, %v3156
      %v3158 = vpop.f32.mrb[0].mxu0
      %v3159 = vpop.f32.mrb[0].mxu0
      %v3160 = vadd.f32 0.0, %v3159
      %v3161 = vpop.f32.mrb[0].mxu0
      %3162 = vmatprep.mubr.bf16.mxu0 0
      %3163 = vmatmul.mubr.bf16.gmra.mrb[0].mxu0 %v3002
      %v3164 = vpop.f32.mrb[0].mxu0
      %v3165 = vadd.f32 0.0, %v3164
      %v3166 = vpop.f32.mrb[0].mxu0
      %v3167 = vpop.f32.mrb[0].mxu0
      %v3168 = vadd.f32 0.0, %v3167
      %v3169 = vpop.f32.mrb[0].mxu0
      %3170 = vmatprep.mubr.bf16.mxu0 0
      %3171 = vmatmul.mubr.bf16.gmra.mrb[0].mxu0 %v3005
      %v3172 = vpop.f32.mrb[0].mxu0
      %v3173 = vadd.f32 0.0, %v3172
      %v3174 = vpop.f32.mrb[0].mxu0
      %v3175 = vpop.f32.mrb[0].mxu0
      %v3176 = vadd.f32 0.0, %v3175
      %v3177 = vpop.f32.mrb[0].mxu0
      %3178 = vmatprep.mubr.bf16.mxu0 0
      %3179 = vmatmul.mubr.bf16.gmra.mrb[0].mxu0 %v3008
      %v3180 = vpop.f32.mrb[0].mxu0
      %v3181 = vadd.f32 0.0, %v3180
      %v3182 = vpop.f32.mrb[0].mxu0
      %v3183 = vpop.f32.mrb[0].mxu0
      %v3184 = vadd.f32 0.0, %v3183
      %v3185 = vpop.f32.mrb[0].mxu0
      %3186 = vdwg.mxu0
      %v3187 = vadd.f32 %v2849, %v3045
      %v3188 = vadd.f32 %v2850, %v3048
      %v3189 = vadd.f32 %v2851, %v3053
      %v3190 = vadd.f32 %v2852, %v3056
      %v3191 = vadd.f32 %v2853, %v3061
      %v3192 = vadd.f32 %v2854, %v3064
      %v3193 = vadd.f32 %v2855, %v3069
      %v3194 = vadd.f32 %v2856, %v3072
      %v3195 = vadd.f32 %v2857, %v3077
      %v3196 = vadd.f32 %v2858, %v3080
      %v3197 = vadd.f32 %v2859, %v3085
      %v3198 = vadd.f32 %v2860, %v3088
      %v3199 = vadd.f32 %v2861, %v3093
      %v3200 = vadd.f32 %v2862, %v3096
      %v3201 = vadd.f32 %v2863, %v3101
      %v3202 = vadd.f32 %v2864, %v3104
      %v3203 = vadd.f32 %v2865, %v3109
      %v3204 = vadd.f32 %v2866, %v3112
      %v3205 = vadd.f32 %v2867, %v3117
      %v3206 = vadd.f32 %v2868, %v3120
      %v3207 = vadd.f32 %v2869, %v3125
      %v3208 = vadd.f32 %v2870, %v3128
      %v3209 = vadd.f32 %v2871, %v3133
      %v3210 = vadd.f32 %v2872, %v3136
      %v3211 = vadd.f32 %v2873, %v3141
      %v3212 = vadd.f32 %v2874, %v3144
      %v3213 = vadd.f32 %v2875, %v3149
      %v3214 = vadd.f32 %v2876, %v3152
      %v3215 = vadd.f32 %v2877, %v3157
      %v3216 = vadd.f32 %v2878, %v3160
      %v3217 = vadd.f32 %v2879, %v3165
      %v3218 = vadd.f32 %v2880, %v3168
      %v3219 = vadd.f32 %v2881, %v3173
      %v3220 = vadd.f32 %v2882, %v3176
      %v3221 = vadd.f32 %v2883, %v3181
      %v3222 = vadd.f32 %v2884, %v3184
      %v3223 = vld [vmem:[%s2] sm:$0x1]
      %v3225 = vlaneseq
      %v3226 = vshrl.u32 %v3225, 7
      %v3227 = vsub.s32 0, %v3226
      %v3228 = vrot.slane %v3223, %v3227
      %v3230 = vmul.f32 %v3187, %v3228
      %v3231 = vmul.f32 %v3188, %v3228
      %v3232 = vmul.f32 %v3189, %v3228
      %v3233 = vmul.f32 %v3190, %v3228
      %v3234 = vmul.f32 %v3191, %v3228
      %v3235 = vmul.f32 %v3192, %v3228
      %v3236 = vmul.f32 %v3193, %v3228
      %v3237 = vmul.f32 %v3194, %v3228
      %v3238 = vmul.f32 %v3195, %v3228
      %v3239 = vmul.f32 %v3196, %v3228
      %v3240 = vmul.f32 %v3197, %v3228
      %v3241 = vmul.f32 %v3198, %v3228
      %v3242 = vmul.f32 %v3199, %v3228
      %v3243 = vmul.f32 %v3200, %v3228
      %v3244 = vmul.f32 %v3201, %v3228
      %v3245 = vmul.f32 %v3202, %v3228
      %v3246 = vmul.f32 %v3203, %v3228
      %v3247 = vmul.f32 %v3204, %v3228
      %v3248 = vmul.f32 %v3205, %v3228
      %v3249 = vmul.f32 %v3206, %v3228
      %v3250 = vmul.f32 %v3207, %v3228
      %v3251 = vmul.f32 %v3208, %v3228
      %v3252 = vmul.f32 %v3209, %v3228
      %v3253 = vmul.f32 %v3210, %v3228
      %v3254 = vmul.f32 %v3211, %v3228
      %v3255 = vmul.f32 %v3212, %v3228
      %v3256 = vmul.f32 %v3213, %v3228
      %v3257 = vmul.f32 %v3214, %v3228
      %v3258 = vmul.f32 %v3215, %v3228
      %v3259 = vmul.f32 %v3216, %v3228
      %v3260 = vmul.f32 %v3217, %v3228
      %v3261 = vmul.f32 %v3218, %v3228
      %v3262 = vmul.f32 %v3219, %v3228
      %v3263 = vmul.f32 %v3220, %v3228
      %v3264 = vmul.f32 %v3221, %v3228
      %v3265 = vmul.f32 %v3222, %v3228
      %v3266 = vld [vmem:[%s3] sm:$0x1]
      %v3268 = vlaneseq
      %v3269 = vshrl.u32 %v3268, 7
      %v3270 = vsub.s32 0, %v3269
      %v3271 = vrot.slane %v3266, %v3270
      %v3273 = vadd.f32 %v3230, %v3271
      %v3274 = vadd.f32 %v3231, %v3271
      %v3275 = vadd.f32 %v3232, %v3271
      %v3276 = vadd.f32 %v3233, %v3271
      %v3277 = vadd.f32 %v3234, %v3271
      %v3278 = vadd.f32 %v3235, %v3271
      %v3279 = vadd.f32 %v3236, %v3271
      %v3280 = vadd.f32 %v3237, %v3271
      %v3281 = vadd.f32 %v3238, %v3271
      %v3282 = vadd.f32 %v3239, %v3271
      %v3283 = vadd.f32 %v3240, %v3271
      %v3284 = vadd.f32 %v3241, %v3271
      %v3285 = vadd.f32 %v3242, %v3271
      %v3286 = vadd.f32 %v3243, %v3271
      %v3287 = vadd.f32 %v3244, %v3271
      %v3288 = vadd.f32 %v3245, %v3271
      %v3289 = vadd.f32 %v3246, %v3271
      %v3290 = vadd.f32 %v3247, %v3271
      %v3291 = vadd.f32 %v3248, %v3271
      %v3292 = vadd.f32 %v3249, %v3271
      %v3293 = vadd.f32 %v3250, %v3271
      %v3294 = vadd.f32 %v3251, %v3271
      %v3295 = vadd.f32 %v3252, %v3271
      %v3296 = vadd.f32 %v3253, %v3271
      %v3297 = vadd.f32 %v3254, %v3271
      %v3298 = vadd.f32 %v3255, %v3271
      %v3299 = vadd.f32 %v3256, %v3271
      %v3300 = vadd.f32 %v3257, %v3271
      %v3301 = vadd.f32 %v3258, %v3271
      %v3302 = vadd.f32 %v3259, %v3271
      %v3303 = vadd.f32 %v3260, %v3271
      %v3304 = vadd.f32 %v3261, %v3271
      %v3305 = vadd.f32 %v3262, %v3271
      %v3306 = vadd.f32 %v3263, %v3271
      %v3307 = vadd.f32 %v3264, %v3271
      %v3308 = vadd.f32 %v3265, %v3271
      %v3309 = vmax.f32 %v3273, 0.0
      %v3310 = vmax.f32 %v3274, 0.0
      %v3311 = vmax.f32 %v3275, 0.0
      %v3312 = vmax.f32 %v3276, 0.0
      %v3313 = vmax.f32 %v3277, 0.0
      %v3314 = vmax.f32 %v3278, 0.0
      %v3315 = vmax.f32 %v3279, 0.0
      %v3316 = vmax.f32 %v3280, 0.0
      %v3317 = vmax.f32 %v3281, 0.0
      %v3318 = vmax.f32 %v3282, 0.0
      %v3319 = vmax.f32 %v3283, 0.0
      %v3320 = vmax.f32 %v3284, 0.0
      %v3321 = vmax.f32 %v3285, 0.0
      %v3322 = vmax.f32 %v3286, 0.0
      %v3323 = vmax.f32 %v3287, 0.0
      %v3324 = vmax.f32 %v3288, 0.0
      %v3325 = vmax.f32 %v3289, 0.0
      %v3326 = vmax.f32 %v3290, 0.0
      %v3327 = vmax.f32 %v3291, 0.0
      %v3328 = vmax.f32 %v3292, 0.0
      %v3329 = vmax.f32 %v3293, 0.0
      %v3330 = vmax.f32 %v3294, 0.0
      %v3331 = vmax.f32 %v3295, 0.0
      %v3332 = vmax.f32 %v3296, 0.0
      %v3333 = vmax.f32 %v3297, 0.0
      %v3334 = vmax.f32 %v3298, 0.0
      %v3335 = vmax.f32 %v3299, 0.0
      %v3336 = vmax.f32 %v3300, 0.0
      %v3337 = vmax.f32 %v3301, 0.0
      %v3338 = vmax.f32 %v3302, 0.0
      %v3339 = vmax.f32 %v3303, 0.0
      %v3340 = vmax.f32 %v3304, 0.0
      %v3341 = vmax.f32 %v3305, 0.0
      %v3342 = vmax.f32 %v3306, 0.0
      %v3343 = vmax.f32 %v3307, 0.0
      %v3344 = vmax.f32 %v3308, 0.0
      %v3345 = vpack.c.bf16 %v3310, %v3309
      %v3346 = vpack.c.bf16 %v3312, %v3311
      %v3347 = vpack.c.bf16 %v3314, %v3313
      %v3348 = vpack.c.bf16 %v3316, %v3315
      %v3349 = vpack.c.bf16 %v3318, %v3317
      %v3350 = vpack.c.bf16 %v3320, %v3319
      %v3351 = vpack.c.bf16 %v3322, %v3321
      %v3352 = vpack.c.bf16 %v3324, %v3323
      %v3353 = vpack.c.bf16 %v3326, %v3325
      %v3354 = vpack.c.bf16 %v3328, %v3327
      %v3355 = vpack.c.bf16 %v3330, %v3329
      %v3356 = vpack.c.bf16 %v3332, %v3331
      %v3357 = vpack.c.bf16 %v3334, %v3333
      %v3358 = vpack.c.bf16 %v3336, %v3335
      %v3359 = vpack.c.bf16 %v3338, %v3337
      %v3360 = vpack.c.bf16 %v3340, %v3339
      %v3361 = vpack.c.bf16 %v3342, %v3341
      %v3362 = vpack.c.bf16 %v3344, %v3343
      %v3363 = vld [vmem:[%s4] sm:$0xf]
      %v3364 = vld [vmem:[%s4 + $0x4] sm:$0xf]
      %v3365 = vld [vmem:[%s4 + $0x8] sm:$0xf]
      %v3366 = vld [vmem:[%s4 + $0xc] sm:$0xf]
      %v3367 = vld [vmem:[%s5] sm:$0x1]
      %v3369 = vlaneseq
      %v3370 = vshrl.u32 %v3369, 7
      %v3371 = vsub.s32 0, %v3370
      %v3372 = vrot.slane %v3367, %v3371
      %v3378 = vunpack.c.l.b16 %v3363
      %v3379 = vunpack.c.l.b16 %v3364
      %v3380 = vunpack.c.l.b16 %v3365
      %v3381 = vunpack.c.l.b16 %v3366
      %v3382 = vpack.c.b16 %v3379, %v3378
      %v3383 = vpack.c.b16 %v3381, %v3380
      %v3387 = vsel %vm382, %v3345, 0
      %v3390 = vsel %vm382, %v3346, 0
      %v3393 = vsel %vm382, %v3347, 0
      %v3396 = vsel %vm382, %v3348, 0
      %v3399 = vsel %vm382, %v3349, 0
      %v3402 = vsel %vm382, %v3350, 0
      %v3405 = vsel %vm382, %v3351, 0
      %v3408 = vsel %vm382, %v3352, 0
      %v3411 = vsel %vm382, %v3353, 0
      %v3414 = vsel %vm382, %v3354, 0
      %v3417 = vsel %vm382, %v3355, 0
      %v3420 = vsel %vm382, %v3356, 0
      %v3423 = vsel %vm382, %v3357, 0
      %v3426 = vsel %vm382, %v3358, 0
      %v3429 = vsel %vm382, %v3359, 0
      %v3432 = vsel %vm382, %v3360, 0
      %v3435 = vsel %vm382, %v3361, 0
      %v3438 = vsel %vm382, %v3362, 0
      %3440 = vmatprep.subr.bf16.mxu0 0
      %3441 = vmatpush1.bf16.msra.mxu0 %v3382
      %3442 = vmatprep.subr.bf16.mxu0 0
      %3443 = vmatpush1.bf16.msra.mxu0 %v3383
      %3444 = vmatprep.subr.bf16.mxu0 0
      %3445 = vmatpush1.bf16.msra.mxu0 0
      %3446 = vmatprep.subr.bf16.mxu0 0
      %3447 = vmatpush1.bf16.msra.mxu0 0
      %3448 = vmatprep.subr.bf16.mxu0 0
      %3449 = vmatpush1.bf16.msra.mxu0 0
      %3450 = vmatprep.subr.bf16.mxu0 0
      %3451 = vmatpush1.bf16.msra.mxu0 0
      %3452 = vmatprep.subr.bf16.mxu0 0
      %3453 = vmatpush1.bf16.msra.mxu0 0
      %3454 = vmatprep.subr.bf16.mxu0 0
      %3455 = vmatpush1.bf16.msra.mxu0 0
      %3456 = vmatprep.subr.bf16.mxu0 0
      %3457 = vmatpush1.bf16.msra.mxu0 0
      %3458 = vmatprep.subr.bf16.mxu0 0
      %3459 = vmatpush1.bf16.msra.mxu0 0
      %3460 = vmatprep.subr.bf16.mxu0 0
      %3461 = vmatpush1.bf16.msra.mxu0 0
      %3462 = vmatprep.subr.bf16.mxu0 0
      %3463 = vmatpush1.bf16.msra.mxu0 0
      %3464 = vmatprep.subr.bf16.mxu0 0
      %3465 = vmatpush1.bf16.msra.mxu0 0
      %3466 = vmatprep.subr.bf16.mxu0 0
      %3467 = vmatpush1.bf16.msra.mxu0 0
      %3468 = vmatprep.subr.bf16.mxu0 0
      %3469 = vmatpush1.bf16.msra.mxu0 0
      %3470 = vmatprep.subr.bf16.mxu0 0
      %3471 = vmatpush1.bf16.msra.mxu0 0
      %3472 = vmatprep.mubr.bf16.mxu0 0
      %3473 = vmatmul.mubr.bf16.gmra.mrb[0].mxu0 %v3387
      %v3474 = vpop.f32.mrb[0].mxu0
      %v3475 = vadd.f32 %v3372, %v3474
      %v3476 = vpop.f32.mrb[0].mxu0
      %v3477 = vpop.f32.mrb[0].mxu0
      %v3478 = vadd.f32 %v3372, %v3477
      %v3479 = vpop.f32.mrb[0].mxu0
      %3480 = vmatprep.mubr.bf16.mxu0 0
      %3481 = vmatmul.mubr.bf16.gmra.mrb[0].mxu0 %v3390
      %v3482 = vpop.f32.mrb[0].mxu0
      %v3483 = vadd.f32 %v3372, %v3482
      %v3484 = vpop.f32.mrb[0].mxu0
      %v3485 = vpop.f32.mrb[0].mxu0
      %v3486 = vadd.f32 %v3372, %v3485
      %v3487 = vpop.f32.mrb[0].mxu0
      %3488 = vmatprep.mubr.bf16.mxu0 0
      %3489 = vmatmul.mubr.bf16.gmra.mrb[0].mxu0 %v3393
      %v3490 = vpop.f32.mrb[0].mxu0
      %v3491 = vadd.f32 %v3372, %v3490
      %v3492 = vpop.f32.mrb[0].mxu0
      %v3493 = vpop.f32.mrb[0].mxu0
      %v3494 = vadd.f32 %v3372, %v3493
      %v3495 = vpop.f32.mrb[0].mxu0
      %3496 = vmatprep.mubr.bf16.mxu0 0
      %3497 = vmatmul.mubr.bf16.gmra.mrb[0].mxu0 %v3396
      %v3498 = vpop.f32.mrb[0].mxu0
      %v3499 = vadd.f32 %v3372, %v3498
      %v3500 = vpop.f32.mrb[0].mxu0
      %v3501 = vpop.f32.mrb[0].mxu0
      %v3502 = vadd.f32 %v3372, %v3501
      %v3503 = vpop.f32.mrb[0].mxu0
      %3504 = vmatprep.mubr.bf16.mxu0 0
      %3505 = vmatmul.mubr.bf16.gmra.mrb[0].mxu0 %v3399
      %v3506 = vpop.f32.mrb[0].mxu0
      %v3507 = vadd.f32 %v3372, %v3506
      %v3508 = vpop.f32.mrb[0].mxu0
      %v3509 = vpop.f32.mrb[0].mxu0
      %v3510 = vadd.f32 %v3372, %v3509
      %v3511 = vpop.f32.mrb[0].mxu0
      %3512 = vmatprep.mubr.bf16.mxu0 0
      %3513 = vmatmul.mubr.bf16.gmra.mrb[0].mxu0 %v3402
      %v3514 = vpop.f32.mrb[0].mxu0
      %v3515 = vadd.f32 %v3372, %v3514
      %v3516 = vpop.f32.mrb[0].mxu0
      %v3517 = vpop.f32.mrb[0].mxu0
      %v3518 = vadd.f32 %v3372, %v3517
      %v3519 = vpop.f32.mrb[0].mxu0
      %3520 = vmatprep.mubr.bf16.mxu0 0
      %3521 = vmatmul.mubr.bf16.gmra.mrb[0].mxu0 %v3405
      %v3522 = vpop.f32.mrb[0].mxu0
      %v3523 = vadd.f32 %v3372, %v3522
      %v3524 = vpop.f32.mrb[0].mxu0
      %v3525 = vpop.f32.mrb[0].mxu0
      %v3526 = vadd.f32 %v3372, %v3525
      %v3527 = vpop.f32.mrb[0].mxu0
      %3528 = vmatprep.mubr.bf16.mxu0 0
      %3529 = vmatmul.mubr.bf16.gmra.mrb[0].mxu0 %v3408
      %v3530 = vpop.f32.mrb[0].mxu0
      %v3531 = vadd.f32 %v3372, %v3530
      %v3532 = vpop.f32.mrb[0].mxu0
      %v3533 = vpop.f32.mrb[0].mxu0
      %v3534 = vadd.f32 %v3372, %v3533
      %v3535 = vpop.f32.mrb[0].mxu0
      %3536 = vmatprep.mubr.bf16.mxu0 0
      %3537 = vmatmul.mubr.bf16.gmra.mrb[0].mxu0 %v3411
      %v3538 = vpop.f32.mrb[0].mxu0
      %v3539 = vadd.f32 %v3372, %v3538
      %v3540 = vpop.f32.mrb[0].mxu0
      %v3541 = vpop.f32.mrb[0].mxu0
      %v3542 = vadd.f32 %v3372, %v3541
      %v3543 = vpop.f32.mrb[0].mxu0
      %3544 = vmatprep.mubr.bf16.mxu0 0
      %3545 = vmatmul.mubr.bf16.gmra.mrb[0].mxu0 %v3414
      %v3546 = vpop.f32.mrb[0].mxu0
      %v3547 = vadd.f32 %v3372, %v3546
      %v3548 = vpop.f32.mrb[0].mxu0
      %v3549 = vpop.f32.mrb[0].mxu0
      %v3550 = vadd.f32 %v3372, %v3549
      %v3551 = vpop.f32.mrb[0].mxu0
      %3552 = vmatprep.mubr.bf16.mxu0 0
      %3553 = vmatmul.mubr.bf16.gmra.mrb[0].mxu0 %v3417
      %v3554 = vpop.f32.mrb[0].mxu0
      %v3555 = vadd.f32 %v3372, %v3554
      %v3556 = vpop.f32.mrb[0].mxu0
      %v3557 = vpop.f32.mrb[0].mxu0
      %v3558 = vadd.f32 %v3372, %v3557
      %v3559 = vpop.f32.mrb[0].mxu0
      %3560 = vmatprep.mubr.bf16.mxu0 0
      %3561 = vmatmul.mubr.bf16.gmra.mrb[0].mxu0 %v3420
      %v3562 = vpop.f32.mrb[0].mxu0
      %v3563 = vadd.f32 %v3372, %v3562
      %v3564 = vpop.f32.mrb[0].mxu0
      %v3565 = vpop.f32.mrb[0].mxu0
      %v3566 = vadd.f32 %v3372, %v3565
      %v3567 = vpop.f32.mrb[0].mxu0
      %3568 = vmatprep.mubr.bf16.mxu0 0
      %3569 = vmatmul.mubr.bf16.gmra.mrb[0].mxu0 %v3423
      %v3570 = vpop.f32.mrb[0].mxu0
      %v3571 = vadd.f32 %v3372, %v3570
      %v3572 = vpop.f32.mrb[0].mxu0
      %v3573 = vpop.f32.mrb[0].mxu0
      %v3574 = vadd.f32 %v3372, %v3573
      %v3575 = vpop.f32.mrb[0].mxu0
      %3576 = vmatprep.mubr.bf16.mxu0 0
      %3577 = vmatmul.mubr.bf16.gmra.mrb[0].mxu0 %v3426
      %v3578 = vpop.f32.mrb[0].mxu0
      %v3579 = vadd.f32 %v3372, %v3578
      %v3580 = vpop.f32.mrb[0].mxu0
      %v3581 = vpop.f32.mrb[0].mxu0
      %v3582 = vadd.f32 %v3372, %v3581
      %v3583 = vpop.f32.mrb[0].mxu0
      %3584 = vmatprep.mubr.bf16.mxu0 0
      %3585 = vmatmul.mubr.bf16.gmra.mrb[0].mxu0 %v3429
      %v3586 = vpop.f32.mrb[0].mxu0
      %v3587 = vadd.f32 %v3372, %v3586
      %v3588 = vpop.f32.mrb[0].mxu0
      %v3589 = vpop.f32.mrb[0].mxu0
      %v3590 = vadd.f32 %v3372, %v3589
      %v3591 = vpop.f32.mrb[0].mxu0
      %3592 = vmatprep.mubr.bf16.mxu0 0
      %3593 = vmatmul.mubr.bf16.gmra.mrb[0].mxu0 %v3432
      %v3594 = vpop.f32.mrb[0].mxu0
      %v3595 = vadd.f32 %v3372, %v3594
      %v3596 = vpop.f32.mrb[0].mxu0
      %v3597 = vpop.f32.mrb[0].mxu0
      %v3598 = vadd.f32 %v3372, %v3597
      %v3599 = vpop.f32.mrb[0].mxu0
      %3600 = vmatprep.mubr.bf16.mxu0 0
      %3601 = vmatmul.mubr.bf16.gmra.mrb[0].mxu0 %v3435
      %v3602 = vpop.f32.mrb[0].mxu0
      %v3603 = vadd.f32 %v3372, %v3602
      %v3604 = vpop.f32.mrb[0].mxu0
      %v3605 = vpop.f32.mrb[0].mxu0
      %v3606 = vadd.f32 %v3372, %v3605
      %v3607 = vpop.f32.mrb[0].mxu0
      %3608 = vmatprep.mubr.bf16.mxu0 0
      %3609 = vmatmul.mubr.bf16.gmra.mrb[0].mxu0 %v3438
      %v3610 = vpop.f32.mrb[0].mxu0
      %v3611 = vadd.f32 %v3372, %v3610
      %v3612 = vpop.f32.mrb[0].mxu0
      %v3613 = vpop.f32.mrb[0].mxu0
      %v3614 = vadd.f32 %v3372, %v3613
      %v3615 = vpop.f32.mrb[0].mxu0
      %3616 = vdwg.mxu0
      %vm3617 = vcmask 293888
      %3618 = vst.msk [vmem:[%s251] sm:$0xff] %vm3617, %v3475
      %3619 = vst.msk [vmem:[%s251 + $0x8] sm:$0xff] %vm3617, %v3478
      %3620 = vst.msk [vmem:[%s251 + $0x10] sm:$0xff] %vm3617, %v3483
      %3621 = vst.msk [vmem:[%s251 + $0x18] sm:$0xff] %vm3617, %v3486
      %3622 = vst.msk [vmem:[%s251 + $0x20] sm:$0xff] %vm3617, %v3491
      %3623 = vst.msk [vmem:[%s251 + $0x28] sm:$0xff] %vm3617, %v3494
      %3624 = vst.msk [vmem:[%s251 + $0x30] sm:$0xff] %vm3617, %v3499
      %3625 = vst.msk [vmem:[%s251 + $0x38] sm:$0xff] %vm3617, %v3502
      %3626 = vst.msk [vmem:[%s251 + $0x40] sm:$0xff] %vm3617, %v3507
      %3627 = vst.msk [vmem:[%s251 + $0x48] sm:$0xff] %vm3617, %v3510
      %3628 = vst.msk [vmem:[%s251 + $0x50] sm:$0xff] %vm3617, %v3515
      %3629 = vst.msk [vmem:[%s251 + $0x58] sm:$0xff] %vm3617, %v3518
      %3630 = vst.msk [vmem:[%s251 + $0x60] sm:$0xff] %vm3617, %v3523
      %3631 = vst.msk [vmem:[%s251 + $0x68] sm:$0xff] %vm3617, %v3526
      %3632 = vst.msk [vmem:[%s251 + $0x70] sm:$0xff] %vm3617, %v3531
      %3633 = vst.msk [vmem:[%s251 + $0x78] sm:$0xff] %vm3617, %v3534
      %3634 = vst.msk [vmem:[%s251 + $0x80] sm:$0xff] %vm3617, %v3539
      %3635 = vst.msk [vmem:[%s251 + $0x88] sm:$0xff] %vm3617, %v3542
      %3636 = vst.msk [vmem:[%s251 + $0x90] sm:$0xff] %vm3617, %v3547
      %3637 = vst.msk [vmem:[%s251 + $0x98] sm:$0xff] %vm3617, %v3550
      %3638 = vst.msk [vmem:[%s251 + $0xa0] sm:$0xff] %vm3617, %v3555
      %3639 = vst.msk [vmem:[%s251 + $0xa8] sm:$0xff] %vm3617, %v3558
      %3640 = vst.msk [vmem:[%s251 + $0xb0] sm:$0xff] %vm3617, %v3563
      %3641 = vst.msk [vmem:[%s251 + $0xb8] sm:$0xff] %vm3617, %v3566
      %3642 = vst.msk [vmem:[%s251 + $0xc0] sm:$0xff] %vm3617, %v3571
      %3643 = vst.msk [vmem:[%s251 + $0xc8] sm:$0xff] %vm3617, %v3574
      %3644 = vst.msk [vmem:[%s251 + $0xd0] sm:$0xff] %vm3617, %v3579
      %3645 = vst.msk [vmem:[%s251 + $0xd8] sm:$0xff] %vm3617, %v3582
      %3646 = vst.msk [vmem:[%s251 + $0xe0] sm:$0xff] %vm3617, %v3587
      %3647 = vst.msk [vmem:[%s251 + $0xe8] sm:$0xff] %vm3617, %v3590
      %3648 = vst.msk [vmem:[%s251 + $0xf0] sm:$0xff] %vm3617, %v3595
      %3649 = vst.msk [vmem:[%s251 + $0xf8] sm:$0xff] %vm3617, %v3598
      %3650 = vst.msk [vmem:[%s251 + $0x100] sm:$0xff] %vm3617, %v3603
      %3651 = vst.msk [vmem:[%s251 + $0x108] sm:$0xff] %vm3617, %v3606
      %3652 = vst.msk [vmem:[%s251 + $0x110] sm:$0xff] %vm3617, %v3611
      %3653 = vst.msk [vmem:[%s251 + $0x118] sm:$0xff] %vm3617, %v3614
      %p3654 = scmp.lt.s32.totalorder %s17, 1
      %s3655 = scalar_select %p3654, %s17, 1
      %s3656 = smul.addr %s3655, 36
      %s3657 = smul.addr %s3656, 8
      %s3658 = scalar_lea.vmem %s6, %s3657
      // Predicated region
      $region45: #{box_prediction.1} parent=43 // pred_check
        %p3659 = pneg %p166
      $region46: #{box_prediction.1} parent=43 // pred_check_branch
        %3661 = sbr.rel (%p3659) target = $region48
      $region47: #{box_prediction.1} parent=43 // pred_region
        _
      $region48: #{box_prediction.1} parent=43 // pred_fallthru
        _
    $region44: #{box_prediction.1} parent=5 // pred_fallthru
      _
    %p3662 = scmp.le.s32.totalorder 2, %s12
    // Predicated region
    $region49: #{box_prediction.1} parent=5 // pred_check
      %p3663 = pneg %p3662
    $region50: #{box_prediction.1} parent=5 // pred_check_branch
      %3665 = sbr.rel (%p3663) target = $region52
    $region51: #{box_prediction.1} parent=5 // pred_region
      %s3666 = ssub.s32 %s12, 2
      // Predicated region
      $region53: #{box_prediction.1} parent=51 // pred_check
        %p3667 = pneg %p172
      $region54: #{box_prediction.1} parent=51 // pred_check_branch
        %3669 = sbr.rel (%p3667) target = $region56
      $region55: #{box_prediction.1} parent=51 // pred_region
        %p3670 = scmp.lt.s32.totalorder %s18, 1
        %s3671 = scalar_select %p3670, %s18, 1
        %s3672 = smul.addr %s3671, 36
        %s3673 = smul.addr %s3672, 8
        %s3674 = scalar_lea.vmem %s6, %s3673
      $region56: #{box_prediction.1} parent=51 // pred_fallthru
        _
    $region52: #{box_prediction.1} parent=5 // pred_fallthru
      _
  $region6: #{box_prediction.1} parent=0 // loop_footer
    %s16 = sadd.s32 1, %s12
  $region7: #{box_prediction.1} parent=0 // loop_footer_branch
    %11 = sbr.rel target = $region3
  $region8: #{box_prediction.1} parent=0 // loop_exit
    _

</llo_original>
